<compile_context>
chip_gen: v6e
topology: v6e:2x2x1
jax: 0.10.0
libtpu: 0.0.40
codegen_flags: <defaults>
</compile_context>

<pallas_src>
import functools

import jax
import jax.numpy as jnp
from jax.experimental import pallas as pl
from jax.experimental.pallas import tpu as pltpu

NEG = -1e30  # bias value for padded vocab columns (never wins max / argmax)


# ------------------- fused multi-layer Elman RNN (relu) ---------------------
def _rnn_stack_kernel(len_ref, x_ref, wih0_ref, wihr_ref, whh_ref, b_ref,
                      out_ref, pre_scr, act_scr, *, T, Bp, L):
    lengths = len_ref[...]                                  # (Bp, 1) int32
    H = out_ref.shape[-1]

    # Ping-pong activation buffers so the final layer lands in out_ref and
    # intermediate layer activations never touch HBM.
    dsts = [out_ref if ((L - 1 - l) % 2 == 0) else act_scr for l in range(L)]

    for l in range(L):                                      # static layer loop
        src = x_ref if l == 0 else dsts[l - 1]
        wih = wih0_ref[...] if l == 0 else wihr_ref[l - 1]

        # Hoisted input projection: one big (T*Bp, D_in) x (D_in, H) matmul,
        # outside the serial recurrence.
        pre_scr[...] = jnp.dot(src[...], wih,
                               preferred_element_type=jnp.float32)

        whh = whh_ref[l]                                    # (H, H) resident
        bias = b_ref[l]                                     # (1, H)
        dst = dsts[l]

        def step(t, h_prev):
            row = t * Bp                                    # sublane-aligned
            h_new = jnp.maximum(
                pre_scr[pl.ds(row, Bp), :]
                + jnp.dot(h_prev, whh, preferred_element_type=jnp.float32)
                + bias,
                0.0)                                        # relu nonlinearity
            valid = lengths > t                             # (Bp, 1) packed mask
            h = jnp.where(valid, h_new, h_prev)             # freeze h past len[b]
            dst[pl.ds(row, Bp), :] = jnp.where(valid, h, 0.0)  # pad_packed zeros
            return h

        jax.lax.fori_loop(0, T, step, jnp.zeros((Bp, H), jnp.float32),
                          unroll=True)


def rnn_stack(x2d, lengths_bp1, wih0_t, wihr_t, whh_t, b, *, T, Bp):
    N, _ = x2d.shape
    L, H, _ = whh_t.shape
    kernel = functools.partial(_rnn_stack_kernel, T=T, Bp=Bp, L=L)
    return pl.pallas_call(
        kernel,
        out_shape=jax.ShapeDtypeStruct((N, H), jnp.float32),
        in_specs=[pl.BlockSpec(memory_space=pltpu.MemorySpace.VMEM)] * 6,
        out_specs=pl.BlockSpec(memory_space=pltpu.MemorySpace.VMEM),
        scratch_shapes=[pltpu.VMEM((N, H), jnp.float32),    # hoisted projections
                        pltpu.VMEM((N, H), jnp.float32)],   # ping-pong activations
    )(lengths_bp1, x2d, wih0_t, wihr_t, whh_t, b)


# --------- fused Linear + online-softmax CrossEntropy + argmax head ----------
def _head_kernel(x_ref, w_ref, b_ref, lbl_ref, ranks_ref, pred_ref, nll_ref,
                 m_scr, l_scr, lbl_scr, bv_scr, bi_scr):
    j = pl.program_id(1)                                    # vocab-tile index

    @pl.when(j == 0)
    def _():
        m_scr[...] = jnp.full_like(m_scr, -jnp.inf)
        l_scr[...] = jnp.zeros_like(l_scr)
        lbl_scr[...] = jnp.zeros_like(lbl_scr)
        bv_scr[...] = jnp.full_like(bv_scr, -jnp.inf)
        bi_scr[...] = jnp.zeros_like(bi_scr)

    logits = (jnp.dot(x_ref[...], w_ref[...],
                      preferred_element_type=jnp.float32) + b_ref[...])  # (tn, tv)
    ranks_ref[...] = logits                                 # logits / ranks tile

    tn, tv = logits.shape
    col = jax.lax.broadcasted_iota(jnp.int32, (tn, tv), 1) + j * tv

    # online log-sum-exp across vocab tiles
    tile_m = jnp.max(logits, axis=-1, keepdims=True)        # (tn, 1)
    m_new = jnp.maximum(m_scr[...], tile_m)
    l_scr[...] = (l_scr[...] * jnp.exp(m_scr[...] - m_new)
                  + jnp.sum(jnp.exp(logits - m_new), axis=-1, keepdims=True))
    m_scr[...] = m_new

    # logit at the label column (exactly one vocab tile holds it per row)
    onehot = (col == lbl_ref[...]).astype(jnp.float32)
    lbl_scr[...] += jnp.sum(logits * onehot, axis=-1, keepdims=True)

    # running argmax (first occurrence on ties)
    tile_arg = jnp.min(jnp.where(logits == tile_m, col, jnp.int32(2 ** 30)),
                       axis=-1, keepdims=True)
    better = tile_m > bv_scr[...]
    bv_scr[...] = jnp.where(better, tile_m, bv_scr[...])
    bi_scr[...] = jnp.where(better, tile_arg, bi_scr[...])

    @pl.when(j == pl.num_programs(1) - 1)
    def _():
        nll_ref[...] = m_scr[...] + jnp.log(l_scr[...]) - lbl_scr[...]
        pred_ref[...] = bi_scr[...]


def fused_linear_head(x_nh, w_hv, b_1v, labels_n1, *, tv=512, tn=None):
    N, H = x_nh.shape
    V = w_hv.shape[1]
    tv = min(tv, 128 * pl.cdiv(V, 128))                     # lane-aligned V tile
    Vp = tv * pl.cdiv(V, tv)
    if Vp != V:                                             # pad vocab columns
        w_hv = jnp.pad(w_hv, ((0, 0), (0, Vp - V)))
        b_1v = jnp.pad(b_1v, ((0, 0), (0, Vp - V)), constant_values=NEG)
    if tn is None:
        tn = N                                              # single row tile here
    assert N % tn == 0 and tn % 8 == 0

    ranks, pred, nll = pl.pallas_call(
        _head_kernel,
        out_shape=(jax.ShapeDtypeStruct((N, Vp), jnp.float32),
                   jax.ShapeDtypeStruct((N, 1), jnp.int32),
                   jax.ShapeDtypeStruct((N, 1), jnp.float32)),
        grid_spec=pltpu.PrefetchScalarGridSpec(
            num_scalar_prefetch=0,
            grid=(N // tn, Vp // tv),
            in_specs=[
                pl.BlockSpec((tn, H), lambda i, j: (i, 0)),   # activations row tile
                pl.BlockSpec((H, tv), lambda i, j: (0, j)),   # fc weight tile
                pl.BlockSpec((1, tv), lambda i, j: (0, j)),   # fc bias tile
                pl.BlockSpec((tn, 1), lambda i, j: (i, 0)),   # labels
            ],
            out_specs=[
                pl.BlockSpec((tn, tv), lambda i, j: (i, j)),  # ranks (logits)
                pl.BlockSpec((tn, 1), lambda i, j: (i, 0)),   # argmax (pred_tag)
                pl.BlockSpec((tn, 1), lambda i, j: (i, 0)),   # per-row NLL
            ],
            scratch_shapes=[pltpu.VMEM((tn, 1), jnp.float32),   # running max
                            pltpu.VMEM((tn, 1), jnp.float32),   # running sum-exp
                            pltpu.VMEM((tn, 1), jnp.float32),   # label logit
                            pltpu.VMEM((tn, 1), jnp.float32),   # best value
                            pltpu.VMEM((tn, 1), jnp.int32)],    # best index
        ),
        compiler_params=pltpu.CompilerParams(
            dimension_semantics=("parallel", "arbitrary")),
    )(x_nh, w_hv, b_1v, labels_n1)
    return ranks[:, :V], pred, nll


# ------------------------------ parameter init ------------------------------
def init_params(key, movie_num, embedding_dim, hidden_dim, layer_dim, output_dim):
    keys = jax.random.split(key, 3 + 4 * layer_dim)
    k = 1.0 / float(hidden_dim) ** 0.5
    wih_list, whh_list, b_list = [], [], []
    for l in range(layer_dim):
        d_in = embedding_dim if l == 0 else hidden_dim
        kk = keys[3 + 4 * l: 7 + 4 * l]
        w_ih = jax.random.uniform(kk[0], (hidden_dim, d_in), jnp.float32, -k, k)
        w_hh = jax.random.uniform(kk[1], (hidden_dim, hidden_dim), jnp.float32, -k, k)
        b_ih = jax.random.uniform(kk[2], (hidden_dim,), jnp.float32, -k, k)
        b_hh = jax.random.uniform(kk[3], (hidden_dim,), jnp.float32, -k, k)
        wih_list.append(w_ih.T)                             # (D_in, H)
        whh_list.append(w_hh.T)                             # (H, H)
        b_list.append((b_ih + b_hh).reshape(1, hidden_dim))
    return {
        "embedding": 0.02 * jax.random.normal(
            keys[0], (movie_num, embedding_dim), jnp.float32),
        "wih0_t": wih_list[0],                              # (E, H)
        "wihr_t": (jnp.stack(wih_list[1:]) if layer_dim > 1
                   else jnp.zeros((1, hidden_dim, hidden_dim), jnp.float32)),
        "whh_t": jnp.stack(whh_list),                       # (L, H, H)
        "b": jnp.stack(b_list),                             # (L, 1, H)
        "fc_w_t": jax.random.uniform(
            keys[1], (output_dim, hidden_dim), jnp.float32, -k, k).T,  # (H, V)
        "fc_b": jax.random.uniform(
            keys[2], (output_dim,), jnp.float32, -k, k).reshape(1, output_dim),
    }


# --------------------------------- forward ----------------------------------
@functools.partial(jax.jit, static_argnames=("tv",))
def rnn_forward(params, x, labels, seq_length, mask, *, tv=512):
    # x: [B, T] int32 ids, labels: [B, T] int32, seq_length: [B] int32,
    # mask: [B, T] float32 (1.0 at valid positions).  Requires max(seq_length) == T.
    B, T = x.shape
    V = params["fc_b"].shape[-1]
    Bp = 8 * ((B + 7) // 8)                                 # pad batch to sublanes

    # embedding gather (XLA glue; memory gather, not the matmul hot path)
    emb = jnp.take(params["embedding"], x, axis=0).astype(jnp.float32)  # [B,T,E]
    emb = jnp.pad(emb, ((0, Bp - B), (0, 0), (0, 0)))
    x2d = jnp.transpose(emb, (1, 0, 2)).reshape(T * Bp, -1)             # time-major

    lengths = jnp.pad(seq_length.astype(jnp.int32), (0, Bp - B)).reshape(Bp, 1)

    # fused multi-layer relu RNN: one kernel, weights + activations VMEM-resident
    out2d = rnn_stack(x2d, lengths, params["wih0_t"], params["wihr_t"],
                      params["whh_t"], params["b"], T=T, Bp=Bp)         # (T*Bp, H)

    # fused Linear + online-softmax CE + argmax over vocab tiles
    lbl2d = jnp.transpose(
        jnp.pad(labels.astype(jnp.int32), ((0, Bp - B), (0, 0)))).reshape(T * Bp, 1)
    msk2d = jnp.transpose(
        jnp.pad(mask.astype(jnp.float32), ((0, Bp - B), (0, 0)))).reshape(T * Bp, 1)
    ranks2d, pred2d, nll2d = fused_linear_head(
        out2d, params["fc_w_t"], params["fc_b"], lbl2d, tv=tv)

    # masked-mean CE == CrossEntropy over the mask-selected rows
    loss = jnp.sum(nll2d * msk2d) / jnp.sum(msk2d)
    ranks = jnp.transpose(ranks2d.reshape(T, Bp, V), (1, 0, 2))[:B]     # [B, T, V]
    pred_tag = jnp.transpose(pred2d.reshape(T, Bp))[:B]                 # [B, T]
    return loss, pred_tag, ranks


if __name__ == "__main__":
    # small, shape-consistent configuration (scaled-down movie_num / output_dim)
    MOVIE_NUM = 256
    EMBEDDING_DIM = 128
    HIDDEN_DIM = 128
    LAYER_DIM = 2
    OUTPUT_DIM = MOVIE_NUM
    B, T = 4, 8

    root = jax.random.PRNGKey(0)
    k_param, k_x, k_lbl = jax.random.split(root, 3)
    params = init_params(k_param, MOVIE_NUM, EMBEDDING_DIM, HIDDEN_DIM,
                         LAYER_DIM, OUTPUT_DIM)

    x = jax.random.randint(k_x, (B, T), 0, MOVIE_NUM, dtype=jnp.int32)
    labels = jax.random.randint(k_lbl, (B, T), 0, OUTPUT_DIM, dtype=jnp.int32)
    seq_length = jnp.array([T, 6, 5, 3], dtype=jnp.int32)   # max == T
    t_idx = jnp.arange(T, dtype=jnp.int32)[None, :]
    mask = (t_idx < seq_length[:, None]).astype(jnp.float32)

    # tv=128 exercises the multi-tile online-softmax path (V=256 -> 2 V tiles).
    loss, pred_tag, ranks = jax.block_until_ready(
        rnn_forward(params, x, labels, seq_length, mask, tv=128))

    assert pred_tag.shape == (B, T)
    assert ranks.shape == (B, T, OUTPUT_DIM)
    assert bool(jnp.isfinite(loss))
    print("KERNEL_OK")
</pallas_src>

<mosaic_0001>
module attributes {stable_mosaic.version = 11 : i64} {
  func.func @_rnn_stack_kernel(%arg0: memref<8x1xi32, #tpu.memory_space<vmem>>, %arg1: memref<64x128xf32, #tpu.memory_space<vmem>>, %arg2: memref<128x128xf32, #tpu.memory_space<vmem>>, %arg3: memref<1x128x128xf32, #tpu.memory_space<vmem>>, %arg4: memref<2x128x128xf32, #tpu.memory_space<vmem>>, %arg5: memref<2x1x128xf32, #tpu.memory_space<vmem>>, %arg6: memref<64x128xf32, #tpu.memory_space<vmem>>, %arg7: memref<64x128xf32, #tpu.memory_space<vmem>>, %arg8: memref<64x128xf32, #tpu.memory_space<vmem>>) attributes {dimension_semantics = [], scalar_prefetch = 0 : i64, scratch_operands = 2 : i64, tpu.core_type = #tpu.core_type<tc>} {
    %c0 = arith.constant 0 : index
    %c0_0 = arith.constant 0 : index
    %0 = vector.load %arg0[%c0, %c0_0] : memref<8x1xi32, #tpu.memory_space<vmem>>, vector<8x1xi32>
    %c0_1 = arith.constant 0 : index
    %c0_2 = arith.constant 0 : index
    %1 = vector.load %arg2[%c0_1, %c0_2] : memref<128x128xf32, #tpu.memory_space<vmem>>, vector<128x128xf32>
    %c0_3 = arith.constant 0 : index
    %c0_4 = arith.constant 0 : index
    %2 = vector.load %arg1[%c0_3, %c0_4] : memref<64x128xf32, #tpu.memory_space<vmem>>, vector<64x128xf32>
    %cst = arith.constant dense<0.000000e+00> : vector<64x128xf32>
    %3 = tpu.matmul %2, %1, %cst {dimension_numbers = #tpu.dot_dimension_numbers<[1], [0], [0], [1], [0, 0, 1, 1], [], []>} : vector<64x128xf32>, vector<128x128xf32>, vector<64x128xf32> -> vector<64x128xf32>
    %c0_5 = arith.constant 0 : index
    %c0_6 = arith.constant 0 : index
    %4 = vector.load %arg7[%c0_5, %c0_6] : memref<64x128xf32, #tpu.memory_space<vmem>>, vector<64x128xf32>
    tpu.vector_store %arg7[%c0_5, %c0_6], %3 {strides = array<i32>} : memref<64x128xf32, #tpu.memory_space<vmem>>, vector<64x128xf32>,
    %c0_7 = arith.constant 0 : index
    %c0_8 = arith.constant 0 : index
    %c0_9 = arith.constant 0 : index
    %5 = vector.load %arg4[%c0_7, %c0_8, %c0_9] : memref<2x128x128xf32, #tpu.memory_space<vmem>>, vector<1x128x128xf32>
    %6 = vector.shape_cast %5 : vector<1x128x128xf32> to vector<128x128xf32>
    %c0_10 = arith.constant 0 : index
    %c0_11 = arith.constant 0 : index
    %c0_12 = arith.constant 0 : index
    %7 = vector.load %arg5[%c0_10, %c0_11, %c0_12] : memref<2x1x128xf32, #tpu.memory_space<vmem>>, vector<1x1x128xf32>
    %8 = vector.shape_cast %7 : vector<1x1x128xf32> to vector<1x128xf32>
    %cst_13 = arith.constant 0.000000e+00 : f32
    %9 = vector.broadcast %cst_13 : f32 to vector<8x128xf32>
    %c0_i32 = arith.constant 0 : i32
    %c8_i32 = arith.constant 8 : i32
    %10 = arith.muli %c0_i32, %c8_i32 : i32
    %11 = arith.index_cast %10 : i32 to index
    %c0_14 = arith.constant 0 : index
    %12 = vector.load %arg7[%11, %c0_14] : memref<64x128xf32, #tpu.memory_space<vmem>>, vector<8x128xf32>
    %cst_15 = arith.constant dense<0.000000e+00> : vector<8x128xf32>
    %13 = tpu.matmul %9, %6, %cst_15 {dimension_numbers = #tpu.dot_dimension_numbers<[1], [0], [0], [1], [0, 0, 1, 1], [], []>} : vector<8x128xf32>, vector<128x128xf32>, vector<8x128xf32> -> vector<8x128xf32>
    %14 = arith.addf %12, %13 : vector<8x128xf32>
    %15 = vector.broadcast %8 : vector<1x128xf32> to vector<8x128xf32>
    %16 = arith.addf %14, %15 : vector<8x128xf32>
    %cst_16 = arith.constant 0.000000e+00 : f32
    %17 = vector.broadcast %cst_16 : f32 to vector<8x128xf32>
    %18 = arith.maximumf %16, %17 : vector<8x128xf32>
    %19 = vector.broadcast %c0_i32 : i32 to vector<8x1xi32>
    %20 = arith.cmpi sgt, %0, %19 : vector<8x1xi32>
    %21 = vector.shape_cast %20 : vector<8x1xi1> to vector<8x1xi1>
    %22 = vector.broadcast %21 : vector<8x1xi1> to vector<8x128xi1>
    %23 = arith.select %22, %18, %9 : vector<8x128xi1>, vector<8x128xf32>
    %cst_17 = arith.constant 0.000000e+00 : f32
    %24 = vector.shape_cast %20 : vector<8x1xi1> to vector<8x1xi1>
    %25 = vector.broadcast %24 : vector<8x1xi1> to vector<8x128xi1>
    %26 = vector.broadcast %cst_17 : f32 to vector<8x128xf32>
    %27 = arith.select %25, %23, %26 : vector<8x128xi1>, vector<8x128xf32>
    %28 = arith.index_cast %10 : i32 to index
    %c0_18 = arith.constant 0 : index
    %29 = vector.load %arg8[%28, %c0_18] : memref<64x128xf32, #tpu.memory_space<vmem>>, vector<8x128xf32>
    tpu.vector_store %arg8[%28, %c0_18], %27 {strides = array<i32>} : memref<64x128xf32, #tpu.memory_space<vmem>>, vector<8x128xf32>,
    %c1_i32 = arith.constant 1 : i32
    %c8_i32_19 = arith.constant 8 : i32
    %30 = arith.muli %c1_i32, %c8_i32_19 : i32
    %31 = arith.index_cast %30 : i32 to index
    %c0_20 = arith.constant 0 : index
    %32 = vector.load %arg7[%31, %c0_20] : memref<64x128xf32, #tpu.memory_space<vmem>>, vector<8x128xf32>
    %cst_21 = arith.constant dense<0.000000e+00> : vector<8x128xf32>
    %33 = tpu.matmul %23, %6, %cst_21 {dimension_numbers = #tpu.dot_dimension_numbers<[1], [0], [0], [1], [0, 0, 1, 1], [], []>} : vector<8x128xf32>, vector<128x128xf32>, vector<8x128xf32> -> vector<8x128xf32>
    %34 = arith.addf %32, %33 : vector<8x128xf32>
    %35 = vector.broadcast %8 : vector<1x128xf32> to vector<8x128xf32>
    %36 = arith.addf %34, %35 : vector<8x128xf32>
    %cst_22 = arith.constant 0.000000e+00 : f32
    %37 = vector.broadcast %cst_22 : f32 to vector<8x128xf32>
    %38 = arith.maximumf %36, %37 : vector<8x128xf32>
    %39 = vector.broadcast %c1_i32 : i32 to vector<8x1xi32>
    %40 = arith.cmpi sgt, %0, %39 : vector<8x1xi32>
    %41 = vector.shape_cast %40 : vector<8x1xi1> to vector<8x1xi1>
    %42 = vector.broadcast %41 : vector<8x1xi1> to vector<8x128xi1>
    %43 = arith.select %42, %38, %23 : vector<8x128xi1>, vector<8x128xf32>
    %cst_23 = arith.constant 0.000000e+00 : f32
    %44 = vector.shape_cast %40 : vector<8x1xi1> to vector<8x1xi1>
    %45 = vector.broadcast %44 : vector<8x1xi1> to vector<8x128xi1>
    %46 = vector.broadcast %cst_23 : f32 to vector<8x128xf32>
    %47 = arith.select %45, %43, %46 : vector<8x128xi1>, vector<8x128xf32>
    %48 = arith.index_cast %30 : i32 to index
    %c0_24 = arith.constant 0 : index
    %49 = vector.load %arg8[%48, %c0_24] : memref<64x128xf32, #tpu.memory_space<vmem>>, vector<8x128xf32>
    tpu.vector_store %arg8[%48, %c0_24], %47 {strides = array<i32>} : memref<64x128xf32, #tpu.memory_space<vmem>>, vector<8x128xf32>,
    %c2_i32 = arith.constant 2 : i32
    %c8_i32_25 = arith.constant 8 : i32
    %50 = arith.muli %c2_i32, %c8_i32_25 : i32
    %51 = arith.index_cast %50 : i32 to index
    %c0_26 = arith.constant 0 : index
    %52 = vector.load %arg7[%51, %c0_26] : memref<64x128xf32, #tpu.memory_space<vmem>>, vector<8x128xf32>
    %cst_27 = arith.constant dense<0.000000e+00> : vector<8x128xf32>
    %53 = tpu.matmul %43, %6, %cst_27 {dimension_numbers = #tpu.dot_dimension_numbers<[1], [0], [0], [1], [0, 0, 1, 1], [], []>} : vector<8x128xf32>, vector<128x128xf32>, vector<8x128xf32> -> vector<8x128xf32>
    %54 = arith.addf %52, %53 : vector<8x128xf32>
    %55 = vector.broadcast %8 : vector<1x128xf32> to vector<8x128xf32>
    %56 = arith.addf %54, %55 : vector<8x128xf32>
    %cst_28 = arith.constant 0.000000e+00 : f32
    %57 = vector.broadcast %cst_28 : f32 to vector<8x128xf32>
    %58 = arith.maximumf %56, %57 : vector<8x128xf32>
    %59 = vector.broadcast %c2_i32 : i32 to vector<8x1xi32>
    %60 = arith.cmpi sgt, %0, %59 : vector<8x1xi32>
    %61 = vector.shape_cast %60 : vector<8x1xi1> to vector<8x1xi1>
    %62 = vector.broadcast %61 : vector<8x1xi1> to vector<8x128xi1>
    %63 = arith.select %62, %58, %43 : vector<8x128xi1>, vector<8x128xf32>
    %cst_29 = arith.constant 0.000000e+00 : f32
    %64 = vector.shape_cast %60 : vector<8x1xi1> to vector<8x1xi1>
    %65 = vector.broadcast %64 : vector<8x1xi1> to vector<8x128xi1>
    %66 = vector.broadcast %cst_29 : f32 to vector<8x128xf32>
    %67 = arith.select %65, %63, %66 : vector<8x128xi1>, vector<8x128xf32>
    %68 = arith.index_cast %50 : i32 to index
    %c0_30 = arith.constant 0 : index
    %69 = vector.load %arg8[%68, %c0_30] : memref<64x128xf32, #tpu.memory_space<vmem>>, vector<8x128xf32>
    tpu.vector_store %arg8[%68, %c0_30], %67 {strides = array<i32>} : memref<64x128xf32, #tpu.memory_space<vmem>>, vector<8x128xf32>,
    %c3_i32 = arith.constant 3 : i32
    %c8_i32_31 = arith.constant 8 : i32
    %70 = arith.muli %c3_i32, %c8_i32_31 : i32
    %71 = arith.index_cast %70 : i32 to index
    %c0_32 = arith.constant 0 : index
    %72 = vector.load %arg7[%71, %c0_32] : memref<64x128xf32, #tpu.memory_space<vmem>>, vector<8x128xf32>
    %cst_33 = arith.constant dense<0.000000e+00> : vector<8x128xf32>
    %73 = tpu.matmul %63, %6, %cst_33 {dimension_numbers = #tpu.dot_dimension_numbers<[1], [0], [0], [1], [0, 0, 1, 1], [], []>} : vector<8x128xf32>, vector<128x128xf32>, vector<8x128xf32> -> vector<8x128xf32>
    %74 = arith.addf %72, %73 : vector<8x128xf32>
    %75 = vector.broadcast %8 : vector<1x128xf32> to vector<8x128xf32>
    %76 = arith.addf %74, %75 : vector<8x128xf32>
    %cst_34 = arith.constant 0.000000e+00 : f32
    %77 = vector.broadcast %cst_34 : f32 to vector<8x128xf32>
    %78 = arith.maximumf %76, %77 : vector<8x128xf32>
    %79 = vector.broadcast %c3_i32 : i32 to vector<8x1xi32>
    %80 = arith.cmpi sgt, %0, %79 : vector<8x1xi32>
    %81 = vector.shape_cast %80 : vector<8x1xi1> to vector<8x1xi1>
    %82 = vector.broadcast %81 : vector<8x1xi1> to vector<8x128xi1>
    %83 = arith.select %82, %78, %63 : vector<8x128xi1>, vector<8x128xf32>
    %cst_35 = arith.constant 0.000000e+00 : f32
    %84 = vector.shape_cast %80 : vector<8x1xi1> to vector<8x1xi1>
    %85 = vector.broadcast %84 : vector<8x1xi1> to vector<8x128xi1>
    %86 = vector.broadcast %cst_35 : f32 to vector<8x128xf32>
    %87 = arith.select %85, %83, %86 : vector<8x128xi1>, vector<8x128xf32>
    %88 = arith.index_cast %70 : i32 to index
    %c0_36 = arith.constant 0 : index
    %89 = vector.load %arg8[%88, %c0_36] : memref<64x128xf32, #tpu.memory_space<vmem>>, vector<8x128xf32>
    tpu.vector_store %arg8[%88, %c0_36], %87 {strides = array<i32>} : memref<64x128xf32, #tpu.memory_space<vmem>>, vector<8x128xf32>,
    %c4_i32 = arith.constant 4 : i32
    %c8_i32_37 = arith.constant 8 : i32
    %90 = arith.muli %c4_i32, %c8_i32_37 : i32
    %91 = arith.index_cast %90 : i32 to index
    %c0_38 = arith.constant 0 : index
    %92 = vector.load %arg7[%91, %c0_38] : memref<64x128xf32, #tpu.memory_space<vmem>>, vector<8x128xf32>
    %cst_39 = arith.constant dense<0.000000e+00> : vector<8x128xf32>
    %93 = tpu.matmul %83, %6, %cst_39 {dimension_numbers = #tpu.dot_dimension_numbers<[1], [0], [0], [1], [0, 0, 1, 1], [], []>} : vector<8x128xf32>, vector<128x128xf32>, vector<8x128xf32> -> vector<8x128xf32>
    %94 = arith.addf %92, %93 : vector<8x128xf32>
    %95 = vector.broadcast %8 : vector<1x128xf32> to vector<8x128xf32>
    %96 = arith.addf %94, %95 : vector<8x128xf32>
    %cst_40 = arith.constant 0.000000e+00 : f32
    %97 = vector.broadcast %cst_40 : f32 to vector<8x128xf32>
    %98 = arith.maximumf %96, %97 : vector<8x128xf32>
    %99 = vector.broadcast %c4_i32 : i32 to vector<8x1xi32>
    %100 = arith.cmpi sgt, %0, %99 : vector<8x1xi32>
    %101 = vector.shape_cast %100 : vector<8x1xi1> to vector<8x1xi1>
    %102 = vector.broadcast %101 : vector<8x1xi1> to vector<8x128xi1>
    %103 = arith.select %102, %98, %83 : vector<8x128xi1>, vector<8x128xf32>
    %cst_41 = arith.constant 0.000000e+00 : f32
    %104 = vector.shape_cast %100 : vector<8x1xi1> to vector<8x1xi1>
    %105 = vector.broadcast %104 : vector<8x1xi1> to vector<8x128xi1>
    %106 = vector.broadcast %cst_41 : f32 to vector<8x128xf32>
    %107 = arith.select %105, %103, %106 : vector<8x128xi1>, vector<8x128xf32>
    %108 = arith.index_cast %90 : i32 to index
    %c0_42 = arith.constant 0 : index
    %109 = vector.load %arg8[%108, %c0_42] : memref<64x128xf32, #tpu.memory_space<vmem>>, vector<8x128xf32>
    tpu.vector_store %arg8[%108, %c0_42], %107 {strides = array<i32>} : memref<64x128xf32, #tpu.memory_space<vmem>>, vector<8x128xf32>,
    %c5_i32 = arith.constant 5 : i32
    %c8_i32_43 = arith.constant 8 : i32
    %110 = arith.muli %c5_i32, %c8_i32_43 : i32
    %111 = arith.index_cast %110 : i32 to index
    %c0_44 = arith.constant 0 : index
    %112 = vector.load %arg7[%111, %c0_44] : memref<64x128xf32, #tpu.memory_space<vmem>>, vector<8x128xf32>
    %cst_45 = arith.constant dense<0.000000e+00> : vector<8x128xf32>
    %113 = tpu.matmul %103, %6, %cst_45 {dimension_numbers = #tpu.dot_dimension_numbers<[1], [0], [0], [1], [0, 0, 1, 1], [], []>} : vector<8x128xf32>, vector<128x128xf32>, vector<8x128xf32> -> vector<8x128xf32>
    %114 = arith.addf %112, %113 : vector<8x128xf32>
    %115 = vector.broadcast %8 : vector<1x128xf32> to vector<8x128xf32>
    %116 = arith.addf %114, %115 : vector<8x128xf32>
    %cst_46 = arith.constant 0.000000e+00 : f32
    %117 = vector.broadcast %cst_46 : f32 to vector<8x128xf32>
    %118 = arith.maximumf %116, %117 : vector<8x128xf32>
    %119 = vector.broadcast %c5_i32 : i32 to vector<8x1xi32>
    %120 = arith.cmpi sgt, %0, %119 : vector<8x1xi32>
    %121 = vector.shape_cast %120 : vector<8x1xi1> to vector<8x1xi1>
    %122 = vector.broadcast %121 : vector<8x1xi1> to vector<8x128xi1>
    %123 = arith.select %122, %118, %103 : vector<8x128xi1>, vector<8x128xf32>
    %cst_47 = arith.constant 0.000000e+00 : f32
    %124 = vector.shape_cast %120 : vector<8x1xi1> to vector<8x1xi1>
    %125 = vector.broadcast %124 : vector<8x1xi1> to vector<8x128xi1>
    %126 = vector.broadcast %cst_47 : f32 to vector<8x128xf32>
    %127 = arith.select %125, %123, %126 : vector<8x128xi1>, vector<8x128xf32>
    %128 = arith.index_cast %110 : i32 to index
    %c0_48 = arith.constant 0 : index
    %129 = vector.load %arg8[%128, %c0_48] : memref<64x128xf32, #tpu.memory_space<vmem>>, vector<8x128xf32>
    tpu.vector_store %arg8[%128, %c0_48], %127 {strides = array<i32>} : memref<64x128xf32, #tpu.memory_space<vmem>>, vector<8x128xf32>,
    %c6_i32 = arith.constant 6 : i32
    %c8_i32_49 = arith.constant 8 : i32
    %130 = arith.muli %c6_i32, %c8_i32_49 : i32
    %131 = arith.index_cast %130 : i32 to index
    %c0_50 = arith.constant 0 : index
    %132 = vector.load %arg7[%131, %c0_50] : memref<64x128xf32, #tpu.memory_space<vmem>>, vector<8x128xf32>
    %cst_51 = arith.constant dense<0.000000e+00> : vector<8x128xf32>
    %133 = tpu.matmul %123, %6, %cst_51 {dimension_numbers = #tpu.dot_dimension_numbers<[1], [0], [0], [1], [0, 0, 1, 1], [], []>} : vector<8x128xf32>, vector<128x128xf32>, vector<8x128xf32> -> vector<8x128xf32>
    %134 = arith.addf %132, %133 : vector<8x128xf32>
    %135 = vector.broadcast %8 : vector<1x128xf32> to vector<8x128xf32>
    %136 = arith.addf %134, %135 : vector<8x128xf32>
    %cst_52 = arith.constant 0.000000e+00 : f32
    %137 = vector.broadcast %cst_52 : f32 to vector<8x128xf32>
    %138 = arith.maximumf %136, %137 : vector<8x128xf32>
    %139 = vector.broadcast %c6_i32 : i32 to vector<8x1xi32>
    %140 = arith.cmpi sgt, %0, %139 : vector<8x1xi32>
    %141 = vector.shape_cast %140 : vector<8x1xi1> to vector<8x1xi1>
    %142 = vector.broadcast %141 : vector<8x1xi1> to vector<8x128xi1>
    %143 = arith.select %142, %138, %123 : vector<8x128xi1>, vector<8x128xf32>
    %cst_53 = arith.constant 0.000000e+00 : f32
    %144 = vector.shape_cast %140 : vector<8x1xi1> to vector<8x1xi1>
    %145 = vector.broadcast %144 : vector<8x1xi1> to vector<8x128xi1>
    %146 = vector.broadcast %cst_53 : f32 to vector<8x128xf32>
    %147 = arith.select %145, %143, %146 : vector<8x128xi1>, vector<8x128xf32>
    %148 = arith.index_cast %130 : i32 to index
    %c0_54 = arith.constant 0 : index
    %149 = vector.load %arg8[%148, %c0_54] : memref<64x128xf32, #tpu.memory_space<vmem>>, vector<8x128xf32>
    tpu.vector_store %arg8[%148, %c0_54], %147 {strides = array<i32>} : memref<64x128xf32, #tpu.memory_space<vmem>>, vector<8x128xf32>,
    %c7_i32 = arith.constant 7 : i32
    %c8_i32_55 = arith.constant 8 : i32
    %150 = arith.muli %c7_i32, %c8_i32_55 : i32
    %151 = arith.index_cast %150 : i32 to index
    %c0_56 = arith.constant 0 : index
    %152 = vector.load %arg7[%151, %c0_56] : memref<64x128xf32, #tpu.memory_space<vmem>>, vector<8x128xf32>
    %cst_57 = arith.constant dense<0.000000e+00> : vector<8x128xf32>
    %153 = tpu.matmul %143, %6, %cst_57 {dimension_numbers = #tpu.dot_dimension_numbers<[1], [0], [0], [1], [0, 0, 1, 1], [], []>} : vector<8x128xf32>, vector<128x128xf32>, vector<8x128xf32> -> vector<8x128xf32>
    %154 = arith.addf %152, %153 : vector<8x128xf32>
    %155 = vector.broadcast %8 : vector<1x128xf32> to vector<8x128xf32>
    %156 = arith.addf %154, %155 : vector<8x128xf32>
    %cst_58 = arith.constant 0.000000e+00 : f32
    %157 = vector.broadcast %cst_58 : f32 to vector<8x128xf32>
    %158 = arith.maximumf %156, %157 : vector<8x128xf32>
    %159 = vector.broadcast %c7_i32 : i32 to vector<8x1xi32>
    %160 = arith.cmpi sgt, %0, %159 : vector<8x1xi32>
    %161 = vector.shape_cast %160 : vector<8x1xi1> to vector<8x1xi1>
    %162 = vector.broadcast %161 : vector<8x1xi1> to vector<8x128xi1>
    %163 = arith.select %162, %158, %143 : vector<8x128xi1>, vector<8x128xf32>
    %cst_59 = arith.constant 0.000000e+00 : f32
    %164 = vector.shape_cast %160 : vector<8x1xi1> to vector<8x1xi1>
    %165 = vector.broadcast %164 : vector<8x1xi1> to vector<8x128xi1>
    %166 = vector.broadcast %cst_59 : f32 to vector<8x128xf32>
    %167 = arith.select %165, %163, %166 : vector<8x128xi1>, vector<8x128xf32>
    %168 = arith.index_cast %150 : i32 to index
    %c0_60 = arith.constant 0 : index
    %169 = vector.load %arg8[%168, %c0_60] : memref<64x128xf32, #tpu.memory_space<vmem>>, vector<8x128xf32>
    tpu.vector_store %arg8[%168, %c0_60], %167 {strides = array<i32>} : memref<64x128xf32, #tpu.memory_space<vmem>>, vector<8x128xf32>,
    %c8_i32_61 = arith.constant 8 : i32
    %c0_62 = arith.constant 0 : index
    %c0_63 = arith.constant 0 : index
    %c0_64 = arith.constant 0 : index
    %170 = vector.load %arg3[%c0_62, %c0_63, %c0_64] : memref<1x128x128xf32, #tpu.memory_space<vmem>>, vector<1x128x128xf32>
    %171 = vector.shape_cast %170 : vector<1x128x128xf32> to vector<128x128xf32>
    %c0_65 = arith.constant 0 : index
    %c0_66 = arith.constant 0 : index
    %172 = vector.load %arg8[%c0_65, %c0_66] : memref<64x128xf32, #tpu.memory_space<vmem>>, vector<64x128xf32>
    %cst_67 = arith.constant dense<0.000000e+00> : vector<64x128xf32>
    %173 = tpu.matmul %172, %171, %cst_67 {dimension_numbers = #tpu.dot_dimension_numbers<[1], [0], [0], [1], [0, 0, 1, 1], [], []>} : vector<64x128xf32>, vector<128x128xf32>, vector<64x128xf32> -> vector<64x128xf32>
    %c0_68 = arith.constant 0 : index
    %c0_69 = arith.constant 0 : index
    %174 = vector.load %arg7[%c0_68, %c0_69] : memref<64x128xf32, #tpu.memory_space<vmem>>, vector<64x128xf32>
    tpu.vector_store %arg7[%c0_68, %c0_69], %173 {strides = array<i32>} : memref<64x128xf32, #tpu.memory_space<vmem>>, vector<64x128xf32>,
    %c1 = arith.constant 1 : index
    %c0_70 = arith.constant 0 : index
    %c0_71 = arith.constant 0 : index
    %175 = vector.load %arg4[%c1, %c0_70, %c0_71] : memref<2x128x128xf32, #tpu.memory_space<vmem>>, vector<1x128x128xf32>
    %176 = vector.shape_cast %175 : vector<1x128x128xf32> to vector<128x128xf32>
    %c1_72 = arith.constant 1 : index
    %c0_73 = arith.constant 0 : index
    %c0_74 = arith.constant 0 : index
    %177 = vector.load %arg5[%c1_72, %c0_73, %c0_74] : memref<2x1x128xf32, #tpu.memory_space<vmem>>, vector<1x1x128xf32>
    %178 = vector.shape_cast %177 : vector<1x1x128xf32> to vector<1x128xf32>
    %cst_75 = arith.constant 0.000000e+00 : f32
    %179 = vector.broadcast %cst_75 : f32 to vector<8x128xf32>
    %c0_i32_76 = arith.constant 0 : i32
    %c8_i32_77 = arith.constant 8 : i32
    %180 = arith.muli %c0_i32_76, %c8_i32_77 : i32
    %181 = arith.index_cast %180 : i32 to index
    %c0_78 = arith.constant 0 : index
    %182 = vector.load %arg7[%181, %c0_78] : memref<64x128xf32, #tpu.memory_space<vmem>>, vector<8x128xf32>
    %cst_79 = arith.constant dense<0.000000e+00> : vector<8x128xf32>
    %183 = tpu.matmul %179, %176, %cst_79 {dimension_numbers = #tpu.dot_dimension_numbers<[1], [0], [0], [1], [0, 0, 1, 1], [], []>} : vector<8x128xf32>, vector<128x128xf32>, vector<8x128xf32> -> vector<8x128xf32>
    %184 = arith.addf %182, %183 : vector<8x128xf32>
    %185 = vector.broadcast %178 : vector<1x128xf32> to vector<8x128xf32>
    %186 = arith.addf %184, %185 : vector<8x128xf32>
    %cst_80 = arith.constant 0.000000e+00 : f32
    %187 = vector.broadcast %cst_80 : f32 to vector<8x128xf32>
    %188 = arith.maximumf %186, %187 : vector<8x128xf32>
    %189 = vector.broadcast %c0_i32_76 : i32 to vector<8x1xi32>
    %190 = arith.cmpi sgt, %0, %189 : vector<8x1xi32>
    %191 = vector.shape_cast %190 : vector<8x1xi1> to vector<8x1xi1>
    %192 = vector.broadcast %191 : vector<8x1xi1> to vector<8x128xi1>
    %193 = arith.select %192, %188, %179 : vector<8x128xi1>, vector<8x128xf32>
    %cst_81 = arith.constant 0.000000e+00 : f32
    %194 = vector.shape_cast %190 : vector<8x1xi1> to vector<8x1xi1>
    %195 = vector.broadcast %194 : vector<8x1xi1> to vector<8x128xi1>
    %196 = vector.broadcast %cst_81 : f32 to vector<8x128xf32>
    %197 = arith.select %195, %193, %196 : vector<8x128xi1>, vector<8x128xf32>
    %198 = arith.index_cast %180 : i32 to index
    %c0_82 = arith.constant 0 : index
    %199 = vector.load %arg6[%198, %c0_82] : memref<64x128xf32, #tpu.memory_space<vmem>>, vector<8x128xf32>
    tpu.vector_store %arg6[%198, %c0_82], %197 {strides = array<i32>} : memref<64x128xf32, #tpu.memory_space<vmem>>, vector<8x128xf32>,
    %c1_i32_83 = arith.constant 1 : i32
    %c8_i32_84 = arith.constant 8 : i32
    %200 = arith.muli %c1_i32_83, %c8_i32_84 : i32
    %201 = arith.index_cast %200 : i32 to index
    %c0_85 = arith.constant 0 : index
    %202 = vector.load %arg7[%201, %c0_85] : memref<64x128xf32, #tpu.memory_space<vmem>>, vector<8x128xf32>
    %cst_86 = arith.constant dense<0.000000e+00> : vector<8x128xf32>
    %203 = tpu.matmul %193, %176, %cst_86 {dimension_numbers = #tpu.dot_dimension_numbers<[1], [0], [0], [1], [0, 0, 1, 1], [], []>} : vector<8x128xf32>, vector<128x128xf32>, vector<8x128xf32> -> vector<8x128xf32>
    %204 = arith.addf %202, %203 : vector<8x128xf32>
    %205 = vector.broadcast %178 : vector<1x128xf32> to vector<8x128xf32>
    %206 = arith.addf %204, %205 : vector<8x128xf32>
    %cst_87 = arith.constant 0.000000e+00 : f32
    %207 = vector.broadcast %cst_87 : f32 to vector<8x128xf32>
    %208 = arith.maximumf %206, %207 : vector<8x128xf32>
    %209 = vector.broadcast %c1_i32_83 : i32 to vector<8x1xi32>
    %210 = arith.cmpi sgt, %0, %209 : vector<8x1xi32>
    %211 = vector.shape_cast %210 : vector<8x1xi1> to vector<8x1xi1>
    %212 = vector.broadcast %211 : vector<8x1xi1> to vector<8x128xi1>
    %213 = arith.select %212, %208, %193 : vector<8x128xi1>, vector<8x128xf32>
    %cst_88 = arith.constant 0.000000e+00 : f32
    %214 = vector.shape_cast %210 : vector<8x1xi1> to vector<8x1xi1>
    %215 = vector.broadcast %214 : vector<8x1xi1> to vector<8x128xi1>
    %216 = vector.broadcast %cst_88 : f32 to vector<8x128xf32>
    %217 = arith.select %215, %213, %216 : vector<8x128xi1>, vector<8x128xf32>
    %218 = arith.index_cast %200 : i32 to index
    %c0_89 = arith.constant 0 : index
    %219 = vector.load %arg6[%218, %c0_89] : memref<64x128xf32, #tpu.memory_space<vmem>>, vector<8x128xf32>
    tpu.vector_store %arg6[%218, %c0_89], %217 {strides = array<i32>} : memref<64x128xf32, #tpu.memory_space<vmem>>, vector<8x128xf32>,
    %c2_i32_90 = arith.constant 2 : i32
    %c8_i32_91 = arith.constant 8 : i32
    %220 = arith.muli %c2_i32_90, %c8_i32_91 : i32
    %221 = arith.index_cast %220 : i32 to index
    %c0_92 = arith.constant 0 : index
    %222 = vector.load %arg7[%221, %c0_92] : memref<64x128xf32, #tpu.memory_space<vmem>>, vector<8x128xf32>
    %cst_93 = arith.constant dense<0.000000e+00> : vector<8x128xf32>
    %223 = tpu.matmul %213, %176, %cst_93 {dimension_numbers = #tpu.dot_dimension_numbers<[1], [0], [0], [1], [0, 0, 1, 1], [], []>} : vector<8x128xf32>, vector<128x128xf32>, vector<8x128xf32> -> vector<8x128xf32>
    %224 = arith.addf %222, %223 : vector<8x128xf32>
    %225 = vector.broadcast %178 : vector<1x128xf32> to vector<8x128xf32>
    %226 = arith.addf %224, %225 : vector<8x128xf32>
    %cst_94 = arith.constant 0.000000e+00 : f32
    %227 = vector.broadcast %cst_94 : f32 to vector<8x128xf32>
    %228 = arith.maximumf %226, %227 : vector<8x128xf32>
    %229 = vector.broadcast %c2_i32_90 : i32 to vector<8x1xi32>
    %230 = arith.cmpi sgt, %0, %229 : vector<8x1xi32>
    %231 = vector.shape_cast %230 : vector<8x1xi1> to vector<8x1xi1>
    %232 = vector.broadcast %231 : vector<8x1xi1> to vector<8x128xi1>
    %233 = arith.select %232, %228, %213 : vector<8x128xi1>, vector<8x128xf32>
    %cst_95 = arith.constant 0.000000e+00 : f32
    %234 = vector.shape_cast %230 : vector<8x1xi1> to vector<8x1xi1>
    %235 = vector.broadcast %234 : vector<8x1xi1> to vector<8x128xi1>
    %236 = vector.broadcast %cst_95 : f32 to vector<8x128xf32>
    %237 = arith.select %235, %233, %236 : vector<8x128xi1>, vector<8x128xf32>
    %238 = arith.index_cast %220 : i32 to index
    %c0_96 = arith.constant 0 : index
    %239 = vector.load %arg6[%238, %c0_96] : memref<64x128xf32, #tpu.memory_space<vmem>>, vector<8x128xf32>
    tpu.vector_store %arg6[%238, %c0_96], %237 {strides = array<i32>} : memref<64x128xf32, #tpu.memory_space<vmem>>, vector<8x128xf32>,
    %c3_i32_97 = arith.constant 3 : i32
    %c8_i32_98 = arith.constant 8 : i32
    %240 = arith.muli %c3_i32_97, %c8_i32_98 : i32
    %241 = arith.index_cast %240 : i32 to index
    %c0_99 = arith.constant 0 : index
    %242 = vector.load %arg7[%241, %c0_99] : memref<64x128xf32, #tpu.memory_space<vmem>>, vector<8x128xf32>
    %cst_100 = arith.constant dense<0.000000e+00> : vector<8x128xf32>
    %243 = tpu.matmul %233, %176, %cst_100 {dimension_numbers = #tpu.dot_dimension_numbers<[1], [0], [0], [1], [0, 0, 1, 1], [], []>} : vector<8x128xf32>, vector<128x128xf32>, vector<8x128xf32> -> vector<8x128xf32>
    %244 = arith.addf %242, %243 : vector<8x128xf32>
    %245 = vector.broadcast %178 : vector<1x128xf32> to vector<8x128xf32>
    %246 = arith.addf %244, %245 : vector<8x128xf32>
    %cst_101 = arith.constant 0.000000e+00 : f32
    %247 = vector.broadcast %cst_101 : f32 to vector<8x128xf32>
    %248 = arith.maximumf %246, %247 : vector<8x128xf32>
    %249 = vector.broadcast %c3_i32_97 : i32 to vector<8x1xi32>
    %250 = arith.cmpi sgt, %0, %249 : vector<8x1xi32>
    %251 = vector.shape_cast %250 : vector<8x1xi1> to vector<8x1xi1>
    %252 = vector.broadcast %251 : vector<8x1xi1> to vector<8x128xi1>
    %253 = arith.select %252, %248, %233 : vector<8x128xi1>, vector<8x128xf32>
    %cst_102 = arith.constant 0.000000e+00 : f32
    %254 = vector.shape_cast %250 : vector<8x1xi1> to vector<8x1xi1>
    %255 = vector.broadcast %254 : vector<8x1xi1> to vector<8x128xi1>
    %256 = vector.broadcast %cst_102 : f32 to vector<8x128xf32>
    %257 = arith.select %255, %253, %256 : vector<8x128xi1>, vector<8x128xf32>
    %258 = arith.index_cast %240 : i32 to index
    %c0_103 = arith.constant 0 : index
    %259 = vector.load %arg6[%258, %c0_103] : memref<64x128xf32, #tpu.memory_space<vmem>>, vector<8x128xf32>
    tpu.vector_store %arg6[%258, %c0_103], %257 {strides = array<i32>} : memref<64x128xf32, #tpu.memory_space<vmem>>, vector<8x128xf32>,
    %c4_i32_104 = arith.constant 4 : i32
    %c8_i32_105 = arith.constant 8 : i32
    %260 = arith.muli %c4_i32_104, %c8_i32_105 : i32
    %261 = arith.index_cast %260 : i32 to index
    %c0_106 = arith.constant 0 : index
    %262 = vector.load %arg7[%261, %c0_106] : memref<64x128xf32, #tpu.memory_space<vmem>>, vector<8x128xf32>
    %cst_107 = arith.constant dense<0.000000e+00> : vector<8x128xf32>
    %263 = tpu.matmul %253, %176, %cst_107 {dimension_numbers = #tpu.dot_dimension_numbers<[1], [0], [0], [1], [0, 0, 1, 1], [], []>} : vector<8x128xf32>, vector<128x128xf32>, vector<8x128xf32> -> vector<8x128xf32>
    %264 = arith.addf %262, %263 : vector<8x128xf32>
    %265 = vector.broadcast %178 : vector<1x128xf32> to vector<8x128xf32>
    %266 = arith.addf %264, %265 : vector<8x128xf32>
    %cst_108 = arith.constant 0.000000e+00 : f32
    %267 = vector.broadcast %cst_108 : f32 to vector<8x128xf32>
    %268 = arith.maximumf %266, %267 : vector<8x128xf32>
    %269 = vector.broadcast %c4_i32_104 : i32 to vector<8x1xi32>
    %270 = arith.cmpi sgt, %0, %269 : vector<8x1xi32>
    %271 = vector.shape_cast %270 : vector<8x1xi1> to vector<8x1xi1>
    %272 = vector.broadcast %271 : vector<8x1xi1> to vector<8x128xi1>
    %273 = arith.select %272, %268, %253 : vector<8x128xi1>, vector<8x128xf32>
    %cst_109 = arith.constant 0.000000e+00 : f32
    %274 = vector.shape_cast %270 : vector<8x1xi1> to vector<8x1xi1>
    %275 = vector.broadcast %274 : vector<8x1xi1> to vector<8x128xi1>
    %276 = vector.broadcast %cst_109 : f32 to vector<8x128xf32>
    %277 = arith.select %275, %273, %276 : vector<8x128xi1>, vector<8x128xf32>
    %278 = arith.index_cast %260 : i32 to index
    %c0_110 = arith.constant 0 : index
    %279 = vector.load %arg6[%278, %c0_110] : memref<64x128xf32, #tpu.memory_space<vmem>>, vector<8x128xf32>
    tpu.vector_store %arg6[%278, %c0_110], %277 {strides = array<i32>} : memref<64x128xf32, #tpu.memory_space<vmem>>, vector<8x128xf32>,
    %c5_i32_111 = arith.constant 5 : i32
    %c8_i32_112 = arith.constant 8 : i32
    %280 = arith.muli %c5_i32_111, %c8_i32_112 : i32
    %281 = arith.index_cast %280 : i32 to index
    %c0_113 = arith.constant 0 : index
    %282 = vector.load %arg7[%281, %c0_113] : memref<64x128xf32, #tpu.memory_space<vmem>>, vector<8x128xf32>
    %cst_114 = arith.constant dense<0.000000e+00> : vector<8x128xf32>
    %283 = tpu.matmul %273, %176, %cst_114 {dimension_numbers = #tpu.dot_dimension_numbers<[1], [0], [0], [1], [0, 0, 1, 1], [], []>} : vector<8x128xf32>, vector<128x128xf32>, vector<8x128xf32> -> vector<8x128xf32>
    %284 = arith.addf %282, %283 : vector<8x128xf32>
    %285 = vector.broadcast %178 : vector<1x128xf32> to vector<8x128xf32>
    %286 = arith.addf %284, %285 : vector<8x128xf32>
    %cst_115 = arith.constant 0.000000e+00 : f32
    %287 = vector.broadcast %cst_115 : f32 to vector<8x128xf32>
    %288 = arith.maximumf %286, %287 : vector<8x128xf32>
    %289 = vector.broadcast %c5_i32_111 : i32 to vector<8x1xi32>
    %290 = arith.cmpi sgt, %0, %289 : vector<8x1xi32>
    %291 = vector.shape_cast %290 : vector<8x1xi1> to vector<8x1xi1>
    %292 = vector.broadcast %291 : vector<8x1xi1> to vector<8x128xi1>
    %293 = arith.select %292, %288, %273 : vector<8x128xi1>, vector<8x128xf32>
    %cst_116 = arith.constant 0.000000e+00 : f32
    %294 = vector.shape_cast %290 : vector<8x1xi1> to vector<8x1xi1>
    %295 = vector.broadcast %294 : vector<8x1xi1> to vector<8x128xi1>
    %296 = vector.broadcast %cst_116 : f32 to vector<8x128xf32>
    %297 = arith.select %295, %293, %296 : vector<8x128xi1>, vector<8x128xf32>
    %298 = arith.index_cast %280 : i32 to index
    %c0_117 = arith.constant 0 : index
    %299 = vector.load %arg6[%298, %c0_117] : memref<64x128xf32, #tpu.memory_space<vmem>>, vector<8x128xf32>
    tpu.vector_store %arg6[%298, %c0_117], %297 {strides = array<i32>} : memref<64x128xf32, #tpu.memory_space<vmem>>, vector<8x128xf32>,
    %c6_i32_118 = arith.constant 6 : i32
    %c8_i32_119 = arith.constant 8 : i32
    %300 = arith.muli %c6_i32_118, %c8_i32_119 : i32
    %301 = arith.index_cast %300 : i32 to index
    %c0_120 = arith.constant 0 : index
    %302 = vector.load %arg7[%301, %c0_120] : memref<64x128xf32, #tpu.memory_space<vmem>>, vector<8x128xf32>
    %cst_121 = arith.constant dense<0.000000e+00> : vector<8x128xf32>
    %303 = tpu.matmul %293, %176, %cst_121 {dimension_numbers = #tpu.dot_dimension_numbers<[1], [0], [0], [1], [0, 0, 1, 1], [], []>} : vector<8x128xf32>, vector<128x128xf32>, vector<8x128xf32> -> vector<8x128xf32>
    %304 = arith.addf %302, %303 : vector<8x128xf32>
    %305 = vector.broadcast %178 : vector<1x128xf32> to vector<8x128xf32>
    %306 = arith.addf %304, %305 : vector<8x128xf32>
    %cst_122 = arith.constant 0.000000e+00 : f32
    %307 = vector.broadcast %cst_122 : f32 to vector<8x128xf32>
    %308 = arith.maximumf %306, %307 : vector<8x128xf32>
    %309 = vector.broadcast %c6_i32_118 : i32 to vector<8x1xi32>
    %310 = arith.cmpi sgt, %0, %309 : vector<8x1xi32>
    %311 = vector.shape_cast %310 : vector<8x1xi1> to vector<8x1xi1>
    %312 = vector.broadcast %311 : vector<8x1xi1> to vector<8x128xi1>
    %313 = arith.select %312, %308, %293 : vector<8x128xi1>, vector<8x128xf32>
    %cst_123 = arith.constant 0.000000e+00 : f32
    %314 = vector.shape_cast %310 : vector<8x1xi1> to vector<8x1xi1>
    %315 = vector.broadcast %314 : vector<8x1xi1> to vector<8x128xi1>
    %316 = vector.broadcast %cst_123 : f32 to vector<8x128xf32>
    %317 = arith.select %315, %313, %316 : vector<8x128xi1>, vector<8x128xf32>
    %318 = arith.index_cast %300 : i32 to index
    %c0_124 = arith.constant 0 : index
    %319 = vector.load %arg6[%318, %c0_124] : memref<64x128xf32, #tpu.memory_space<vmem>>, vector<8x128xf32>
    tpu.vector_store %arg6[%318, %c0_124], %317 {strides = array<i32>} : memref<64x128xf32, #tpu.memory_space<vmem>>, vector<8x128xf32>,
    %c7_i32_125 = arith.constant 7 : i32
    %c8_i32_126 = arith.constant 8 : i32
    %320 = arith.muli %c7_i32_125, %c8_i32_126 : i32
    %321 = arith.index_cast %320 : i32 to index
    %c0_127 = arith.constant 0 : index
    %322 = vector.load %arg7[%321, %c0_127] : memref<64x128xf32, #tpu.memory_space<vmem>>, vector<8x128xf32>
    %cst_128 = arith.constant dense<0.000000e+00> : vector<8x128xf32>
    %323 = tpu.matmul %313, %176, %cst_128 {dimension_numbers = #tpu.dot_dimension_numbers<[1], [0], [0], [1], [0, 0, 1, 1], [], []>} : vector<8x128xf32>, vector<128x128xf32>, vector<8x128xf32> -> vector<8x128xf32>
    %324 = arith.addf %322, %323 : vector<8x128xf32>
    %325 = vector.broadcast %178 : vector<1x128xf32> to vector<8x128xf32>
    %326 = arith.addf %324, %325 : vector<8x128xf32>
    %cst_129 = arith.constant 0.000000e+00 : f32
    %327 = vector.broadcast %cst_129 : f32 to vector<8x128xf32>
    %328 = arith.maximumf %326, %327 : vector<8x128xf32>
    %329 = vector.broadcast %c7_i32_125 : i32 to vector<8x1xi32>
    %330 = arith.cmpi sgt, %0, %329 : vector<8x1xi32>
    %331 = vector.shape_cast %330 : vector<8x1xi1> to vector<8x1xi1>
    %332 = vector.broadcast %331 : vector<8x1xi1> to vector<8x128xi1>
    %333 = arith.select %332, %328, %313 : vector<8x128xi1>, vector<8x128xf32>
    %cst_130 = arith.constant 0.000000e+00 : f32
    %334 = vector.shape_cast %330 : vector<8x1xi1> to vector<8x1xi1>
    %335 = vector.broadcast %334 : vector<8x1xi1> to vector<8x128xi1>
    %336 = vector.broadcast %cst_130 : f32 to vector<8x128xf32>
    %337 = arith.select %335, %333, %336 : vector<8x128xi1>, vector<8x128xf32>
    %338 = arith.index_cast %320 : i32 to index
    %c0_131 = arith.constant 0 : index
    %339 = vector.load %arg6[%338, %c0_131] : memref<64x128xf32, #tpu.memory_space<vmem>>, vector<8x128xf32>
    tpu.vector_store %arg6[%338, %c0_131], %337 {strides = array<i32>} : memref<64x128xf32, #tpu.memory_space<vmem>>, vector<8x128xf32>,
    %c8_i32_132 = arith.constant 8 : i32
    return
  }
}

module attributes {stable_mosaic.version = 11 : i64} {
  func.func @_head_kernel(%arg0: i32, %arg1: i32, %arg2: memref<64x128xf32, #tpu.memory_space<vmem>>, %arg3: memref<128x128xf32, #tpu.memory_space<vmem>>, %arg4: memref<1x128xf32, #tpu.memory_space<vmem>>, %arg5: memref<64x1xi32, #tpu.memory_space<vmem>>, %arg6: memref<64x128xf32, #tpu.memory_space<vmem>>, %arg7: memref<64x1xi32, #tpu.memory_space<vmem>>, %arg8: memref<64x1xf32, #tpu.memory_space<vmem>>, %arg9: memref<64x1xf32, #tpu.memory_space<vmem>>, %arg10: memref<64x1xf32, #tpu.memory_space<vmem>>, %arg11: memref<64x1xf32, #tpu.memory_space<vmem>>, %arg12: memref<64x1xf32, #tpu.memory_space<vmem>>, %arg13: memref<64x1xi32, #tpu.memory_space<vmem>>) attributes {dimension_semantics = [#tpu.dimension_semantics<parallel>, #tpu.dimension_semantics<arbitrary>], iteration_bounds = array<i64: 1, 2>, scalar_prefetch = 0 : i64, scratch_operands = 5 : i64, tpu.core_type = #tpu.core_type<tc>, window_params = [{transform_indices = @transform_0, window_bounds = array<i64: 64, 128>}, {transform_indices = @transform_1, window_bounds = array<i64: 128, 128>}, {transform_indices = @transform_2, window_bounds = array<i64: 1, 128>}, {transform_indices = @transform_3, window_bounds = array<i64: 64, 1>}, {transform_indices = @transform_4, window_bounds = array<i64: 64, 128>}, {transform_indices = @transform_5, window_bounds = array<i64: 64, 1>}, {transform_indices = @transform_6, window_bounds = array<i64: 64, 1>}]} {
    %c0_i32 = arith.constant 0 : i32
    %0 = arith.cmpi eq, %arg1, %c0_i32 : i32
    %1 = arith.extui %0 : i1 to i32
    %c0_i32_0 = arith.constant 0 : i32
    %2 = arith.cmpi ne, %1, %c0_i32_0 : i32
    scf.if %2 {
      %cst_39 = arith.constant 0xFF800000 : f32
      %59 = vector.broadcast %cst_39 : f32 to vector<64x1xf32>
      %c0_40 = arith.constant 0 : index
      %c0_41 = arith.constant 0 : index
      %60 = vector.load %arg9[%c0_40, %c0_41] : memref<64x1xf32, #tpu.memory_space<vmem>>, vector<64x1xf32>
      tpu.vector_store %arg9[%c0_40, %c0_41], %59 {strides = array<i32>} : memref<64x1xf32, #tpu.memory_space<vmem>>, vector<64x1xf32>,
      %cst_42 = arith.constant 0.000000e+00 : f32
      %61 = vector.broadcast %cst_42 : f32 to vector<64x1xf32>
      %c0_43 = arith.constant 0 : index
      %c0_44 = arith.constant 0 : index
      %62 = vector.load %arg10[%c0_43, %c0_44] : memref<64x1xf32, #tpu.memory_space<vmem>>, vector<64x1xf32>
      tpu.vector_store %arg10[%c0_43, %c0_44], %61 {strides = array<i32>} : memref<64x1xf32, #tpu.memory_space<vmem>>, vector<64x1xf32>,
      %cst_45 = arith.constant 0.000000e+00 : f32
      %63 = vector.broadcast %cst_45 : f32 to vector<64x1xf32>
      %c0_46 = arith.constant 0 : index
      %c0_47 = arith.constant 0 : index
      %64 = vector.load %arg11[%c0_46, %c0_47] : memref<64x1xf32, #tpu.memory_space<vmem>>, vector<64x1xf32>
      tpu.vector_store %arg11[%c0_46, %c0_47], %63 {strides = array<i32>} : memref<64x1xf32, #tpu.memory_space<vmem>>, vector<64x1xf32>,
      %cst_48 = arith.constant 0xFF800000 : f32
      %65 = vector.broadcast %cst_48 : f32 to vector<64x1xf32>
      %c0_49 = arith.constant 0 : index
      %c0_50 = arith.constant 0 : index
      %66 = vector.load %arg12[%c0_49, %c0_50] : memref<64x1xf32, #tpu.memory_space<vmem>>, vector<64x1xf32>
      tpu.vector_store %arg12[%c0_49, %c0_50], %65 {strides = array<i32>} : memref<64x1xf32, #tpu.memory_space<vmem>>, vector<64x1xf32>,
      %c0_i32_51 = arith.constant 0 : i32
      %67 = vector.broadcast %c0_i32_51 : i32 to vector<64x1xi32>
      %c0_52 = arith.constant 0 : index
      %c0_53 = arith.constant 0 : index
      %68 = vector.load %arg13[%c0_52, %c0_53] : memref<64x1xi32, #tpu.memory_space<vmem>>, vector<64x1xi32>
      tpu.vector_store %arg13[%c0_52, %c0_53], %67 {strides = array<i32>} : memref<64x1xi32, #tpu.memory_space<vmem>>, vector<64x1xi32>,
    } else {
    }
    %c0 = arith.constant 0 : index
    %c0_1 = arith.constant 0 : index
    %3 = vector.load %arg2[%c0, %c0_1] : memref<64x128xf32, #tpu.memory_space<vmem>>, vector<64x128xf32>
    %c0_2 = arith.constant 0 : index
    %c0_3 = arith.constant 0 : index
    %4 = vector.load %arg3[%c0_2, %c0_3] : memref<128x128xf32, #tpu.memory_space<vmem>>, vector<128x128xf32>
    %cst = arith.constant dense<0.000000e+00> : vector<64x128xf32>
    %5 = tpu.matmul %3, %4, %cst {dimension_numbers = #tpu.dot_dimension_numbers<[1], [0], [0], [1], [0, 0, 1, 1], [], []>} : vector<64x128xf32>, vector<128x128xf32>, vector<64x128xf32> -> vector<64x128xf32>
    %c0_4 = arith.constant 0 : index
    %c0_5 = arith.constant 0 : index
    %6 = vector.load %arg4[%c0_4, %c0_5] : memref<1x128xf32, #tpu.memory_space<vmem>>, vector<1x128xf32>
    %7 = vector.broadcast %6 : vector<1x128xf32> to vector<64x128xf32>
    %8 = arith.addf %5, %7 : vector<64x128xf32>
    %c0_6 = arith.constant 0 : index
    %c0_7 = arith.constant 0 : index
    %9 = vector.load %arg6[%c0_6, %c0_7] : memref<64x128xf32, #tpu.memory_space<vmem>>, vector<64x128xf32>
    tpu.vector_store %arg6[%c0_6, %c0_7], %8 {strides = array<i32>} : memref<64x128xf32, #tpu.memory_space<vmem>>, vector<64x128xf32>,
    %10 = tpu.iota {dimensions = array<i32: 1>} : vector<64x128xi32>
    %c128_i32 = arith.constant 128 : i32
    %11 = arith.muli %arg1, %c128_i32 : i32
    %12 = vector.broadcast %11 : i32 to vector<64x128xi32>
    %13 = arith.addi %10, %12 : vector<64x128xi32>
    %cst_8 = arith.constant dense<0xFF800000> : vector<64xf32>
    %14 = vector.multi_reduction <maximumf>, %8, %cst_8 [1] : vector<64x128xf32> to vector<64xf32>
    %15 = vector.shape_cast %14 : vector<64xf32> to vector<64x1xf32>
    %c0_9 = arith.constant 0 : index
    %c0_10 = arith.constant 0 : index
    %16 = vector.load %arg9[%c0_9, %c0_10] : memref<64x1xf32, #tpu.memory_space<vmem>>, vector<64x1xf32>
    %17 = arith.maximumf %16, %15 : vector<64x1xf32>
    %c0_11 = arith.constant 0 : index
    %c0_12 = arith.constant 0 : index
    %18 = vector.load %arg10[%c0_11, %c0_12] : memref<64x1xf32, #tpu.memory_space<vmem>>, vector<64x1xf32>
    %c0_13 = arith.constant 0 : index
    %c0_14 = arith.constant 0 : index
    %19 = vector.load %arg9[%c0_13, %c0_14] : memref<64x1xf32, #tpu.memory_space<vmem>>, vector<64x1xf32>
    %20 = arith.subf %19, %17 : vector<64x1xf32>
    %21 = math.exp %20 : vector<64x1xf32>
    %22 = arith.mulf %18, %21 : vector<64x1xf32>
    %23 = vector.broadcast %17 : vector<64x1xf32> to vector<64x128xf32>
    %24 = arith.subf %8, %23 : vector<64x128xf32>
    %25 = math.exp %24 : vector<64x128xf32>
    %cst_15 = arith.constant dense<0.000000e+00> : vector<64xf32>
    %26 = vector.multi_reduction <add>, %25, %cst_15 [1] : vector<64x128xf32> to vector<64xf32>
    %27 = vector.shape_cast %26 : vector<64xf32> to vector<64x1xf32>
    %28 = arith.addf %22, %27 : vector<64x1xf32>
    %c0_16 = arith.constant 0 : index
    %c0_17 = arith.constant 0 : index
    %29 = vector.load %arg10[%c0_16, %c0_17] : memref<64x1xf32, #tpu.memory_space<vmem>>, vector<64x1xf32>
    tpu.vector_store %arg10[%c0_16, %c0_17], %28 {strides = array<i32>} : memref<64x1xf32, #tpu.memory_space<vmem>>, vector<64x1xf32>,
    %c0_18 = arith.constant 0 : index
    %c0_19 = arith.constant 0 : index
    %30 = vector.load %arg9[%c0_18, %c0_19] : memref<64x1xf32, #tpu.memory_space<vmem>>, vector<64x1xf32>
    tpu.vector_store %arg9[%c0_18, %c0_19], %17 {strides = array<i32>} : memref<64x1xf32, #tpu.memory_space<vmem>>, vector<64x1xf32>,
    %c0_20 = arith.constant 0 : index
    %c0_21 = arith.constant 0 : index
    %31 = vector.load %arg5[%c0_20, %c0_21] : memref<64x1xi32, #tpu.memory_space<vmem>>, vector<64x1xi32>
    %32 = vector.broadcast %31 : vector<64x1xi32> to vector<64x128xi32>
    %33 = arith.cmpi eq, %13, %32 : vector<64x128xi32>
    %34 = arith.extui %33 : vector<64x128xi1> to vector<64x128xi32>
    %35 = arith.sitofp %34 : vector<64x128xi32> to vector<64x128xf32>
    %c0_22 = arith.constant 0 : index
    %c0_23 = arith.constant 0 : index
    %36 = vector.load %arg11[%c0_22, %c0_23] : memref<64x1xf32, #tpu.memory_space<vmem>>, vector<64x1xf32>
    %37 = arith.mulf %8, %35 : vector<64x128xf32>
    %cst_24 = arith.constant dense<0.000000e+00> : vector<64xf32>
    %38 = vector.multi_reduction <add>, %37, %cst_24 [1] : vector<64x128xf32> to vector<64xf32>
    %39 = vector.shape_cast %38 : vector<64xf32> to vector<64x1xf32>
    %40 = arith.addf %36, %39 : vector<64x1xf32>
    %c0_25 = arith.constant 0 : index
    %c0_26 = arith.constant 0 : index
    %41 = vector.load %arg11[%c0_25, %c0_26] : memref<64x1xf32, #tpu.memory_space<vmem>>, vector<64x1xf32>
    tpu.vector_store %arg11[%c0_25, %c0_26], %40 {strides = array<i32>} : memref<64x1xf32, #tpu.memory_space<vmem>>, vector<64x1xf32>,
    %42 = vector.broadcast %15 : vector<64x1xf32> to vector<64x128xf32>
    %43 = arith.cmpf oeq, %8, %42 : vector<64x128xf32>
    %c1073741824_i32 = arith.constant 1073741824 : i32
    %44 = vector.broadcast %c1073741824_i32 : i32 to vector<64x128xi32>
    %45 = arith.select %43, %13, %44 : vector<64x128xi1>, vector<64x128xi32>
    %cst_27 = arith.constant dense<2147483647> : vector<64xi32>
    %46 = vector.multi_reduction <minsi>, %45, %cst_27 [1] : vector<64x128xi32> to vector<64xi32>
    %47 = vector.shape_cast %46 : vector<64xi32> to vector<64x1xi32>
    %c0_28 = arith.constant 0 : index
    %c0_29 = arith.constant 0 : index
    %48 = vector.load %arg12[%c0_28, %c0_29] : memref<64x1xf32, #tpu.memory_space<vmem>>, vector<64x1xf32>
    %49 = arith.cmpf ogt, %15, %48 : vector<64x1xf32>
    %c0_30 = arith.constant 0 : index
    %c0_31 = arith.constant 0 : index
    %50 = vector.load %arg12[%c0_30, %c0_31] : memref<64x1xf32, #tpu.memory_space<vmem>>, vector<64x1xf32>
    %51 = arith.select %49, %15, %50 : vector<64x1xi1>, vector<64x1xf32>
    %c0_32 = arith.constant 0 : index
    %c0_33 = arith.constant 0 : index
    %52 = vector.load %arg12[%c0_32, %c0_33] : memref<64x1xf32, #tpu.memory_space<vmem>>, vector<64x1xf32>
    tpu.vector_store %arg12[%c0_32, %c0_33], %51 {strides = array<i32>} : memref<64x1xf32, #tpu.memory_space<vmem>>, vector<64x1xf32>,
    %c0_34 = arith.constant 0 : index
    %c0_35 = arith.constant 0 : index
    %53 = vector.load %arg13[%c0_34, %c0_35] : memref<64x1xi32, #tpu.memory_space<vmem>>, vector<64x1xi32>
    %54 = arith.select %49, %47, %53 : vector<64x1xi1>, vector<64x1xi32>
    %c0_36 = arith.constant 0 : index
    %c0_37 = arith.constant 0 : index
    %55 = vector.load %arg13[%c0_36, %c0_37] : memref<64x1xi32, #tpu.memory_space<vmem>>, vector<64x1xi32>
    tpu.vector_store %arg13[%c0_36, %c0_37], %54 {strides = array<i32>} : memref<64x1xi32, #tpu.memory_space<vmem>>, vector<64x1xi32>,
    %c1_i32 = arith.constant 1 : i32
    %56 = arith.cmpi eq, %arg1, %c1_i32 : i32
    %57 = arith.extui %56 : i1 to i32
    %c0_i32_38 = arith.constant 0 : i32
    %58 = arith.cmpi ne, %57, %c0_i32_38 : i32
    scf.if %58 {
      %c0_39 = arith.constant 0 : index
      %c0_40 = arith.constant 0 : index
      %59 = vector.load %arg9[%c0_39, %c0_40] : memref<64x1xf32, #tpu.memory_space<vmem>>, vector<64x1xf32>
      %c0_41 = arith.constant 0 : index
      %c0_42 = arith.constant 0 : index
      %60 = vector.load %arg10[%c0_41, %c0_42] : memref<64x1xf32, #tpu.memory_space<vmem>>, vector<64x1xf32>
      %61 = math.log %60 : vector<64x1xf32>
      %62 = arith.addf %59, %61 : vector<64x1xf32>
      %c0_43 = arith.constant 0 : index
      %c0_44 = arith.constant 0 : index
      %63 = vector.load %arg11[%c0_43, %c0_44] : memref<64x1xf32, #tpu.memory_space<vmem>>, vector<64x1xf32>
      %64 = arith.subf %62, %63 : vector<64x1xf32>
      %c0_45 = arith.constant 0 : index
      %c0_46 = arith.constant 0 : index
      %65 = vector.load %arg8[%c0_45, %c0_46] : memref<64x1xf32, #tpu.memory_space<vmem>>, vector<64x1xf32>
      tpu.vector_store %arg8[%c0_45, %c0_46], %64 {strides = array<i32>} : memref<64x1xf32, #tpu.memory_space<vmem>>, vector<64x1xf32>,
      %c0_47 = arith.constant 0 : index
      %c0_48 = arith.constant 0 : index
      %66 = vector.load %arg13[%c0_47, %c0_48] : memref<64x1xi32, #tpu.memory_space<vmem>>, vector<64x1xi32>
      %c0_49 = arith.constant 0 : index
      %c0_50 = arith.constant 0 : index
      %67 = vector.load %arg7[%c0_49, %c0_50] : memref<64x1xi32, #tpu.memory_space<vmem>>, vector<64x1xi32>
      tpu.vector_store %arg7[%c0_49, %c0_50], %66 {strides = array<i32>} : memref<64x1xi32, #tpu.memory_space<vmem>>, vector<64x1xi32>,
    } else {
    }
    return
  }
  func.func @transform_0(%arg0: i32, %arg1: i32) -> (i32, i32) {
    %c0_i32 = arith.constant 0 : i32
    %c0_i32_0 = arith.constant 0 : i32
    return %arg0, %c0_i32 : i32, i32
  }
  func.func @transform_1(%arg0: i32, %arg1: i32) -> (i32, i32) {
    %c0_i32 = arith.constant 0 : i32
    %c0_i32_0 = arith.constant 0 : i32
    return %c0_i32, %arg1 : i32, i32
  }
  func.func @transform_2(%arg0: i32, %arg1: i32) -> (i32, i32) {
    %c0_i32 = arith.constant 0 : i32
    %c0_i32_0 = arith.constant 0 : i32
    return %c0_i32, %arg1 : i32, i32
  }
  func.func @transform_3(%arg0: i32, %arg1: i32) -> (i32, i32) {
    %c0_i32 = arith.constant 0 : i32
    %c0_i32_0 = arith.constant 0 : i32
    return %arg0, %c0_i32 : i32, i32
  }
  func.func @transform_4(%arg0: i32, %arg1: i32) -> (i32, i32) {
    %c0_i32 = arith.constant 0 : i32
    return %arg0, %arg1 : i32, i32
  }
  func.func @transform_5(%arg0: i32, %arg1: i32) -> (i32, i32) {
    %c0_i32 = arith.constant 0 : i32
    %c0_i32_0 = arith.constant 0 : i32
    return %arg0, %c0_i32 : i32, i32
  }
  func.func @transform_6(%arg0: i32, %arg1: i32) -> (i32, i32) {
    %c0_i32 = arith.constant 0 : i32
    %c0_i32_0 = arith.constant 0 : i32
    return %arg0, %c0_i32 : i32, i32
  }
}

</mosaic_0001>

<llo_original>
// kernel: rnn_forward.3
$region0: #{rnn_forward.3}
  #allocation0 [shape = 'u32[]', space=smem, size = 0x4, offset = 0x4, fixed_abs, tag = 'smem constant byte address 0x4 - core index']
  #allocation1 [shape = 'u32[144,128]{1,0:T(1,128)}', space=vmem, size = 0x12000, scoped, tag = 'internal scratch']
  #allocation2 [shape = 'f32[64,1]{1,0:T(8,128)}', space=vmem, size = 0x8000, scoped, tag = 'scratch operand']
  #allocation3 [shape = 'f32[64,1]{1,0:T(8,128)}', space=vmem, size = 0x8000, scoped, tag = 'scratch operand']
  #allocation4 [shape = 'f32[64,1]{1,0:T(8,128)}', space=vmem, size = 0x8000, scoped, tag = 'scratch operand']
  #allocation5 [shape = 'f32[64,1]{1,0:T(8,128)}', space=vmem, size = 0x8000, scoped, tag = 'scratch operand']
  #allocation6 [shape = 's32[64,1]{1,0:T(8,128)}', space=vmem, size = 0x8000, scoped, tag = 'scratch operand']
  %s0 = inlined_call_operand.vmem [shape: f32[64,128], index: 0, kind: input, shape index: {}]
  %s1 = inlined_call_operand.vmem [shape: f32[128,256], index: 1, kind: input, shape index: {}]
  %s2 = inlined_call_operand.vmem [shape: f32[1,256], index: 2, kind: input, shape index: {}]
  %s3 = inlined_call_operand.vmem [shape: s32[64,1], index: 3, kind: input, shape index: {}]
  %s4 = inlined_call_operand.vmem [shape: f32[64,256], index: 4, kind: output, shape index: {0}]
  %s5 = inlined_call_operand.vmem [shape: s32[64,1], index: 5, kind: output, shape index: {1}]
  %s6 = inlined_call_operand.vmem [shape: f32[64,1], index: 6, kind: output, shape index: {2}]
  %7 = xla_tuple %s4, %s5, %s6
  %s8 = sld [smem:[#allocation0]]
  $region145: #{rnn_forward.3} parent=0
    _
  %s10 = ssub.s32 1, %s8
  %s11 = scalar_select 0, %s10, %s8
  $region1: #{rnn_forward.3} parent=0
    #allocation7 [shape = 'u8[131072]{0}', space=vmem, size = 0x20000, scoped, tag = 'input window, operand 1']
    #allocation8 [shape = 'u8[65536]{0}', space=vmem, size = 0x10000, scoped, tag = 'output window, operand 0']
    loop: start=0, step=1, limit=4
    $region2: #{rnn_forward.3} parent=1 // loop_pre_header
      _
    $region3: #{rnn_forward.3} parent=1 // loop_header
      %s13 = sphi 0, %s17
      %p14 = scmp.ge.s32.totalorder %s13, 4
      %s20 = sphi 0, %s32
      %s21 = sphi 0, %s28
      %s22 = sphi 0, %s20
      %s23 = sphi 0, %s21
      %s24 = sphi 0, %s22
      %s25 = sphi 0, %s23
      %s35 = sphi 0, %s37
      %s38 = sphi 0, %s35
      %s39 = sphi 0, %s38
      %s55 = sphi 0, %s39
      %s61 = sphi 0, %s63
      %s64 = sphi 0, %s61
      %s65 = sphi 0, %s64
      %s81 = sphi 0, %s65
      %s87 = sphi 0, %s89
      %s90 = sphi 0, %s87
      %s91 = sphi 0, %s90
      %s107 = sphi 0, %s91
      %s113 = sphi 0, %s115
      %s116 = sphi 0, %s113
      %s117 = sphi 0, %s116
      %s133 = sphi 0, %s117
      %s141 = sphi 0, %s143
      %s144 = sphi 0, %s141
      %s145 = sphi 0, %s144
      %s161 = sphi 0, %s145
      %s167 = sphi 0, %s169
      %s170 = sphi 0, %s167
      %s171 = sphi 0, %s170
      %s187 = sphi 0, %s171
      %s193 = sphi 0, %s195
      %s196 = sphi 0, %s193
      %s197 = sphi 0, %s196
      %s213 = sphi 0, %s197
    $region4: #{rnn_forward.3} parent=1 // loop_header_branch
      %16 = sbr.rel (%p14) target = $region8
    $region5: #{rnn_forward.3} parent=1 // loop_body
      %s18 = ssub.s32 %s13, 1
      %s19 = ssub.s32 %s13, 2
      %s26 = sadd.s32 1, %s21
      %p27 = scmp.ge.s32.totalorder %s26, 2
      %s28 = scalar_select %p27, 0, %s26
      %s29 = sadd.s32 1, %s20
      %s30 = scalar_select %p27, %s29, %s20
      %p31 = scmp.ge.s32.totalorder %s30, 1
      %s32 = scalar_select %p31, 0, %s30
      %s33 = ssub.s32 %s20, %s32
      %p34 = scmp.eq.s32.totalorder %s33, 0
      %s36 = sadd.s32 %s35, 1
      %s37 = scalar_select %p34, %s35, %s36
      %p40 = pneg %p34
      %p41 = scmp.eq.s32.totalorder %s13, 1
      %p42 = por %p40, %p41
      %p43 = scmp.ne.s32.totalorder %s35, %s38
      %p44 = scmp.eq.s32.totalorder %s13, 0
      %p45 = por %p43, %p44
      %p46 = scmp.ne.s32.totalorder %s35, %s38
      %p47 = scmp.eq.s32.totalorder %s18, 1
      %p48 = por %p46, %p47
      %p49 = scmp.ne.s32.totalorder %s38, %s39
      %p50 = scmp.eq.s32.totalorder %s18, 0
      %p51 = por %p49, %p50
      %p52 = scmp.ne.s32.totalorder %s38, %s39
      %p53 = scmp.eq.s32.totalorder %s19, 1
      %p54 = por %p52, %p53
      %p56 = scmp.ne.s32.totalorder %s39, %s55
      %p57 = scmp.eq.s32.totalorder %s19, 0
      %p58 = por %p56, %p57
      %s59 = ssub.s32 %s21, %s28
      %p60 = scmp.eq.s32.totalorder %s59, 0
      %s62 = sadd.s32 %s61, 1
      %s63 = scalar_select %p60, %s61, %s62
      %p66 = pneg %p60
      %p67 = scmp.eq.s32.totalorder %s13, 1
      %p68 = por %p66, %p67
      %p69 = scmp.ne.s32.totalorder %s61, %s64
      %p70 = scmp.eq.s32.totalorder %s13, 0
      %p71 = por %p69, %p70
      %p72 = scmp.ne.s32.totalorder %s61, %s64
      %p73 = scmp.eq.s32.totalorder %s18, 1
      %p74 = por %p72, %p73
      %p75 = scmp.ne.s32.totalorder %s64, %s65
      %p76 = scmp.eq.s32.totalorder %s18, 0
      %p77 = por %p75, %p76
      %p78 = scmp.ne.s32.totalorder %s64, %s65
      %p79 = scmp.eq.s32.totalorder %s19, 1
      %p80 = por %p78, %p79
      %p82 = scmp.ne.s32.totalorder %s65, %s81
      %p83 = scmp.eq.s32.totalorder %s19, 0
      %p84 = por %p82, %p83
      %s85 = ssub.s32 %s21, %s28
      %p86 = scmp.eq.s32.totalorder %s85, 0
      %s88 = sadd.s32 %s87, 1
      %s89 = scalar_select %p86, %s87, %s88
      %p92 = pneg %p86
      %p93 = scmp.eq.s32.totalorder %s13, 1
      %p94 = por %p92, %p93
      %p95 = scmp.ne.s32.totalorder %s87, %s90
      %p96 = scmp.eq.s32.totalorder %s13, 0
      %p97 = por %p95, %p96
      %p98 = scmp.ne.s32.totalorder %s87, %s90
      %p99 = scmp.eq.s32.totalorder %s18, 1
      %p100 = por %p98, %p99
      %p101 = scmp.ne.s32.totalorder %s90, %s91
      %p102 = scmp.eq.s32.totalorder %s18, 0
      %p103 = por %p101, %p102
      %p104 = scmp.ne.s32.totalorder %s90, %s91
      %p105 = scmp.eq.s32.totalorder %s19, 1
      %p106 = por %p104, %p105
      %p108 = scmp.ne.s32.totalorder %s91, %s107
      %p109 = scmp.eq.s32.totalorder %s19, 0
      %p110 = por %p108, %p109
      %s111 = ssub.s32 %s20, %s32
      %p112 = scmp.eq.s32.totalorder %s111, 0
      %s114 = sadd.s32 %s113, 1
      %s115 = scalar_select %p112, %s113, %s114
      %p118 = pneg %p112
      %p119 = scmp.eq.s32.totalorder %s13, 1
      %p120 = por %p118, %p119
      %p121 = scmp.ne.s32.totalorder %s113, %s116
      %p122 = scmp.eq.s32.totalorder %s13, 0
      %p123 = por %p121, %p122
      %p124 = scmp.ne.s32.totalorder %s113, %s116
      %p125 = scmp.eq.s32.totalorder %s18, 1
      %p126 = por %p124, %p125
      %p127 = scmp.ne.s32.totalorder %s116, %s117
      %p128 = scmp.eq.s32.totalorder %s18, 0
      %p129 = por %p127, %p128
      %p130 = scmp.ne.s32.totalorder %s116, %s117
      %p131 = scmp.eq.s32.totalorder %s19, 1
      %p132 = por %p130, %p131
      %p134 = scmp.ne.s32.totalorder %s117, %s133
      %p135 = scmp.eq.s32.totalorder %s19, 0
      %p136 = por %p134, %p135
      %s137 = ssub.s32 %s20, %s32
      %s138 = ssub.s32 %s21, %s28
      %s139 = sor.u32 %s137, %s138
      %p140 = scmp.eq.s32.totalorder %s139, 0
      %s142 = sadd.s32 %s141, 1
      %s143 = scalar_select %p140, %s141, %s142
      %p146 = pneg %p140
      %p147 = scmp.eq.s32.totalorder %s13, 1
      %p148 = por %p146, %p147
      %p149 = scmp.ne.s32.totalorder %s141, %s144
      %p150 = scmp.eq.s32.totalorder %s13, 0
      %p151 = por %p149, %p150
      %p152 = scmp.ne.s32.totalorder %s141, %s144
      %p153 = scmp.eq.s32.totalorder %s18, 1
      %p154 = por %p152, %p153
      %p155 = scmp.ne.s32.totalorder %s144, %s145
      %p156 = scmp.eq.s32.totalorder %s18, 0
      %p157 = por %p155, %p156
      %p158 = scmp.ne.s32.totalorder %s144, %s145
      %p159 = scmp.eq.s32.totalorder %s19, 1
      %p160 = por %p158, %p159
      %p162 = scmp.ne.s32.totalorder %s145, %s161
      %p163 = scmp.eq.s32.totalorder %s19, 0
      %p164 = por %p162, %p163
      %s165 = ssub.s32 %s20, %s32
      %p166 = scmp.eq.s32.totalorder %s165, 0
      %s168 = sadd.s32 %s167, 1
      %s169 = scalar_select %p166, %s167, %s168
      %p172 = pneg %p166
      %p173 = scmp.eq.s32.totalorder %s13, 1
      %p174 = por %p172, %p173
      %p175 = scmp.ne.s32.totalorder %s167, %s170
      %p176 = scmp.eq.s32.totalorder %s13, 0
      %p177 = por %p175, %p176
      %p178 = scmp.ne.s32.totalorder %s167, %s170
      %p179 = scmp.eq.s32.totalorder %s18, 1
      %p180 = por %p178, %p179
      %p181 = scmp.ne.s32.totalorder %s170, %s171
      %p182 = scmp.eq.s32.totalorder %s18, 0
      %p183 = por %p181, %p182
      %p184 = scmp.ne.s32.totalorder %s170, %s171
      %p185 = scmp.eq.s32.totalorder %s19, 1
      %p186 = por %p184, %p185
      %p188 = scmp.ne.s32.totalorder %s171, %s187
      %p189 = scmp.eq.s32.totalorder %s19, 0
      %p190 = por %p188, %p189
      %s191 = ssub.s32 %s20, %s32
      %p192 = scmp.eq.s32.totalorder %s191, 0
      %s194 = sadd.s32 %s193, 1
      %s195 = scalar_select %p192, %s193, %s194
      %p198 = pneg %p192
      %p199 = scmp.eq.s32.totalorder %s13, 1
      %p200 = por %p198, %p199
      %p201 = scmp.ne.s32.totalorder %s193, %s196
      %p202 = scmp.eq.s32.totalorder %s13, 0
      %p203 = por %p201, %p202
      %p204 = scmp.ne.s32.totalorder %s193, %s196
      %p205 = scmp.eq.s32.totalorder %s18, 1
      %p206 = por %p204, %p205
      %p207 = scmp.ne.s32.totalorder %s196, %s197
      %p208 = scmp.eq.s32.totalorder %s18, 0
      %p209 = por %p207, %p208
      %p210 = scmp.ne.s32.totalorder %s196, %s197
      %p211 = scmp.eq.s32.totalorder %s19, 1
      %p212 = por %p210, %p211
      %p214 = scmp.ne.s32.totalorder %s197, %s213
      %p215 = scmp.eq.s32.totalorder %s19, 0
      %p216 = por %p214, %p215
      %p217 = scmp.le.s32.totalorder 1, %s13
      %p218 = scmp.lt.s32.totalorder %s13, 3
      %p219 = pnand %p217, %p218
      %p220 = pneg %p219
      // Predicated region
      $region9: #{rnn_forward.3} parent=5 // pred_check
        _
      $region10: #{rnn_forward.3} parent=5 // pred_check_branch
        %222 = sbr.rel (%p219) target = $region12
      $region11: #{rnn_forward.3} parent=5 // pred_region
        %s223 = ssub.s32 %s13, 1
        // Predicated region
        $region13: #{rnn_forward.3} parent=11 // pred_check
          %p224 = pneg %p51
        $region14: #{rnn_forward.3} parent=11 // pred_check_branch
          %226 = sbr.rel (%p224) target = $region16
        $region15: #{rnn_forward.3} parent=11 // pred_region
          %s227 = smul.u32 8, %s22
          %p228 = scmp.lt.s32.totalorder %s227, 7
          %s229 = scalar_select %p228, %s227, 7
          %s230 = smul.addr %s229, 8
          %s231 = scalar_lea.vmem %s0, %s230
          %s232 = smul.u32 8, %s22
        $region16: #{rnn_forward.3} parent=11 // pred_fallthru
          _
        // Predicated region
        $region17: #{rnn_forward.3} parent=11 // pred_check
          %p233 = pneg %p129
        $region18: #{rnn_forward.3} parent=11 // pred_check_branch
          %235 = sbr.rel (%p233) target = $region20
        $region19: #{rnn_forward.3} parent=11 // pred_region
          %s236 = smul.u32 8, %s22
          %p237 = scmp.lt.s32.totalorder %s236, 7
          %s238 = scalar_select %p237, %s236, 7
          %s239 = smul.addr %s238, 8
          %s240 = scalar_lea.vmem %s3, %s239
          %s241 = smul.u32 8, %s22
        $region20: #{rnn_forward.3} parent=11 // pred_fallthru
          _
      $region12: #{rnn_forward.3} parent=5 // pred_fallthru
        _
      %p242 = scmp.lt.s32.totalorder %s13, 2
      // Predicated region
      $region21: #{rnn_forward.3} parent=5 // pred_check
        %p243 = pneg %p242
      $region22: #{rnn_forward.3} parent=5 // pred_check_branch
        %245 = sbr.rel (%p243) target = $region24
      $region23: #{rnn_forward.3} parent=5 // pred_region
        // Predicated region
        $region25: #{rnn_forward.3} parent=23 // pred_check
          %p246 = pneg %p71
        $region26: #{rnn_forward.3} parent=23 // pred_check_branch
          %248 = sbr.rel (%p246) target = $region28
        $region27: #{rnn_forward.3} parent=23 // pred_region
          %s249 = sand.u32 %s61, 1
          %s250 = sand.u32 %s61, 1
          %s251 = smul.addr %s250, 128
          %s252 = scalar_lea.vmem [#allocation7], %s251
          %s253 = smul.addr %s21, 8
          %s254 = scalar_lea.vmem %s1, %s253
          // Predicated region
          $region29: #{rnn_forward.3} parent=27 // pred_check
            _
          $region30: #{rnn_forward.3} parent=27 // pred_check_branch
            %256 = sbr.rel (0) target = $region32
          $region31: #{rnn_forward.3} parent=27 // pred_region
            // Predicated region
            $region33: #{rnn_forward.3} parent=31 // pred_check
              _
            $region34: #{rnn_forward.3} parent=31 // pred_check_branch
              %258 = sbr.rel (0) target = $region36
            $region35: #{rnn_forward.3} parent=31 // pred_region
              // Predicated region
              $region48: #{rnn_forward.3} parent=35 // pred_check
                _
              $region49: #{rnn_forward.3} parent=35 // pred_check_branch
                %304 = sbr.rel (0) target = $region51
              $region50: #{rnn_forward.3} parent=35 // pred_region
                loop: start=0, step=1, limit=1
                $region52: #{rnn_forward.3} parent=50 // loop_pre_header
                  _
                $region53: #{rnn_forward.3} parent=50 // loop_header
                  %s306 = sphi 0, %s310
                  %p307 = scmp.ge.s32.totalorder %s306, 1
                  %s311 = sphi %s254, %s254
                  %s312 = sphi %s252, %s252
                $region54: #{rnn_forward.3} parent=50 // loop_header_branch
                  %309 = sbr.rel (%p307) target = $region58
                $region55: #{rnn_forward.3} parent=50 // loop_body
                  %v313 = vld [vmem:[%s311] sm:$0xff]
                  %314 = vst [vmem:[%s312] sm:$0xff] %v313
                  %v315 = vld [vmem:[%s311 + $0x10] sm:$0xff]
                  %316 = vst [vmem:[%s312 + $0x8] sm:$0xff] %v315
                  %v317 = vld [vmem:[%s311 + $0x20] sm:$0xff]
                  %318 = vst [vmem:[%s312 + $0x10] sm:$0xff] %v317
                  %v319 = vld [vmem:[%s311 + $0x30] sm:$0xff]
                  %320 = vst [vmem:[%s312 + $0x18] sm:$0xff] %v319
                  %v321 = vld [vmem:[%s311 + $0x40] sm:$0xff]
                  %322 = vst [vmem:[%s312 + $0x20] sm:$0xff] %v321
                  %v323 = vld [vmem:[%s311 + $0x50] sm:$0xff]
                  %324 = vst [vmem:[%s312 + $0x28] sm:$0xff] %v323
                  %v325 = vld [vmem:[%s311 + $0x60] sm:$0xff]
                  %326 = vst [vmem:[%s312 + $0x30] sm:$0xff] %v325
                  %v327 = vld [vmem:[%s311 + $0x70] sm:$0xff]
                  %328 = vst [vmem:[%s312 + $0x38] sm:$0xff] %v327
                  %v329 = vld [vmem:[%s311 + $0x80] sm:$0xff]
                  %330 = vst [vmem:[%s312 + $0x40] sm:$0xff] %v329
                  %v331 = vld [vmem:[%s311 + $0x90] sm:$0xff]
                  %332 = vst [vmem:[%s312 + $0x48] sm:$0xff] %v331
                  %v333 = vld [vmem:[%s311 + $0xa0] sm:$0xff]
                  %334 = vst [vmem:[%s312 + $0x50] sm:$0xff] %v333
                  %v335 = vld [vmem:[%s311 + $0xb0] sm:$0xff]
                  %336 = vst [vmem:[%s312 + $0x58] sm:$0xff] %v335
                  %v337 = vld [vmem:[%s311 + $0xc0] sm:$0xff]
                  %338 = vst [vmem:[%s312 + $0x60] sm:$0xff] %v337
                  %v339 = vld [vmem:[%s311 + $0xd0] sm:$0xff]
                  %340 = vst [vmem:[%s312 + $0x68] sm:$0xff] %v339
                  %v341 = vld [vmem:[%s311 + $0xe0] sm:$0xff]
                  %342 = vst [vmem:[%s312 + $0x70] sm:$0xff] %v341
                  %v343 = vld [vmem:[%s311 + $0xf0] sm:$0xff]
                  %344 = vst [vmem:[%s312 + $0x78] sm:$0xff] %v343
                $region56: #{rnn_forward.3} parent=50 // loop_footer
                  %s310 = sadd.s32 1, %s306
                $region57: #{rnn_forward.3} parent=50 // loop_footer_branch
                  %305 = sbr.rel target = $region53
                $region58: #{rnn_forward.3} parent=50 // loop_exit
                  _
              $region51: #{rnn_forward.3} parent=35 // pred_fallthru
                _
              // Predicated region
              $region59: #{rnn_forward.3} parent=35 // pred_check
                _
              $region60: #{rnn_forward.3} parent=35 // pred_check_branch
                %346 = sbr.rel target = $region62
              $region61: #{rnn_forward.3} parent=35 // pred_region
                _
              $region62: #{rnn_forward.3} parent=35 // pred_fallthru
                _
            $region36: #{rnn_forward.3} parent=31 // pred_fallthru
              _
            // Predicated region
            $region37: #{rnn_forward.3} parent=31 // pred_check
              _
            $region38: #{rnn_forward.3} parent=31 // pred_check_branch
              %260 = sbr.rel target = $region40
            $region39: #{rnn_forward.3} parent=31 // pred_region
              %s262 = ssub.s32 256, 1
              loop: start=0, step=1, limit=1
              $region41: #{rnn_forward.3} parent=39 // loop_pre_header
                _
              $region42: #{rnn_forward.3} parent=39 // loop_header
                %s264 = sphi 0, %s268
                %p265 = scmp.ge.s32.totalorder %s264, 1
                %s269 = sphi %s254, %s254
                %s270 = sphi %s252, %s252
              $region43: #{rnn_forward.3} parent=39 // loop_header_branch
                %267 = sbr.rel (%p265) target = $region47
              $region44: #{rnn_forward.3} parent=39 // loop_body
                %v271 = vld [vmem:[%s269] sm:%s262]
                %272 = vst [vmem:[%s270] sm:%s262] %v271
                %v273 = vld [vmem:[%s269 + $0x10] sm:%s262]
                %274 = vst [vmem:[%s270 + $0x8] sm:%s262] %v273
                %v275 = vld [vmem:[%s269 + $0x20] sm:%s262]
                %276 = vst [vmem:[%s270 + $0x10] sm:%s262] %v275
                %v277 = vld [vmem:[%s269 + $0x30] sm:%s262]
                %278 = vst [vmem:[%s270 + $0x18] sm:%s262] %v277
                %v279 = vld [vmem:[%s269 + $0x40] sm:%s262]
                %280 = vst [vmem:[%s270 + $0x20] sm:%s262] %v279
                %v281 = vld [vmem:[%s269 + $0x50] sm:%s262]
                %282 = vst [vmem:[%s270 + $0x28] sm:%s262] %v281
                %v283 = vld [vmem:[%s269 + $0x60] sm:%s262]
                %284 = vst [vmem:[%s270 + $0x30] sm:%s262] %v283
                %v285 = vld [vmem:[%s269 + $0x70] sm:%s262]
                %286 = vst [vmem:[%s270 + $0x38] sm:%s262] %v285
                %v287 = vld [vmem:[%s269 + $0x80] sm:%s262]
                %288 = vst [vmem:[%s270 + $0x40] sm:%s262] %v287
                %v289 = vld [vmem:[%s269 + $0x90] sm:%s262]
                %290 = vst [vmem:[%s270 + $0x48] sm:%s262] %v289
                %v291 = vld [vmem:[%s269 + $0xa0] sm:%s262]
                %292 = vst [vmem:[%s270 + $0x50] sm:%s262] %v291
                %v293 = vld [vmem:[%s269 + $0xb0] sm:%s262]
                %294 = vst [vmem:[%s270 + $0x58] sm:%s262] %v293
                %v295 = vld [vmem:[%s269 + $0xc0] sm:%s262]
                %296 = vst [vmem:[%s270 + $0x60] sm:%s262] %v295
                %v297 = vld [vmem:[%s269 + $0xd0] sm:%s262]
                %298 = vst [vmem:[%s270 + $0x68] sm:%s262] %v297
                %v299 = vld [vmem:[%s269 + $0xe0] sm:%s262]
                %300 = vst [vmem:[%s270 + $0x70] sm:%s262] %v299
                %v301 = vld [vmem:[%s269 + $0xf0] sm:%s262]
                %302 = vst [vmem:[%s270 + $0x78] sm:%s262] %v301
              $region45: #{rnn_forward.3} parent=39 // loop_footer
                %s268 = sadd.s32 1, %s264
              $region46: #{rnn_forward.3} parent=39 // loop_footer_branch
                %263 = sbr.rel target = $region42
              $region47: #{rnn_forward.3} parent=39 // loop_exit
                _
            $region40: #{rnn_forward.3} parent=31 // pred_fallthru
              _
          $region32: #{rnn_forward.3} parent=27 // pred_fallthru
            _
          %347 = vnop
        $region28: #{rnn_forward.3} parent=23 // pred_fallthru
          _
        // Predicated region
        $region63: #{rnn_forward.3} parent=23 // pred_check
          %p348 = pneg %p97
        $region64: #{rnn_forward.3} parent=23 // pred_check_branch
          %350 = sbr.rel (%p348) target = $region66
        $region65: #{rnn_forward.3} parent=23 // pred_region
          %p351 = scmp.lt.s32.totalorder %s21, 1
          %s352 = scalar_select %p351, %s21, 1
          %s353 = scalar_lea.vmem %s2, %s352
        $region66: #{rnn_forward.3} parent=23 // pred_fallthru
          _
      $region24: #{rnn_forward.3} parent=5 // pred_fallthru
        _
      %p354 = scmp.le.s32.totalorder 1, %s13
      %p355 = scmp.lt.s32.totalorder %s13, 3
      %p356 = pnand %p354, %p355
      %p357 = pneg %p356
      // Predicated region
      $region67: #{rnn_forward.3} parent=5 // pred_check
        _
      $region68: #{rnn_forward.3} parent=5 // pred_check_branch
        %359 = sbr.rel (%p356) target = $region70
      $region69: #{rnn_forward.3} parent=5 // pred_region
        %s360 = ssub.s32 %s13, 1
        %s361 = sand.u32 %s64, 1
        %s362 = sand.u32 %s64, 1
        %s363 = smul.addr %s362, 128
        %s364 = scalar_lea.vmem [#allocation7], %s363
        // Predicated region
        $region71: #{rnn_forward.3} parent=69 // pred_check
          %p365 = pneg %p77
        $region72: #{rnn_forward.3} parent=69 // pred_check_branch
          %367 = sbr.rel (%p365) target = $region74
        $region73: #{rnn_forward.3} parent=69 // pred_region
          _
        $region74: #{rnn_forward.3} parent=69 // pred_fallthru
          _
        %s368 = smul.u32 8, %s22
        %p369 = scmp.lt.s32.totalorder %s368, 7
        %s370 = scalar_select %p369, %s368, 7
        %s371 = smul.addr %s370, 8
        %s372 = scalar_lea.vmem %s0, %s371
        %p373 = pneg %p51
        %p374 = pneg %p48
        %s375 = sand.u32 %s64, 1
        %s376 = sand.u32 %s64, 1
        %s377 = smul.addr %s376, 128
        %s378 = scalar_lea.vmem [#allocation7], %s377
        %p379 = pneg %p77
        %p380 = pneg %p74
        %p381 = scmp.lt.s32.totalorder %s23, 1
        %s382 = scalar_select %p381, %s23, 1
        %s383 = scalar_lea.vmem %s2, %s382
        %p384 = pneg %p103
        %p385 = pneg %p100
        %s386 = smul.u32 8, %s22
        %p387 = scmp.lt.s32.totalorder %s386, 7
        %s388 = scalar_select %p387, %s386, 7
        %s389 = smul.addr %s388, 8
        %s390 = scalar_lea.vmem %s3, %s389
        %p391 = pneg %p129
        %p392 = pneg %p126
        %p393 = pneg %p157
        %p394 = pneg %p154
        %s395 = sand.u32 %s144, 1
        %s396 = sand.u32 %s144, 1
        %s397 = smul.addr %s396, 64
        %s398 = scalar_lea.vmem [#allocation8], %s397
        %p399 = pneg %p183
        %p400 = pneg %p180
        %s401 = smul.u32 8, %s22
        %p402 = scmp.lt.s32.totalorder %s401, 7
        %s403 = scalar_select %p402, %s401, 7
        %s404 = smul.addr %s403, 8
        %s405 = scalar_lea.vmem %s5, %s404
        %p406 = pneg %p209
        %p407 = pneg %p206
        %s408 = smul.u32 8, %s22
        %p409 = scmp.lt.s32.totalorder %s408, 7
        %s410 = scalar_select %p409, %s408, 7
        %s411 = smul.addr %s410, 8
        %s412 = scalar_lea.vmem %s6, %s411
        %s413 = smul.u32 8, %s22
        %p414 = scmp.lt.s32.totalorder %s413, 7
        %s415 = scalar_select %p414, %s413, 7
        %s416 = smul.addr %s415, 8
        %s417 = scalar_lea.vmem %s0, %s416
        %s418 = smul.u32 8, %s22
        %p419 = scmp.lt.s32.totalorder %s23, 1
        %s420 = scalar_select %p419, %s23, 1
        %s421 = scalar_lea.vmem %s2, %s420
        %s422 = smul.u32 8, %s22
        %p423 = scmp.lt.s32.totalorder %s422, 7
        %s424 = scalar_select %p423, %s422, 7
        %s425 = smul.addr %s424, 8
        %s426 = scalar_lea.vmem %s3, %s425
        %s427 = smul.u32 8, %s22
        %s428 = smul.u32 8, %s22
        %s429 = smul.u32 8, %s22
        %p430 = scmp.lt.s32.totalorder %s429, 7
        %s431 = scalar_select %p430, %s429, 7
        %s432 = smul.addr %s431, 8
        %s433 = scalar_lea.vmem %s5, %s432
        %s434 = smul.u32 8, %s22
        %s435 = smul.u32 8, %s22
        %p436 = scmp.lt.s32.totalorder %s435, 7
        %s437 = scalar_select %p436, %s435, 7
        %s438 = smul.addr %s437, 8
        %s439 = scalar_lea.vmem %s6, %s438
        %s440 = smul.u32 8, %s22
        %p441 = scmp.eq.s32.totalorder %s23, 0
        // Predicated region
        $region75: #{rnn_forward.3} parent=69 // pred_check
          %p442 = pneg %p441
        $region76: #{rnn_forward.3} parent=69 // pred_check_branch
          %444 = sbr.rel (%p442) target = $region78
        $region77: #{rnn_forward.3} parent=69 // pred_region
          %vm445 = vcmask 7168
          %446 = vst.msk [vmem:[#allocation2] sm:$0xff] %vm445, -inf
          %447 = vst.msk [vmem:[#allocation2 + $0x8] sm:$0xff] %vm445, -inf
          %448 = vst.msk [vmem:[#allocation2 + $0x10] sm:$0xff] %vm445, -inf
          %449 = vst.msk [vmem:[#allocation2 + $0x18] sm:$0xff] %vm445, -inf
          %450 = vst.msk [vmem:[#allocation2 + $0x20] sm:$0xff] %vm445, -inf
          %451 = vst.msk [vmem:[#allocation2 + $0x28] sm:$0xff] %vm445, -inf
          %452 = vst.msk [vmem:[#allocation2 + $0x30] sm:$0xff] %vm445, -inf
          %453 = vst.msk [vmem:[#allocation2 + $0x38] sm:$0xff] %vm445, -inf
          %454 = vst.msk [vmem:[#allocation3] sm:$0xff] %vm445, 0.0
          %455 = vst.msk [vmem:[#allocation3 + $0x8] sm:$0xff] %vm445, 0.0
          %456 = vst.msk [vmem:[#allocation3 + $0x10] sm:$0xff] %vm445, 0.0
          %457 = vst.msk [vmem:[#allocation3 + $0x18] sm:$0xff] %vm445, 0.0
          %458 = vst.msk [vmem:[#allocation3 + $0x20] sm:$0xff] %vm445, 0.0
          %459 = vst.msk [vmem:[#allocation3 + $0x28] sm:$0xff] %vm445, 0.0
          %460 = vst.msk [vmem:[#allocation3 + $0x30] sm:$0xff] %vm445, 0.0
          %461 = vst.msk [vmem:[#allocation3 + $0x38] sm:$0xff] %vm445, 0.0
          %462 = vst.msk [vmem:[#allocation4] sm:$0xff] %vm445, 0.0
          %463 = vst.msk [vmem:[#allocation4 + $0x8] sm:$0xff] %vm445, 0.0
          %464 = vst.msk [vmem:[#allocation4 + $0x10] sm:$0xff] %vm445, 0.0
          %465 = vst.msk [vmem:[#allocation4 + $0x18] sm:$0xff] %vm445, 0.0
          %466 = vst.msk [vmem:[#allocation4 + $0x20] sm:$0xff] %vm445, 0.0
          %467 = vst.msk [vmem:[#allocation4 + $0x28] sm:$0xff] %vm445, 0.0
          %468 = vst.msk [vmem:[#allocation4 + $0x30] sm:$0xff] %vm445, 0.0
          %469 = vst.msk [vmem:[#allocation4 + $0x38] sm:$0xff] %vm445, 0.0
          %470 = vst.msk [vmem:[#allocation5] sm:$0xff] %vm445, -inf
          %471 = vst.msk [vmem:[#allocation5 + $0x8] sm:$0xff] %vm445, -inf
          %472 = vst.msk [vmem:[#allocation5 + $0x10] sm:$0xff] %vm445, -inf
          %473 = vst.msk [vmem:[#allocation5 + $0x18] sm:$0xff] %vm445, -inf
          %474 = vst.msk [vmem:[#allocation5 + $0x20] sm:$0xff] %vm445, -inf
          %475 = vst.msk [vmem:[#allocation5 + $0x28] sm:$0xff] %vm445, -inf
          %476 = vst.msk [vmem:[#allocation5 + $0x30] sm:$0xff] %vm445, -inf
          %477 = vst.msk [vmem:[#allocation5 + $0x38] sm:$0xff] %vm445, -inf
          %478 = vst.msk [vmem:[#allocation6] sm:$0xff] %vm445, 0
          %479 = vst.msk [vmem:[#allocation6 + $0x8] sm:$0xff] %vm445, 0
          %480 = vst.msk [vmem:[#allocation6 + $0x10] sm:$0xff] %vm445, 0
          %481 = vst.msk [vmem:[#allocation6 + $0x18] sm:$0xff] %vm445, 0
          %482 = vst.msk [vmem:[#allocation6 + $0x20] sm:$0xff] %vm445, 0
          %483 = vst.msk [vmem:[#allocation6 + $0x28] sm:$0xff] %vm445, 0
          %484 = vst.msk [vmem:[#allocation6 + $0x30] sm:$0xff] %vm445, 0
          %485 = vst.msk [vmem:[#allocation6 + $0x38] sm:$0xff] %vm445, 0
        $region78: #{rnn_forward.3} parent=69 // pred_fallthru
          _
        %v486 = vld [vmem:[%s417] sm:$0xff]
        %v487 = vld [vmem:[%s417 + $0x8] sm:$0xff]
        %v488 = vld [vmem:[%s417 + $0x10] sm:$0xff]
        %v489 = vld [vmem:[%s417 + $0x18] sm:$0xff]
        %v490 = vld [vmem:[%s417 + $0x20] sm:$0xff]
        %v491 = vld [vmem:[%s417 + $0x28] sm:$0xff]
        %v492 = vld [vmem:[%s417 + $0x30] sm:$0xff]
        %v493 = vld [vmem:[%s417 + $0x38] sm:$0xff]
        %v494 = vld [vmem:[%s364] sm:$0xff]
        %v495 = vld [vmem:[%s364 + $0x8] sm:$0xff]
        %v496 = vld [vmem:[%s364 + $0x10] sm:$0xff]
        %v497 = vld [vmem:[%s364 + $0x18] sm:$0xff]
        %v498 = vld [vmem:[%s364 + $0x20] sm:$0xff]
        %v499 = vld [vmem:[%s364 + $0x28] sm:$0xff]
        %v500 = vld [vmem:[%s364 + $0x30] sm:$0xff]
        %v501 = vld [vmem:[%s364 + $0x38] sm:$0xff]
        %v502 = vld [vmem:[%s364 + $0x40] sm:$0xff]
        %v503 = vld [vmem:[%s364 + $0x48] sm:$0xff]
        %v504 = vld [vmem:[%s364 + $0x50] sm:$0xff]
        %v505 = vld [vmem:[%s364 + $0x58] sm:$0xff]
        %v506 = vld [vmem:[%s364 + $0x60] sm:$0xff]
        %v507 = vld [vmem:[%s364 + $0x68] sm:$0xff]
        %v508 = vld [vmem:[%s364 + $0x70] sm:$0xff]
        %v509 = vld [vmem:[%s364 + $0x78] sm:$0xff]
        %v510 = vld [vmem:[%s421] sm:$0x1]
        %v512 = vlaneseq
        %v513 = vshrl.u32 %v512, 7
        %v514 = vsub.s32 0, %v513
        %v515 = vrot.slane %v510, %v514
        %517 = vmatprep.subr.mxu0 0.0
        %518 = vmatpush1.msra.mxu0 %v509
        %519 = vmatprep.subr.mxu0 0.0
        %520 = vmatpush1.msra.mxu0 %v508
        %521 = vmatprep.subr.mxu0 0.0
        %522 = vmatpush1.msra.mxu0 %v507
        %523 = vmatprep.subr.mxu0 0.0
        %524 = vmatpush1.msra.mxu0 %v506
        %525 = vmatprep.subr.mxu0 0.0
        %526 = vmatpush1.msra.mxu0 %v505
        %527 = vmatprep.subr.mxu0 0.0
        %528 = vmatpush1.msra.mxu0 %v504
        %529 = vmatprep.subr.mxu0 0.0
        %530 = vmatpush1.msra.mxu0 %v503
        %531 = vmatprep.subr.mxu0 0.0
        %532 = vmatpush1.msra.mxu0 %v502
        %533 = vmatprep.subr.mxu0 0.0
        %534 = vmatpush1.msra.mxu0 %v501
        %535 = vmatprep.subr.mxu0 0.0
        %536 = vmatpush1.msra.mxu0 %v500
        %537 = vmatprep.subr.mxu0 0.0
        %538 = vmatpush1.msra.mxu0 %v499
        %539 = vmatprep.subr.mxu0 0.0
        %540 = vmatpush1.msra.mxu0 %v498
        %541 = vmatprep.subr.mxu0 0.0
        %542 = vmatpush1.msra.mxu0 %v497
        %543 = vmatprep.subr.mxu0 0.0
        %544 = vmatpush1.msra.mxu0 %v496
        %545 = vmatprep.subr.mxu0 0.0
        %546 = vmatpush1.msra.mxu0 %v495
        %547 = vmatprep.subr.mxu0 0.0
        %548 = vmatpush1.msra.mxu0 %v494
        %549 = vmatprep.subr.mxu0 0.0
        %550 = vmatpush2.msra.mxu0 0.0
        %551 = vmatprep.subr.mxu0 0.0
        %552 = vmatpush2.msra.mxu0 0.0
        %553 = vmatprep.subr.mxu0 0.0
        %554 = vmatpush2.msra.mxu0 0.0
        %555 = vmatprep.subr.mxu0 0.0
        %556 = vmatpush2.msra.mxu0 0.0
        %557 = vmatprep.subr.mxu0 0.0
        %558 = vmatpush2.msra.mxu0 0.0
        %559 = vmatprep.subr.mxu0 0.0
        %560 = vmatpush2.msra.mxu0 0.0
        %561 = vmatprep.subr.mxu0 0.0
        %562 = vmatpush2.msra.mxu0 0.0
        %563 = vmatprep.subr.mxu0 0.0
        %564 = vmatpush2.msra.mxu0 0.0
        %565 = vmatprep.subr.mxu0 0.0
        %566 = vmatpush2.msra.mxu0 0.0
        %567 = vmatprep.subr.mxu0 0.0
        %568 = vmatpush2.msra.mxu0 0.0
        %569 = vmatprep.subr.mxu0 0.0
        %570 = vmatpush2.msra.mxu0 0.0
        %571 = vmatprep.subr.mxu0 0.0
        %572 = vmatpush2.msra.mxu0 0.0
        %573 = vmatprep.subr.mxu0 0.0
        %574 = vmatpush2.msra.mxu0 0.0
        %575 = vmatprep.subr.mxu0 0.0
        %576 = vmatpush2.msra.mxu0 0.0
        %577 = vmatprep.subr.mxu0 0.0
        %578 = vmatpush2.msra.mxu0 0.0
        %579 = vmatprep.subr.mxu0 0.0
        %580 = vmatpush2.msra.mxu0 0.0
        %581 = vmatprep.mubr.f32.mxu0 0.0
        %582 = vmatmul.mubr.f32.gmra.mxu0 %v486
        %v583 = vpop.f32.mrf.mxu0
        %v584 = vadd.f32 %v515, %v583
        %v585 = vpop.f32.mrf.mxu0
        %586 = vmatprep.mubr.f32.mxu0 0.0
        %587 = vmatmul.mubr.f32.gmra.mxu0 %v487
        %v588 = vpop.f32.mrf.mxu0
        %v589 = vadd.f32 %v515, %v588
        %v590 = vpop.f32.mrf.mxu0
        %591 = vmatprep.mubr.f32.mxu0 0.0
        %592 = vmatmul.mubr.f32.gmra.mxu0 %v488
        %v593 = vpop.f32.mrf.mxu0
        %v594 = vadd.f32 %v515, %v593
        %v595 = vpop.f32.mrf.mxu0
        %596 = vmatprep.mubr.f32.mxu0 0.0
        %597 = vmatmul.mubr.f32.gmra.mxu0 %v489
        %v598 = vpop.f32.mrf.mxu0
        %v599 = vadd.f32 %v515, %v598
        %v600 = vpop.f32.mrf.mxu0
        %601 = vmatprep.mubr.f32.mxu0 0.0
        %602 = vmatmul.mubr.f32.gmra.mxu0 %v490
        %v603 = vpop.f32.mrf.mxu0
        %v604 = vadd.f32 %v515, %v603
        %v605 = vpop.f32.mrf.mxu0
        %606 = vmatprep.mubr.f32.mxu0 0.0
        %607 = vmatmul.mubr.f32.gmra.mxu0 %v491
        %v608 = vpop.f32.mrf.mxu0
        %v609 = vadd.f32 %v515, %v608
        %v610 = vpop.f32.mrf.mxu0
        %611 = vmatprep.mubr.f32.mxu0 0.0
        %612 = vmatmul.mubr.f32.gmra.mxu0 %v492
        %v613 = vpop.f32.mrf.mxu0
        %v614 = vadd.f32 %v515, %v613
        %v615 = vpop.f32.mrf.mxu0
        %616 = vmatprep.mubr.f32.mxu0 0.0
        %617 = vmatmul.mubr.f32.gmra.mxu0 %v493
        %v618 = vpop.f32.mrf.mxu0
        %v619 = vadd.f32 %v515, %v618
        %v620 = vpop.f32.mrf.mxu0
        %621 = vdwg.mxu0
        %622 = vst [vmem:[%s398] sm:$0xff] %v584
        %623 = vst [vmem:[%s398 + $0x8] sm:$0xff] %v589
        %624 = vst [vmem:[%s398 + $0x10] sm:$0xff] %v594
        %625 = vst [vmem:[%s398 + $0x18] sm:$0xff] %v599
        %626 = vst [vmem:[%s398 + $0x20] sm:$0xff] %v604
        %627 = vst [vmem:[%s398 + $0x28] sm:$0xff] %v609
        %628 = vst [vmem:[%s398 + $0x30] sm:$0xff] %v614
        %629 = vst [vmem:[%s398 + $0x38] sm:$0xff] %v619
        %v630 = vlaneseq
        %v631 = vand.u32 %v630, 127
        %s632 = smul.u32 %s23, 128
        %v633 = vstv %s632
        %v634 = vadd.s32 %v631, %v633
        %635 = vmax.xlane.f32.xlu0 %v584
        %v636 = vpop.xlane.xlu0 %635
        %637 = vmax.xlane.f32.xlu0 %v589
        %v638 = vpop.xlane.xlu0 %637
        %639 = vmax.xlane.f32.xlu0 %v594
        %v640 = vpop.xlane.xlu0 %639
        %641 = vmax.xlane.f32.xlu0 %v599
        %v642 = vpop.xlane.xlu0 %641
        %643 = vmax.xlane.f32.xlu0 %v604
        %v644 = vpop.xlane.xlu0 %643
        %645 = vmax.xlane.f32.xlu0 %v609
        %v646 = vpop.xlane.xlu0 %645
        %647 = vmax.xlane.f32.xlu0 %v614
        %v648 = vpop.xlane.xlu0 %647
        %649 = vmax.xlane.f32.xlu0 %v619
        %v650 = vpop.xlane.xlu0 %649
        %v651 = vld [vmem:[#allocation2] sm:$0xff]
        %v652 = vld [vmem:[#allocation2 + $0x8] sm:$0xff]
        %v653 = vld [vmem:[#allocation2 + $0x10] sm:$0xff]
        %v654 = vld [vmem:[#allocation2 + $0x18] sm:$0xff]
        %v655 = vld [vmem:[#allocation2 + $0x20] sm:$0xff]
        %v656 = vld [vmem:[#allocation2 + $0x28] sm:$0xff]
        %v657 = vld [vmem:[#allocation2 + $0x30] sm:$0xff]
        %v658 = vld [vmem:[#allocation2 + $0x38] sm:$0xff]
        %v659 = vmax.f32 %v651, %v636
        %v660 = vmax.f32 %v652, %v638
        %v661 = vmax.f32 %v653, %v640
        %v662 = vmax.f32 %v654, %v642
        %v663 = vmax.f32 %v655, %v644
        %v664 = vmax.f32 %v656, %v646
        %v665 = vmax.f32 %v657, %v648
        %v666 = vmax.f32 %v658, %v650
        %v667 = vld [vmem:[#allocation3] sm:$0xff]
        %v668 = vld [vmem:[#allocation3 + $0x8] sm:$0xff]
        %v669 = vld [vmem:[#allocation3 + $0x10] sm:$0xff]
        %v670 = vld [vmem:[#allocation3 + $0x18] sm:$0xff]
        %v671 = vld [vmem:[#allocation3 + $0x20] sm:$0xff]
        %v672 = vld [vmem:[#allocation3 + $0x28] sm:$0xff]
        %v673 = vld [vmem:[#allocation3 + $0x30] sm:$0xff]
        %v674 = vld [vmem:[#allocation3 + $0x38] sm:$0xff]
        %v675 = vsub.f32 %v651, %v659
        %v676 = vsub.f32 %v652, %v660
        %v677 = vsub.f32 %v653, %v661
        %v678 = vsub.f32 %v654, %v662
        %v679 = vsub.f32 %v655, %v663
        %v680 = vsub.f32 %v656, %v664
        %v681 = vsub.f32 %v657, %v665
        %v682 = vsub.f32 %v658, %v666
        %v683 = vmul.f32 %v675, 1.442695
        %v684 = vpow.pop %v683
        %v685 = vmul.f32 %v676, 1.442695
        %v686 = vpow.pop %v685
        %v687 = vmul.f32 %v677, 1.442695
        %v688 = vpow.pop %v687
        %v689 = vmul.f32 %v678, 1.442695
        %v690 = vpow.pop %v689
        %v691 = vmul.f32 %v679, 1.442695
        %v692 = vpow.pop %v691
        %v693 = vmul.f32 %v680, 1.442695
        %v694 = vpow.pop %v693
        %v695 = vmul.f32 %v681, 1.442695
        %v696 = vpow.pop %v695
        %v697 = vmul.f32 %v682, 1.442695
        %v698 = vpow.pop %v697
        %v699 = vmul.f32 %v667, %v684
        %v700 = vmul.f32 %v668, %v686
        %v701 = vmul.f32 %v669, %v688
        %v702 = vmul.f32 %v670, %v690
        %v703 = vmul.f32 %v671, %v692
        %v704 = vmul.f32 %v672, %v694
        %v705 = vmul.f32 %v673, %v696
        %v706 = vmul.f32 %v674, %v698
        %708 = vset.pattern.permute.xlu0 0
        %709 = vperm.xlu0 %708, %v659
        %v710 = vpop.permute.xlu0 %709
        %713 = vset.pattern.permute.xlu0 0
        %714 = vperm.xlu0 %713, %v660
        %v715 = vpop.permute.xlu0 %714
        %718 = vset.pattern.permute.xlu0 0
        %719 = vperm.xlu0 %718, %v661
        %v720 = vpop.permute.xlu0 %719
        %723 = vset.pattern.permute.xlu0 0
        %724 = vperm.xlu0 %723, %v662
        %v725 = vpop.permute.xlu0 %724
        %728 = vset.pattern.permute.xlu0 0
        %729 = vperm.xlu0 %728, %v663
        %v730 = vpop.permute.xlu0 %729
        %733 = vset.pattern.permute.xlu0 0
        %734 = vperm.xlu0 %733, %v664
        %v735 = vpop.permute.xlu0 %734
        %738 = vset.pattern.permute.xlu0 0
        %739 = vperm.xlu0 %738, %v665
        %v740 = vpop.permute.xlu0 %739
        %743 = vset.pattern.permute.xlu0 0
        %744 = vperm.xlu0 %743, %v666
        %v745 = vpop.permute.xlu0 %744
        %v747 = vsub.f32 %v584, %v710
        %v748 = vsub.f32 %v589, %v715
        %v749 = vsub.f32 %v594, %v720
        %v750 = vsub.f32 %v599, %v725
        %v751 = vsub.f32 %v604, %v730
        %v752 = vsub.f32 %v609, %v735
        %v753 = vsub.f32 %v614, %v740
        %v754 = vsub.f32 %v619, %v745
        %v755 = vmul.f32 %v747, 1.442695
        %v756 = vpow.pop %v755
        %v757 = vmul.f32 %v748, 1.442695
        %v758 = vpow.pop %v757
        %v759 = vmul.f32 %v749, 1.442695
        %v760 = vpow.pop %v759
        %v761 = vmul.f32 %v750, 1.442695
        %v762 = vpow.pop %v761
        %v763 = vmul.f32 %v751, 1.442695
        %v764 = vpow.pop %v763
        %v765 = vmul.f32 %v752, 1.442695
        %v766 = vpow.pop %v765
        %v767 = vmul.f32 %v753, 1.442695
        %v768 = vpow.pop %v767
        %v769 = vmul.f32 %v754, 1.442695
        %v770 = vpow.pop %v769
        %771 = vadd.xlane.f32.xlu0 %v756
        %v772 = vpop.xlane.xlu0 %771
        %773 = vadd.xlane.f32.xlu0 %v758
        %v774 = vpop.xlane.xlu0 %773
        %775 = vadd.xlane.f32.xlu0 %v760
        %v776 = vpop.xlane.xlu0 %775
        %777 = vadd.xlane.f32.xlu0 %v762
        %v778 = vpop.xlane.xlu0 %777
        %779 = vadd.xlane.f32.xlu0 %v764
        %v780 = vpop.xlane.xlu0 %779
        %781 = vadd.xlane.f32.xlu0 %v766
        %v782 = vpop.xlane.xlu0 %781
        %783 = vadd.xlane.f32.xlu0 %v768
        %v784 = vpop.xlane.xlu0 %783
        %785 = vadd.xlane.f32.xlu0 %v770
        %v786 = vpop.xlane.xlu0 %785
        %v787 = vadd.f32 %v699, %v772
        %v788 = vadd.f32 %v700, %v774
        %v789 = vadd.f32 %v701, %v776
        %v790 = vadd.f32 %v702, %v778
        %v791 = vadd.f32 %v703, %v780
        %v792 = vadd.f32 %v704, %v782
        %v793 = vadd.f32 %v705, %v784
        %v794 = vadd.f32 %v706, %v786
        %vm795 = vcmask 7168
        %796 = vst.msk [vmem:[#allocation3] sm:$0xff] %vm795, %v787
        %797 = vst.msk [vmem:[#allocation3 + $0x8] sm:$0xff] %vm795, %v788
        %798 = vst.msk [vmem:[#allocation3 + $0x10] sm:$0xff] %vm795, %v789
        %799 = vst.msk [vmem:[#allocation3 + $0x18] sm:$0xff] %vm795, %v790
        %800 = vst.msk [vmem:[#allocation3 + $0x20] sm:$0xff] %vm795, %v791
        %801 = vst.msk [vmem:[#allocation3 + $0x28] sm:$0xff] %vm795, %v792
        %802 = vst.msk [vmem:[#allocation3 + $0x30] sm:$0xff] %vm795, %v793
        %803 = vst.msk [vmem:[#allocation3 + $0x38] sm:$0xff] %vm795, %v794
        %804 = vst.msk [vmem:[#allocation2] sm:$0xff] %vm795, %v659
        %805 = vst.msk [vmem:[#allocation2 + $0x8] sm:$0xff] %vm795, %v660
        %806 = vst.msk [vmem:[#allocation2 + $0x10] sm:$0xff] %vm795, %v661
        %807 = vst.msk [vmem:[#allocation2 + $0x18] sm:$0xff] %vm795, %v662
        %808 = vst.msk [vmem:[#allocation2 + $0x20] sm:$0xff] %vm795, %v663
        %809 = vst.msk [vmem:[#allocation2 + $0x28] sm:$0xff] %vm795, %v664
        %810 = vst.msk [vmem:[#allocation2 + $0x30] sm:$0xff] %vm795, %v665
        %811 = vst.msk [vmem:[#allocation2 + $0x38] sm:$0xff] %vm795, %v666
        %v812 = vld [vmem:[%s426] sm:$0xff]
        %v813 = vld [vmem:[%s426 + $0x8] sm:$0xff]
        %v814 = vld [vmem:[%s426 + $0x10] sm:$0xff]
        %v815 = vld [vmem:[%s426 + $0x18] sm:$0xff]
        %v816 = vld [vmem:[%s426 + $0x20] sm:$0xff]
        %v817 = vld [vmem:[%s426 + $0x28] sm:$0xff]
        %v818 = vld [vmem:[%s426 + $0x30] sm:$0xff]
        %v819 = vld [vmem:[%s426 + $0x38] sm:$0xff]
        %820 = vset.pattern.permute.xlu0 0
        %821 = vperm.xlu0 %820, %v812
        %v822 = vpop.permute.xlu0 %821
        %823 = vset.pattern.permute.xlu0 0
        %824 = vperm.xlu0 %823, %v813
        %v825 = vpop.permute.xlu0 %824
        %826 = vset.pattern.permute.xlu0 0
        %827 = vperm.xlu0 %826, %v814
        %v828 = vpop.permute.xlu0 %827
        %829 = vset.pattern.permute.xlu0 0
        %830 = vperm.xlu0 %829, %v815
        %v831 = vpop.permute.xlu0 %830
        %832 = vset.pattern.permute.xlu0 0
        %833 = vperm.xlu0 %832, %v816
        %v834 = vpop.permute.xlu0 %833
        %835 = vset.pattern.permute.xlu0 0
        %836 = vperm.xlu0 %835, %v817
        %v837 = vpop.permute.xlu0 %836
        %838 = vset.pattern.permute.xlu0 0
        %839 = vperm.xlu0 %838, %v818
        %v840 = vpop.permute.xlu0 %839
        %841 = vset.pattern.permute.xlu0 0
        %842 = vperm.xlu0 %841, %v819
        %v843 = vpop.permute.xlu0 %842
        %vm844 = vcmp.eq.s32.totalorder %v634, %v822
        %vm845 = vcmp.eq.s32.totalorder %v634, %v825
        %vm846 = vcmp.eq.s32.totalorder %v634, %v828
        %vm847 = vcmp.eq.s32.totalorder %v634, %v831
        %vm848 = vcmp.eq.s32.totalorder %v634, %v834
        %vm849 = vcmp.eq.s32.totalorder %v634, %v837
        %vm850 = vcmp.eq.s32.totalorder %v634, %v840
        %vm851 = vcmp.eq.s32.totalorder %v634, %v843
        %v852 = vsel %vm844, 1, 0
        %v853 = vsel %vm845, 1, 0
        %v854 = vsel %vm846, 1, 0
        %v855 = vsel %vm847, 1, 0
        %v856 = vsel %vm848, 1, 0
        %v857 = vsel %vm849, 1, 0
        %v858 = vsel %vm850, 1, 0
        %v859 = vsel %vm851, 1, 0
        %v860 = vcvt.s32.f32 %v852
        %v861 = vcvt.s32.f32 %v853
        %v862 = vcvt.s32.f32 %v854
        %v863 = vcvt.s32.f32 %v855
        %v864 = vcvt.s32.f32 %v856
        %v865 = vcvt.s32.f32 %v857
        %v866 = vcvt.s32.f32 %v858
        %v867 = vcvt.s32.f32 %v859
        %v868 = vld [vmem:[#allocation4] sm:$0xff]
        %v869 = vld [vmem:[#allocation4 + $0x8] sm:$0xff]
        %v870 = vld [vmem:[#allocation4 + $0x10] sm:$0xff]
        %v871 = vld [vmem:[#allocation4 + $0x18] sm:$0xff]
        %v872 = vld [vmem:[#allocation4 + $0x20] sm:$0xff]
        %v873 = vld [vmem:[#allocation4 + $0x28] sm:$0xff]
        %v874 = vld [vmem:[#allocation4 + $0x30] sm:$0xff]
        %v875 = vld [vmem:[#allocation4 + $0x38] sm:$0xff]
        %v876 = vmul.f32 %v584, %v860
        %v877 = vmul.f32 %v589, %v861
        %v878 = vmul.f32 %v594, %v862
        %v879 = vmul.f32 %v599, %v863
        %v880 = vmul.f32 %v604, %v864
        %v881 = vmul.f32 %v609, %v865
        %v882 = vmul.f32 %v614, %v866
        %v883 = vmul.f32 %v619, %v867
        %884 = vadd.xlane.f32.xlu0 %v876
        %v885 = vpop.xlane.xlu0 %884
        %886 = vadd.xlane.f32.xlu0 %v877
        %v887 = vpop.xlane.xlu0 %886
        %888 = vadd.xlane.f32.xlu0 %v878
        %v889 = vpop.xlane.xlu0 %888
        %890 = vadd.xlane.f32.xlu0 %v879
        %v891 = vpop.xlane.xlu0 %890
        %892 = vadd.xlane.f32.xlu0 %v880
        %v893 = vpop.xlane.xlu0 %892
        %894 = vadd.xlane.f32.xlu0 %v881
        %v895 = vpop.xlane.xlu0 %894
        %896 = vadd.xlane.f32.xlu0 %v882
        %v897 = vpop.xlane.xlu0 %896
        %898 = vadd.xlane.f32.xlu0 %v883
        %v899 = vpop.xlane.xlu0 %898
        %v900 = vadd.f32 %v868, %v885
        %v901 = vadd.f32 %v869, %v887
        %v902 = vadd.f32 %v870, %v889
        %v903 = vadd.f32 %v871, %v891
        %v904 = vadd.f32 %v872, %v893
        %v905 = vadd.f32 %v873, %v895
        %v906 = vadd.f32 %v874, %v897
        %v907 = vadd.f32 %v875, %v899
        %908 = vst.msk [vmem:[#allocation4] sm:$0xff] %vm795, %v900
        %909 = vst.msk [vmem:[#allocation4 + $0x8] sm:$0xff] %vm795, %v901
        %910 = vst.msk [vmem:[#allocation4 + $0x10] sm:$0xff] %vm795, %v902
        %911 = vst.msk [vmem:[#allocation4 + $0x18] sm:$0xff] %vm795, %v903
        %912 = vst.msk [vmem:[#allocation4 + $0x20] sm:$0xff] %vm795, %v904
        %913 = vst.msk [vmem:[#allocation4 + $0x28] sm:$0xff] %vm795, %v905
        %914 = vst.msk [vmem:[#allocation4 + $0x30] sm:$0xff] %vm795, %v906
        %915 = vst.msk [vmem:[#allocation4 + $0x38] sm:$0xff] %vm795, %v907
        %vm916 = vcmp.eq.f32.partialorder %v584, %v636
        %vm917 = vcmp.eq.f32.partialorder %v589, %v638
        %vm918 = vcmp.eq.f32.partialorder %v594, %v640
        %vm919 = vcmp.eq.f32.partialorder %v599, %v642
        %vm920 = vcmp.eq.f32.partialorder %v604, %v644
        %vm921 = vcmp.eq.f32.partialorder %v609, %v646
        %vm922 = vcmp.eq.f32.partialorder %v614, %v648
        %vm923 = vcmp.eq.f32.partialorder %v619, %v650
        %v924 = vsel %vm916, %v634, 1073741824
        %v925 = vsel %vm917, %v634, 1073741824
        %v926 = vsel %vm918, %v634, 1073741824
        %v927 = vsel %vm919, %v634, 1073741824
        %v928 = vsel %vm920, %v634, 1073741824
        %v929 = vsel %vm921, %v634, 1073741824
        %v930 = vsel %vm922, %v634, 1073741824
        %v931 = vsel %vm923, %v634, 1073741824
        %v932 = vand.u32 %v924, 65535
        %v933 = vshra.s32 %v924, 16
        %v934 = vcvt.s32.f32 %v932
        %v935 = vcvt.s32.f32 %v933
        %936 = vmin.xlane.f32.xlu0 %v935
        %v937 = vpop.xlane.xlu0 %936
        %vm938 = vcmp.eq.f32.partialorder %v935, %v937
        %v939 = vsel %vm938, %v934, inf
        %940 = vmin.xlane.f32.xlu0 %v939
        %v941 = vpop.xlane.xlu0 %940
        %v942 = vcvt.f32.s32 %v941
        %v943 = vcvt.f32.s32 %v937
        %v944 = vshll.u32 %v943, 16
        %v945 = vadd.s32 %v944, %v942
        %v946 = vand.u32 %v925, 65535
        %v947 = vshra.s32 %v925, 16
        %v948 = vcvt.s32.f32 %v946
        %v949 = vcvt.s32.f32 %v947
        %950 = vmin.xlane.f32.xlu0 %v949
        %v951 = vpop.xlane.xlu0 %950
        %vm952 = vcmp.eq.f32.partialorder %v949, %v951
        %v953 = vsel %vm952, %v948, inf
        %954 = vmin.xlane.f32.xlu0 %v953
        %v955 = vpop.xlane.xlu0 %954
        %v956 = vcvt.f32.s32 %v955
        %v957 = vcvt.f32.s32 %v951
        %v958 = vshll.u32 %v957, 16
        %v959 = vadd.s32 %v958, %v956
        %v960 = vand.u32 %v926, 65535
        %v961 = vshra.s32 %v926, 16
        %v962 = vcvt.s32.f32 %v960
        %v963 = vcvt.s32.f32 %v961
        %964 = vmin.xlane.f32.xlu0 %v963
        %v965 = vpop.xlane.xlu0 %964
        %vm966 = vcmp.eq.f32.partialorder %v963, %v965
        %v967 = vsel %vm966, %v962, inf
        %968 = vmin.xlane.f32.xlu0 %v967
        %v969 = vpop.xlane.xlu0 %968
        %v970 = vcvt.f32.s32 %v969
        %v971 = vcvt.f32.s32 %v965
        %v972 = vshll.u32 %v971, 16
        %v973 = vadd.s32 %v972, %v970
        %v974 = vand.u32 %v927, 65535
        %v975 = vshra.s32 %v927, 16
        %v976 = vcvt.s32.f32 %v974
        %v977 = vcvt.s32.f32 %v975
        %978 = vmin.xlane.f32.xlu0 %v977
        %v979 = vpop.xlane.xlu0 %978
        %vm980 = vcmp.eq.f32.partialorder %v977, %v979
        %v981 = vsel %vm980, %v976, inf
        %982 = vmin.xlane.f32.xlu0 %v981
        %v983 = vpop.xlane.xlu0 %982
        %v984 = vcvt.f32.s32 %v983
        %v985 = vcvt.f32.s32 %v979
        %v986 = vshll.u32 %v985, 16
        %v987 = vadd.s32 %v986, %v984
        %v988 = vand.u32 %v928, 65535
        %v989 = vshra.s32 %v928, 16
        %v990 = vcvt.s32.f32 %v988
        %v991 = vcvt.s32.f32 %v989
        %992 = vmin.xlane.f32.xlu0 %v991
        %v993 = vpop.xlane.xlu0 %992
        %vm994 = vcmp.eq.f32.partialorder %v991, %v993
        %v995 = vsel %vm994, %v990, inf
        %996 = vmin.xlane.f32.xlu0 %v995
        %v997 = vpop.xlane.xlu0 %996
        %v998 = vcvt.f32.s32 %v997
        %v999 = vcvt.f32.s32 %v993
        %v1000 = vshll.u32 %v999, 16
        %v1001 = vadd.s32 %v1000, %v998
        %v1002 = vand.u32 %v929, 65535
        %v1003 = vshra.s32 %v929, 16
        %v1004 = vcvt.s32.f32 %v1002
        %v1005 = vcvt.s32.f32 %v1003
        %1006 = vmin.xlane.f32.xlu0 %v1005
        %v1007 = vpop.xlane.xlu0 %1006
        %vm1008 = vcmp.eq.f32.partialorder %v1005, %v1007
        %v1009 = vsel %vm1008, %v1004, inf
        %1010 = vmin.xlane.f32.xlu0 %v1009
        %v1011 = vpop.xlane.xlu0 %1010
        %v1012 = vcvt.f32.s32 %v1011
        %v1013 = vcvt.f32.s32 %v1007
        %v1014 = vshll.u32 %v1013, 16
        %v1015 = vadd.s32 %v1014, %v1012
        %v1016 = vand.u32 %v930, 65535
        %v1017 = vshra.s32 %v930, 16
        %v1018 = vcvt.s32.f32 %v1016
        %v1019 = vcvt.s32.f32 %v1017
        %1020 = vmin.xlane.f32.xlu0 %v1019
        %v1021 = vpop.xlane.xlu0 %1020
        %vm1022 = vcmp.eq.f32.partialorder %v1019, %v1021
        %v1023 = vsel %vm1022, %v1018, inf
        %1024 = vmin.xlane.f32.xlu0 %v1023
        %v1025 = vpop.xlane.xlu0 %1024
        %v1026 = vcvt.f32.s32 %v1025
        %v1027 = vcvt.f32.s32 %v1021
        %v1028 = vshll.u32 %v1027, 16
        %v1029 = vadd.s32 %v1028, %v1026
        %v1030 = vand.u32 %v931, 65535
        %v1031 = vshra.s32 %v931, 16
        %v1032 = vcvt.s32.f32 %v1030
        %v1033 = vcvt.s32.f32 %v1031
        %1034 = vmin.xlane.f32.xlu0 %v1033
        %v1035 = vpop.xlane.xlu0 %1034
        %vm1036 = vcmp.eq.f32.partialorder %v1033, %v1035
        %v1037 = vsel %vm1036, %v1032, inf
        %1038 = vmin.xlane.f32.xlu0 %v1037
        %v1039 = vpop.xlane.xlu0 %1038
        %v1040 = vcvt.f32.s32 %v1039
        %v1041 = vcvt.f32.s32 %v1035
        %v1042 = vshll.u32 %v1041, 16
        %v1043 = vadd.s32 %v1042, %v1040
        %v1044 = vld [vmem:[#allocation5] sm:$0xff]
        %v1045 = vld [vmem:[#allocation5 + $0x8] sm:$0xff]
        %v1046 = vld [vmem:[#allocation5 + $0x10] sm:$0xff]
        %v1047 = vld [vmem:[#allocation5 + $0x18] sm:$0xff]
        %v1048 = vld [vmem:[#allocation5 + $0x20] sm:$0xff]
        %v1049 = vld [vmem:[#allocation5 + $0x28] sm:$0xff]
        %v1050 = vld [vmem:[#allocation5 + $0x30] sm:$0xff]
        %v1051 = vld [vmem:[#allocation5 + $0x38] sm:$0xff]
        %vm1052 = vcmp.gt.f32.partialorder %v636, %v1044
        %vm1053 = vcmp.gt.f32.partialorder %v638, %v1045
        %vm1054 = vcmp.gt.f32.partialorder %v640, %v1046
        %vm1055 = vcmp.gt.f32.partialorder %v642, %v1047
        %vm1056 = vcmp.gt.f32.partialorder %v644, %v1048
        %vm1057 = vcmp.gt.f32.partialorder %v646, %v1049
        %vm1058 = vcmp.gt.f32.partialorder %v648, %v1050
        %vm1059 = vcmp.gt.f32.partialorder %v650, %v1051
        %v1060 = vsel %vm1052, %v636, %v1044
        %v1061 = vsel %vm1053, %v638, %v1045
        %v1062 = vsel %vm1054, %v640, %v1046
        %v1063 = vsel %vm1055, %v642, %v1047
        %v1064 = vsel %vm1056, %v644, %v1048
        %v1065 = vsel %vm1057, %v646, %v1049
        %v1066 = vsel %vm1058, %v648, %v1050
        %v1067 = vsel %vm1059, %v650, %v1051
        %1068 = vst.msk [vmem:[#allocation5] sm:$0xff] %vm795, %v1060
        %1069 = vst.msk [vmem:[#allocation5 + $0x8] sm:$0xff] %vm795, %v1061
        %1070 = vst.msk [vmem:[#allocation5 + $0x10] sm:$0xff] %vm795, %v1062
        %1071 = vst.msk [vmem:[#allocation5 + $0x18] sm:$0xff] %vm795, %v1063
        %1072 = vst.msk [vmem:[#allocation5 + $0x20] sm:$0xff] %vm795, %v1064
        %1073 = vst.msk [vmem:[#allocation5 + $0x28] sm:$0xff] %vm795, %v1065
        %1074 = vst.msk [vmem:[#allocation5 + $0x30] sm:$0xff] %vm795, %v1066
        %1075 = vst.msk [vmem:[#allocation5 + $0x38] sm:$0xff] %vm795, %v1067
        %v1076 = vld [vmem:[#allocation6] sm:$0xff]
        %v1077 = vld [vmem:[#allocation6 + $0x8] sm:$0xff]
        %v1078 = vld [vmem:[#allocation6 + $0x10] sm:$0xff]
        %v1079 = vld [vmem:[#allocation6 + $0x18] sm:$0xff]
        %v1080 = vld [vmem:[#allocation6 + $0x20] sm:$0xff]
        %v1081 = vld [vmem:[#allocation6 + $0x28] sm:$0xff]
        %v1082 = vld [vmem:[#allocation6 + $0x30] sm:$0xff]
        %v1083 = vld [vmem:[#allocation6 + $0x38] sm:$0xff]
        %v1084 = vsel %vm1052, %v945, %v1076
        %v1085 = vsel %vm1053, %v959, %v1077
        %v1086 = vsel %vm1054, %v973, %v1078
        %v1087 = vsel %vm1055, %v987, %v1079
        %v1088 = vsel %vm1056, %v1001, %v1080
        %v1089 = vsel %vm1057, %v1015, %v1081
        %v1090 = vsel %vm1058, %v1029, %v1082
        %v1091 = vsel %vm1059, %v1043, %v1083
        %1092 = vst.msk [vmem:[#allocation6] sm:$0xff] %vm795, %v1084
        %1093 = vst.msk [vmem:[#allocation6 + $0x8] sm:$0xff] %vm795, %v1085
        %1094 = vst.msk [vmem:[#allocation6 + $0x10] sm:$0xff] %vm795, %v1086
        %1095 = vst.msk [vmem:[#allocation6 + $0x18] sm:$0xff] %vm795, %v1087
        %1096 = vst.msk [vmem:[#allocation6 + $0x20] sm:$0xff] %vm795, %v1088
        %1097 = vst.msk [vmem:[#allocation6 + $0x28] sm:$0xff] %vm795, %v1089
        %1098 = vst.msk [vmem:[#allocation6 + $0x30] sm:$0xff] %vm795, %v1090
        %1099 = vst.msk [vmem:[#allocation6 + $0x38] sm:$0xff] %vm795, %v1091
        %p1100 = scmp.eq.s32.totalorder %s23, 1
        // Predicated region
        $region79: #{rnn_forward.3} parent=69 // pred_check
          %p1101 = pneg %p1100
        $region80: #{rnn_forward.3} parent=69 // pred_check_branch
          %1103 = sbr.rel (%p1101) target = $region82
        $region81: #{rnn_forward.3} parent=69 // pred_region
          %v1104 = vld [vmem:[#allocation2] sm:$0xff]
          %v1105 = vld [vmem:[#allocation2 + $0x8] sm:$0xff]
          %v1106 = vld [vmem:[#allocation2 + $0x10] sm:$0xff]
          %v1107 = vld [vmem:[#allocation2 + $0x18] sm:$0xff]
          %v1108 = vld [vmem:[#allocation2 + $0x20] sm:$0xff]
          %v1109 = vld [vmem:[#allocation2 + $0x28] sm:$0xff]
          %v1110 = vld [vmem:[#allocation2 + $0x30] sm:$0xff]
          %v1111 = vld [vmem:[#allocation2 + $0x38] sm:$0xff]
          %v1112 = vld [vmem:[#allocation3] sm:$0xff]
          %v1113 = vld [vmem:[#allocation3 + $0x8] sm:$0xff]
          %v1114 = vld [vmem:[#allocation3 + $0x10] sm:$0xff]
          %v1115 = vld [vmem:[#allocation3 + $0x18] sm:$0xff]
          %v1116 = vld [vmem:[#allocation3 + $0x20] sm:$0xff]
          %v1117 = vld [vmem:[#allocation3 + $0x28] sm:$0xff]
          %v1118 = vld [vmem:[#allocation3 + $0x30] sm:$0xff]
          %v1119 = vld [vmem:[#allocation3 + $0x38] sm:$0xff]
          %v1120 = vlog2.pop %v1112
          %v1121 = vmul.f32 %v1120, 0.6931472
          %v1122 = vlog2.pop %v1113
          %v1123 = vmul.f32 %v1122, 0.6931472
          %v1124 = vlog2.pop %v1114
          %v1125 = vmul.f32 %v1124, 0.6931472
          %v1126 = vlog2.pop %v1115
          %v1127 = vmul.f32 %v1126, 0.6931472
          %v1128 = vlog2.pop %v1116
          %v1129 = vmul.f32 %v1128, 0.6931472
          %v1130 = vlog2.pop %v1117
          %v1131 = vmul.f32 %v1130, 0.6931472
          %v1132 = vlog2.pop %v1118
          %v1133 = vmul.f32 %v1132, 0.6931472
          %v1134 = vlog2.pop %v1119
          %v1135 = vmul.f32 %v1134, 0.6931472
          %v1136 = vadd.f32 %v1104, %v1121
          %v1137 = vadd.f32 %v1105, %v1123
          %v1138 = vadd.f32 %v1106, %v1125
          %v1139 = vadd.f32 %v1107, %v1127
          %v1140 = vadd.f32 %v1108, %v1129
          %v1141 = vadd.f32 %v1109, %v1131
          %v1142 = vadd.f32 %v1110, %v1133
          %v1143 = vadd.f32 %v1111, %v1135
          %v1144 = vld [vmem:[#allocation4] sm:$0xff]
          %v1145 = vld [vmem:[#allocation4 + $0x8] sm:$0xff]
          %v1146 = vld [vmem:[#allocation4 + $0x10] sm:$0xff]
          %v1147 = vld [vmem:[#allocation4 + $0x18] sm:$0xff]
          %v1148 = vld [vmem:[#allocation4 + $0x20] sm:$0xff]
          %v1149 = vld [vmem:[#allocation4 + $0x28] sm:$0xff]
          %v1150 = vld [vmem:[#allocation4 + $0x30] sm:$0xff]
          %v1151 = vld [vmem:[#allocation4 + $0x38] sm:$0xff]
          %v1152 = vsub.f32 %v1136, %v1144
          %v1153 = vsub.f32 %v1137, %v1145
          %v1154 = vsub.f32 %v1138, %v1146
          %v1155 = vsub.f32 %v1139, %v1147
          %v1156 = vsub.f32 %v1140, %v1148
          %v1157 = vsub.f32 %v1141, %v1149
          %v1158 = vsub.f32 %v1142, %v1150
          %v1159 = vsub.f32 %v1143, %v1151
          %1160 = vst.msk [vmem:[%s439] sm:$0xff] %vm795, %v1152
          %1161 = vst.msk [vmem:[%s439 + $0x8] sm:$0xff] %vm795, %v1153
          %1162 = vst.msk [vmem:[%s439 + $0x10] sm:$0xff] %vm795, %v1154
          %1163 = vst.msk [vmem:[%s439 + $0x18] sm:$0xff] %vm795, %v1155
          %1164 = vst.msk [vmem:[%s439 + $0x20] sm:$0xff] %vm795, %v1156
          %1165 = vst.msk [vmem:[%s439 + $0x28] sm:$0xff] %vm795, %v1157
          %1166 = vst.msk [vmem:[%s439 + $0x30] sm:$0xff] %vm795, %v1158
          %1167 = vst.msk [vmem:[%s439 + $0x38] sm:$0xff] %vm795, %v1159
          %v1168 = vld [vmem:[#allocation6] sm:$0xff]
          %v1169 = vld [vmem:[#allocation6 + $0x8] sm:$0xff]
          %v1170 = vld [vmem:[#allocation6 + $0x10] sm:$0xff]
          %v1171 = vld [vmem:[#allocation6 + $0x18] sm:$0xff]
          %v1172 = vld [vmem:[#allocation6 + $0x20] sm:$0xff]
          %v1173 = vld [vmem:[#allocation6 + $0x28] sm:$0xff]
          %v1174 = vld [vmem:[#allocation6 + $0x30] sm:$0xff]
          %v1175 = vld [vmem:[#allocation6 + $0x38] sm:$0xff]
          %1176 = vst.msk [vmem:[%s433] sm:$0xff] %vm795, %v1168
          %1177 = vst.msk [vmem:[%s433 + $0x8] sm:$0xff] %vm795, %v1169
          %1178 = vst.msk [vmem:[%s433 + $0x10] sm:$0xff] %vm795, %v1170
          %1179 = vst.msk [vmem:[%s433 + $0x18] sm:$0xff] %vm795, %v1171
          %1180 = vst.msk [vmem:[%s433 + $0x20] sm:$0xff] %vm795, %v1172
          %1181 = vst.msk [vmem:[%s433 + $0x28] sm:$0xff] %vm795, %v1173
          %1182 = vst.msk [vmem:[%s433 + $0x30] sm:$0xff] %vm795, %v1174
          %1183 = vst.msk [vmem:[%s433 + $0x38] sm:$0xff] %vm795, %v1175
        $region82: #{rnn_forward.3} parent=69 // pred_fallthru
          _
        %s1184 = sand.u32 %s144, 1
        %s1185 = sand.u32 %s144, 1
        %s1186 = smul.addr %s1185, 64
        %s1187 = scalar_lea.vmem [#allocation8], %s1186
        %s1188 = smul.u32 8, %s22
        %p1189 = scmp.lt.s32.totalorder %s1188, 7
        %s1190 = scalar_select %p1189, %s1188, 7
        %s1191 = smul.addr %s1190, 8
        %s1192 = scalar_lea.vmem %s5, %s1191
        %s1193 = smul.u32 8, %s22
        %p1194 = scmp.lt.s32.totalorder %s1193, 7
        %s1195 = scalar_select %p1194, %s1193, 7
        %s1196 = smul.addr %s1195, 8
        %s1197 = scalar_lea.vmem %s6, %s1196
        // Predicated region
        $region83: #{rnn_forward.3} parent=69 // pred_check
          %p1198 = pneg %p154
        $region84: #{rnn_forward.3} parent=69 // pred_check_branch
          %1200 = sbr.rel (%p1198) target = $region86
        $region85: #{rnn_forward.3} parent=69 // pred_region
          %s1201 = smul.u32 8, %s22
          %s1202 = smul.addr %s1201, 2
          %s1203 = sadd.s32 %s23, %s1202
          %s1204 = smul.addr %s1203, 8
          %s1205 = scalar_lea.vmem %s4, %s1204
          // Predicated region
          $region87: #{rnn_forward.3} parent=85 // pred_check
            _
          $region88: #{rnn_forward.3} parent=85 // pred_check_branch
            %1207 = sbr.rel (0) target = $region90
          $region89: #{rnn_forward.3} parent=85 // pred_region
            // Predicated region
            $region91: #{rnn_forward.3} parent=89 // pred_check
              _
            $region92: #{rnn_forward.3} parent=89 // pred_check_branch
              %1209 = sbr.rel (0) target = $region94
            $region93: #{rnn_forward.3} parent=89 // pred_region
              // Predicated region
              $region106: #{rnn_forward.3} parent=93 // pred_check
                _
              $region107: #{rnn_forward.3} parent=93 // pred_check_branch
                %1239 = sbr.rel (0) target = $region109
              $region108: #{rnn_forward.3} parent=93 // pred_region
                loop: start=0, step=1, limit=1
                $region110: #{rnn_forward.3} parent=108 // loop_pre_header
                  _
                $region111: #{rnn_forward.3} parent=108 // loop_header
                  %s1241 = sphi 0, %s1245
                  %p1242 = scmp.ge.s32.totalorder %s1241, 1
                  %s1246 = sphi %s1187, %s1187
                  %s1247 = sphi %s1205, %s1205
                $region112: #{rnn_forward.3} parent=108 // loop_header_branch
                  %1244 = sbr.rel (%p1242) target = $region116
                $region113: #{rnn_forward.3} parent=108 // loop_body
                  %v1248 = vld [vmem:[%s1246] sm:$0xff]
                  %1249 = vst [vmem:[%s1247] sm:$0xff] %v1248
                  %v1250 = vld [vmem:[%s1246 + $0x8] sm:$0xff]
                  %1251 = vst [vmem:[%s1247 + $0x10] sm:$0xff] %v1250
                  %v1252 = vld [vmem:[%s1246 + $0x10] sm:$0xff]
                  %1253 = vst [vmem:[%s1247 + $0x20] sm:$0xff] %v1252
                  %v1254 = vld [vmem:[%s1246 + $0x18] sm:$0xff]
                  %1255 = vst [vmem:[%s1247 + $0x30] sm:$0xff] %v1254
                  %v1256 = vld [vmem:[%s1246 + $0x20] sm:$0xff]
                  %1257 = vst [vmem:[%s1247 + $0x40] sm:$0xff] %v1256
                  %v1258 = vld [vmem:[%s1246 + $0x28] sm:$0xff]
                  %1259 = vst [vmem:[%s1247 + $0x50] sm:$0xff] %v1258
                  %v1260 = vld [vmem:[%s1246 + $0x30] sm:$0xff]
                  %1261 = vst [vmem:[%s1247 + $0x60] sm:$0xff] %v1260
                  %v1262 = vld [vmem:[%s1246 + $0x38] sm:$0xff]
                  %1263 = vst [vmem:[%s1247 + $0x70] sm:$0xff] %v1262
                $region114: #{rnn_forward.3} parent=108 // loop_footer
                  %s1245 = sadd.s32 1, %s1241
                $region115: #{rnn_forward.3} parent=108 // loop_footer_branch
                  %1240 = sbr.rel target = $region111
                $region116: #{rnn_forward.3} parent=108 // loop_exit
                  _
              $region109: #{rnn_forward.3} parent=93 // pred_fallthru
                _
              // Predicated region
              $region117: #{rnn_forward.3} parent=93 // pred_check
                _
              $region118: #{rnn_forward.3} parent=93 // pred_check_branch
                %1265 = sbr.rel target = $region120
              $region119: #{rnn_forward.3} parent=93 // pred_region
                _
              $region120: #{rnn_forward.3} parent=93 // pred_fallthru
                _
            $region94: #{rnn_forward.3} parent=89 // pred_fallthru
              _
            // Predicated region
            $region95: #{rnn_forward.3} parent=89 // pred_check
              _
            $region96: #{rnn_forward.3} parent=89 // pred_check_branch
              %1211 = sbr.rel target = $region98
            $region97: #{rnn_forward.3} parent=89 // pred_region
              %s1213 = ssub.s32 256, 1
              loop: start=0, step=1, limit=1
              $region99: #{rnn_forward.3} parent=97 // loop_pre_header
                _
              $region100: #{rnn_forward.3} parent=97 // loop_header
                %s1215 = sphi 0, %s1219
                %p1216 = scmp.ge.s32.totalorder %s1215, 1
                %s1220 = sphi %s1187, %s1187
                %s1221 = sphi %s1205, %s1205
              $region101: #{rnn_forward.3} parent=97 // loop_header_branch
                %1218 = sbr.rel (%p1216) target = $region105
              $region102: #{rnn_forward.3} parent=97 // loop_body
                %v1222 = vld [vmem:[%s1220] sm:%s1213]
                %1223 = vst [vmem:[%s1221] sm:%s1213] %v1222
                %v1224 = vld [vmem:[%s1220 + $0x8] sm:%s1213]
                %1225 = vst [vmem:[%s1221 + $0x10] sm:%s1213] %v1224
                %v1226 = vld [vmem:[%s1220 + $0x10] sm:%s1213]
                %1227 = vst [vmem:[%s1221 + $0x20] sm:%s1213] %v1226
                %v1228 = vld [vmem:[%s1220 + $0x18] sm:%s1213]
                %1229 = vst [vmem:[%s1221 + $0x30] sm:%s1213] %v1228
                %v1230 = vld [vmem:[%s1220 + $0x20] sm:%s1213]
                %1231 = vst [vmem:[%s1221 + $0x40] sm:%s1213] %v1230
                %v1232 = vld [vmem:[%s1220 + $0x28] sm:%s1213]
                %1233 = vst [vmem:[%s1221 + $0x50] sm:%s1213] %v1232
                %v1234 = vld [vmem:[%s1220 + $0x30] sm:%s1213]
                %1235 = vst [vmem:[%s1221 + $0x60] sm:%s1213] %v1234
                %v1236 = vld [vmem:[%s1220 + $0x38] sm:%s1213]
                %1237 = vst [vmem:[%s1221 + $0x70] sm:%s1213] %v1236
              $region103: #{rnn_forward.3} parent=97 // loop_footer
                %s1219 = sadd.s32 1, %s1215
              $region104: #{rnn_forward.3} parent=97 // loop_footer_branch
                %1214 = sbr.rel target = $region100
              $region105: #{rnn_forward.3} parent=97 // loop_exit
                _
            $region98: #{rnn_forward.3} parent=89 // pred_fallthru
              _
          $region90: #{rnn_forward.3} parent=85 // pred_fallthru
            _
          %1266 = vnop
        $region86: #{rnn_forward.3} parent=69 // pred_fallthru
          _
        // Predicated region
        $region121: #{rnn_forward.3} parent=69 // pred_check
          %p1267 = pneg %p180
        $region122: #{rnn_forward.3} parent=69 // pred_check_branch
          %1269 = sbr.rel (%p1267) target = $region124
        $region123: #{rnn_forward.3} parent=69 // pred_region
          %s1270 = smul.u32 8, %s22
        $region124: #{rnn_forward.3} parent=69 // pred_fallthru
          _
        // Predicated region
        $region125: #{rnn_forward.3} parent=69 // pred_check
          %p1271 = pneg %p206
        $region126: #{rnn_forward.3} parent=69 // pred_check_branch
          %1273 = sbr.rel (%p1271) target = $region128
        $region127: #{rnn_forward.3} parent=69 // pred_region
          %s1274 = smul.u32 8, %s22
        $region128: #{rnn_forward.3} parent=69 // pred_fallthru
          _
        // Predicated region
        $region129: #{rnn_forward.3} parent=69 // pred_check
          %p1275 = pneg %p180
        $region130: #{rnn_forward.3} parent=69 // pred_check_branch
          %1277 = sbr.rel (%p1275) target = $region132
        $region131: #{rnn_forward.3} parent=69 // pred_region
          %s1278 = smul.u32 8, %s22
          %p1279 = scmp.lt.s32.totalorder %s1278, 7
          %s1280 = scalar_select %p1279, %s1278, 7
          %s1281 = smul.addr %s1280, 8
          %s1282 = scalar_lea.vmem %s5, %s1281
        $region132: #{rnn_forward.3} parent=69 // pred_fallthru
          _
        // Predicated region
        $region133: #{rnn_forward.3} parent=69 // pred_check
          %p1283 = pneg %p206
        $region134: #{rnn_forward.3} parent=69 // pred_check_branch
          %1285 = sbr.rel (%p1283) target = $region136
        $region135: #{rnn_forward.3} parent=69 // pred_region
          %s1286 = smul.u32 8, %s22
          %p1287 = scmp.lt.s32.totalorder %s1286, 7
          %s1288 = scalar_select %p1287, %s1286, 7
          %s1289 = smul.addr %s1288, 8
          %s1290 = scalar_lea.vmem %s6, %s1289
        $region136: #{rnn_forward.3} parent=69 // pred_fallthru
          _
      $region70: #{rnn_forward.3} parent=5 // pred_fallthru
        _
      %p1291 = scmp.le.s32.totalorder 2, %s13
      // Predicated region
      $region137: #{rnn_forward.3} parent=5 // pred_check
        %p1292 = pneg %p1291
      $region138: #{rnn_forward.3} parent=5 // pred_check_branch
        %1294 = sbr.rel (%p1292) target = $region140
      $region139: #{rnn_forward.3} parent=5 // pred_region
        %s1295 = ssub.s32 %s13, 2
        // Predicated region
        $region141: #{rnn_forward.3} parent=139 // pred_check
          %p1296 = pneg %p160
        $region142: #{rnn_forward.3} parent=139 // pred_check_branch
          %1298 = sbr.rel (%p1296) target = $region144
        $region143: #{rnn_forward.3} parent=139 // pred_region
          %s1299 = sand.u32 %s145, 1
          %s1300 = sand.u32 %s145, 1
          %s1301 = smul.addr %s1300, 64
          %s1302 = scalar_lea.vmem [#allocation8], %s1301
        $region144: #{rnn_forward.3} parent=139 // pred_fallthru
          _
      $region140: #{rnn_forward.3} parent=5 // pred_fallthru
        _
    $region6: #{rnn_forward.3} parent=1 // loop_footer
      %s17 = sadd.s32 1, %s13
    $region7: #{rnn_forward.3} parent=1 // loop_footer_branch
      %12 = sbr.rel target = $region3
    $region8: #{rnn_forward.3} parent=1 // loop_exit
      _

// kernel: rnn_forward.2
$region0: #{rnn_forward.2}
  #allocation0 [shape = 'u32[]', space=smem, size = 0x4, offset = 0x4, fixed_abs, tag = 'smem constant byte address 0x4 - core index']
  #allocation1 [shape = 'u32[144,128]{1,0:T(1,128)}', space=vmem, size = 0x12000, scoped, tag = 'internal scratch']
  #allocation2 [shape = 'f32[64,128]{1,0:T(8,128)}', space=vmem, size = 0x8000, scoped, tag = 'scratch operand']
  #allocation3 [shape = 'f32[64,128]{1,0:T(8,128)}', space=vmem, size = 0x8000, scoped, tag = 'scratch operand']
  %s0 = inlined_call_operand.vmem [shape: s32[8,1], index: 0, kind: input, shape index: {}]
  %s1 = inlined_call_operand.vmem [shape: f32[64,128], index: 1, kind: input, shape index: {}]
  %s2 = inlined_call_operand.vmem [shape: f32[128,128], index: 2, kind: input, shape index: {}]
  %s3 = inlined_call_operand.hbm [shape: f32[1,128,128], index: 3, kind: input, shape index: {}]
  %s4 = inlined_call_operand.vmem [shape: f32[2,128,128], index: 4, kind: input, shape index: {}]
  %s5 = inlined_call_operand.vmem [shape: f32[2,1,128], index: 5, kind: input, shape index: {}]
  %s6 = inlined_call_operand.vmem [shape: f32[64,128], index: 6, kind: output, shape index: {}]
  %s7 = sld [smem:[#allocation0]]
  $region38: #{rnn_forward.2} parent=0
    _
  %s9 = ssub.s32 1, %s7
  %s10 = scalar_select 0, %s9, %s7
  $region1: #{rnn_forward.2} parent=0
    #allocation4 [shape = 'u8[65536]{0}', space=vmem, size = 0x10000, scoped, tag = 'input window, operand 3, single buffered']
    #allocation5 [shape = 's32[1]{0}', space=sflag, size = 0x4, scoped, tag = 'scoped memory for rnn_forward.2']
    %11 = vsyncpa [#allocation5], 0
    // Predicated region
    $region2: #{rnn_forward.2} parent=1 // pred_check
      _
    $region3: #{rnn_forward.2} parent=1 // pred_check_branch
      %13 = sbr.rel (0) target = $region5
    $region4: #{rnn_forward.2} parent=1 // pred_region
      _
    $region5: #{rnn_forward.2} parent=1 // pred_fallthru
      _
    // Predicated region
    $region6: #{rnn_forward.2} parent=1 // pred_check
      _
    $region7: #{rnn_forward.2} parent=1 // pred_check_branch
      %15 = sbr.rel (0) target = $region9
    $region8: #{rnn_forward.2} parent=1 // pred_region
      _
    $region9: #{rnn_forward.2} parent=1 // pred_fallthru
      _
    // Predicated region
    $region10: #{rnn_forward.2} parent=1 // pred_check
      _
    $region11: #{rnn_forward.2} parent=1 // pred_check_branch
      %17 = sbr.rel (0) target = $region13
    $region12: #{rnn_forward.2} parent=1 // pred_region
      _
    $region13: #{rnn_forward.2} parent=1 // pred_fallthru
      _
    // Predicated region
    $region14: #{rnn_forward.2} parent=1 // pred_check
      _
    $region15: #{rnn_forward.2} parent=1 // pred_check_branch
      %19 = sbr.rel (0) target = $region17
    $region16: #{rnn_forward.2} parent=1 // pred_region
      %s21 = ssub.s32 2048, 2048
      %22 = vsyncadd [#allocation5], %s21
      %s23 = sshll.u32 [#allocation4], 4
      %s24 = int_to_ptr.vmem [resolvable:$true] %s23
      %29 = dma.hbm_to_vmem [thread:$0]  %s3, 2048, %s24, [#allocation5], 128, 128, 8
    $region17: #{rnn_forward.2} parent=1 // pred_fallthru
      _
    // Predicated region
    $region18: #{rnn_forward.2} parent=1 // pred_check
      _
    $region19: #{rnn_forward.2} parent=1 // pred_check_branch
      %31 = sbr.rel (0) target = $region21
    $region20: #{rnn_forward.2} parent=1 // pred_region
      _
    $region21: #{rnn_forward.2} parent=1 // pred_fallthru
      _
    // Predicated region
    $region22: #{rnn_forward.2} parent=1 // pred_check
      _
    $region23: #{rnn_forward.2} parent=1 // pred_check_branch
      %33 = sbr.rel (0) target = $region25
    $region24: #{rnn_forward.2} parent=1 // pred_region
      _
    $region25: #{rnn_forward.2} parent=1 // pred_fallthru
      _
    // Predicated region
    $region26: #{rnn_forward.2} parent=1 // pred_check
      _
    $region27: #{rnn_forward.2} parent=1 // pred_check_branch
      %35 = sbr.rel (0) target = $region29
    $region28: #{rnn_forward.2} parent=1 // pred_region
      %36 = dma.done [#allocation5], 2048
    $region29: #{rnn_forward.2} parent=1 // pred_fallthru
      _
    %v37 = vld [vmem:[%s0] sm:$0xff]
    %v38 = vld [vmem:[%s2] sm:$0xff]
    %v39 = vld [vmem:[%s2 + $0x8] sm:$0xff]
    %v40 = vld [vmem:[%s2 + $0x10] sm:$0xff]
    %v41 = vld [vmem:[%s2 + $0x18] sm:$0xff]
    %v42 = vld [vmem:[%s2 + $0x20] sm:$0xff]
    %v43 = vld [vmem:[%s2 + $0x28] sm:$0xff]
    %v44 = vld [vmem:[%s2 + $0x30] sm:$0xff]
    %v45 = vld [vmem:[%s2 + $0x38] sm:$0xff]
    %v46 = vld [vmem:[%s2 + $0x40] sm:$0xff]
    %v47 = vld [vmem:[%s2 + $0x48] sm:$0xff]
    %v48 = vld [vmem:[%s2 + $0x50] sm:$0xff]
    %v49 = vld [vmem:[%s2 + $0x58] sm:$0xff]
    %v50 = vld [vmem:[%s2 + $0x60] sm:$0xff]
    %v51 = vld [vmem:[%s2 + $0x68] sm:$0xff]
    %v52 = vld [vmem:[%s2 + $0x70] sm:$0xff]
    %v53 = vld [vmem:[%s2 + $0x78] sm:$0xff]
    %v54 = vld [vmem:[%s1] sm:$0xff]
    %v55 = vld [vmem:[%s1 + $0x8] sm:$0xff]
    %v56 = vld [vmem:[%s1 + $0x10] sm:$0xff]
    %v57 = vld [vmem:[%s1 + $0x18] sm:$0xff]
    %v58 = vld [vmem:[%s1 + $0x20] sm:$0xff]
    %v59 = vld [vmem:[%s1 + $0x28] sm:$0xff]
    %v60 = vld [vmem:[%s1 + $0x30] sm:$0xff]
    %v61 = vld [vmem:[%s1 + $0x38] sm:$0xff]
    %62 = vmatprep.subr.mxu0 0.0
    %63 = vmatpush1.msra.mxu0 %v53
    %64 = vmatprep.subr.mxu0 0.0
    %65 = vmatpush1.msra.mxu0 %v52
    %66 = vmatprep.subr.mxu0 0.0
    %67 = vmatpush1.msra.mxu0 %v51
    %68 = vmatprep.subr.mxu0 0.0
    %69 = vmatpush1.msra.mxu0 %v50
    %70 = vmatprep.subr.mxu0 0.0
    %71 = vmatpush1.msra.mxu0 %v49
    %72 = vmatprep.subr.mxu0 0.0
    %73 = vmatpush1.msra.mxu0 %v48
    %74 = vmatprep.subr.mxu0 0.0
    %75 = vmatpush1.msra.mxu0 %v47
    %76 = vmatprep.subr.mxu0 0.0
    %77 = vmatpush1.msra.mxu0 %v46
    %78 = vmatprep.subr.mxu0 0.0
    %79 = vmatpush1.msra.mxu0 %v45
    %80 = vmatprep.subr.mxu0 0.0
    %81 = vmatpush1.msra.mxu0 %v44
    %82 = vmatprep.subr.mxu0 0.0
    %83 = vmatpush1.msra.mxu0 %v43
    %84 = vmatprep.subr.mxu0 0.0
    %85 = vmatpush1.msra.mxu0 %v42
    %86 = vmatprep.subr.mxu0 0.0
    %87 = vmatpush1.msra.mxu0 %v41
    %88 = vmatprep.subr.mxu0 0.0
    %89 = vmatpush1.msra.mxu0 %v40
    %90 = vmatprep.subr.mxu0 0.0
    %91 = vmatpush1.msra.mxu0 %v39
    %92 = vmatprep.subr.mxu0 0.0
    %93 = vmatpush1.msra.mxu0 %v38
    %94 = vmatprep.subr.mxu0 0.0
    %95 = vmatpush2.msra.mxu0 0.0
    %96 = vmatprep.subr.mxu0 0.0
    %97 = vmatpush2.msra.mxu0 0.0
    %98 = vmatprep.subr.mxu0 0.0
    %99 = vmatpush2.msra.mxu0 0.0
    %100 = vmatprep.subr.mxu0 0.0
    %101 = vmatpush2.msra.mxu0 0.0
    %102 = vmatprep.subr.mxu0 0.0
    %103 = vmatpush2.msra.mxu0 0.0
    %104 = vmatprep.subr.mxu0 0.0
    %105 = vmatpush2.msra.mxu0 0.0
    %106 = vmatprep.subr.mxu0 0.0
    %107 = vmatpush2.msra.mxu0 0.0
    %108 = vmatprep.subr.mxu0 0.0
    %109 = vmatpush2.msra.mxu0 0.0
    %110 = vmatprep.subr.mxu0 0.0
    %111 = vmatpush2.msra.mxu0 0.0
    %112 = vmatprep.subr.mxu0 0.0
    %113 = vmatpush2.msra.mxu0 0.0
    %114 = vmatprep.subr.mxu0 0.0
    %115 = vmatpush2.msra.mxu0 0.0
    %116 = vmatprep.subr.mxu0 0.0
    %117 = vmatpush2.msra.mxu0 0.0
    %118 = vmatprep.subr.mxu0 0.0
    %119 = vmatpush2.msra.mxu0 0.0
    %120 = vmatprep.subr.mxu0 0.0
    %121 = vmatpush2.msra.mxu0 0.0
    %122 = vmatprep.subr.mxu0 0.0
    %123 = vmatpush2.msra.mxu0 0.0
    %124 = vmatprep.subr.mxu0 0.0
    %125 = vmatpush2.msra.mxu0 0.0
    %126 = vmatprep.mubr.f32.mxu0 0.0
    %127 = vmatmul.mubr.f32.gmra.mxu0 %v54
    %v128 = vpop.f32.mrf.mxu0
    %v129 = vadd.f32 0.0, %v128
    %v130 = vpop.f32.mrf.mxu0
    %131 = vmatprep.mubr.f32.mxu0 0.0
    %132 = vmatmul.mubr.f32.gmra.mxu0 %v55
    %v133 = vpop.f32.mrf.mxu0
    %v134 = vadd.f32 0.0, %v133
    %v135 = vpop.f32.mrf.mxu0
    %136 = vmatprep.mubr.f32.mxu0 0.0
    %137 = vmatmul.mubr.f32.gmra.mxu0 %v56
    %v138 = vpop.f32.mrf.mxu0
    %v139 = vadd.f32 0.0, %v138
    %v140 = vpop.f32.mrf.mxu0
    %141 = vmatprep.mubr.f32.mxu0 0.0
    %142 = vmatmul.mubr.f32.gmra.mxu0 %v57
    %v143 = vpop.f32.mrf.mxu0
    %v144 = vadd.f32 0.0, %v143
    %v145 = vpop.f32.mrf.mxu0
    %146 = vmatprep.mubr.f32.mxu0 0.0
    %147 = vmatmul.mubr.f32.gmra.mxu0 %v58
    %v148 = vpop.f32.mrf.mxu0
    %v149 = vadd.f32 0.0, %v148
    %v150 = vpop.f32.mrf.mxu0
    %151 = vmatprep.mubr.f32.mxu0 0.0
    %152 = vmatmul.mubr.f32.gmra.mxu0 %v59
    %v153 = vpop.f32.mrf.mxu0
    %v154 = vadd.f32 0.0, %v153
    %v155 = vpop.f32.mrf.mxu0
    %156 = vmatprep.mubr.f32.mxu0 0.0
    %157 = vmatmul.mubr.f32.gmra.mxu0 %v60
    %v158 = vpop.f32.mrf.mxu0
    %v159 = vadd.f32 0.0, %v158
    %v160 = vpop.f32.mrf.mxu0
    %161 = vmatprep.mubr.f32.mxu0 0.0
    %162 = vmatmul.mubr.f32.gmra.mxu0 %v61
    %v163 = vpop.f32.mrf.mxu0
    %v164 = vadd.f32 0.0, %v163
    %v165 = vpop.f32.mrf.mxu0
    %166 = vdwg.mxu0
    %167 = vst [vmem:[#allocation2] sm:$0xff] %v129
    %168 = vst [vmem:[#allocation2 + $0x8] sm:$0xff] %v134
    %169 = vst [vmem:[#allocation2 + $0x10] sm:$0xff] %v139
    %170 = vst [vmem:[#allocation2 + $0x18] sm:$0xff] %v144
    %171 = vst [vmem:[#allocation2 + $0x20] sm:$0xff] %v149
    %172 = vst [vmem:[#allocation2 + $0x28] sm:$0xff] %v154
    %173 = vst [vmem:[#allocation2 + $0x30] sm:$0xff] %v159
    %174 = vst [vmem:[#allocation2 + $0x38] sm:$0xff] %v164
    %v175 = vld [vmem:[%s4] sm:$0xff]
    %v176 = vld [vmem:[%s4 + $0x8] sm:$0xff]
    %v177 = vld [vmem:[%s4 + $0x10] sm:$0xff]
    %v178 = vld [vmem:[%s4 + $0x18] sm:$0xff]
    %v179 = vld [vmem:[%s4 + $0x20] sm:$0xff]
    %v180 = vld [vmem:[%s4 + $0x28] sm:$0xff]
    %v181 = vld [vmem:[%s4 + $0x30] sm:$0xff]
    %v182 = vld [vmem:[%s4 + $0x38] sm:$0xff]
    %v183 = vld [vmem:[%s4 + $0x40] sm:$0xff]
    %v184 = vld [vmem:[%s4 + $0x48] sm:$0xff]
    %v185 = vld [vmem:[%s4 + $0x50] sm:$0xff]
    %v186 = vld [vmem:[%s4 + $0x58] sm:$0xff]
    %v187 = vld [vmem:[%s4 + $0x60] sm:$0xff]
    %v188 = vld [vmem:[%s4 + $0x68] sm:$0xff]
    %v189 = vld [vmem:[%s4 + $0x70] sm:$0xff]
    %v190 = vld [vmem:[%s4 + $0x78] sm:$0xff]
    %v191 = vld [vmem:[%s5] sm:$0x1]
    %v192 = vld [vmem:[#allocation2] sm:$0xff]
    %193 = vmatprep.subr.mxu0 0.0
    %194 = vmatpush1.msra.mxu0 %v190
    %195 = vmatprep.subr.mxu0 0.0
    %196 = vmatpush1.msra.mxu0 %v189
    %197 = vmatprep.subr.mxu0 0.0
    %198 = vmatpush1.msra.mxu0 %v188
    %199 = vmatprep.subr.mxu0 0.0
    %200 = vmatpush1.msra.mxu0 %v187
    %201 = vmatprep.subr.mxu0 0.0
    %202 = vmatpush1.msra.mxu0 %v186
    %203 = vmatprep.subr.mxu0 0.0
    %204 = vmatpush1.msra.mxu0 %v185
    %205 = vmatprep.subr.mxu0 0.0
    %206 = vmatpush1.msra.mxu0 %v184
    %207 = vmatprep.subr.mxu0 0.0
    %208 = vmatpush1.msra.mxu0 %v183
    %209 = vmatprep.subr.mxu0 0.0
    %210 = vmatpush1.msra.mxu0 %v182
    %211 = vmatprep.subr.mxu0 0.0
    %212 = vmatpush1.msra.mxu0 %v181
    %213 = vmatprep.subr.mxu0 0.0
    %214 = vmatpush1.msra.mxu0 %v180
    %215 = vmatprep.subr.mxu0 0.0
    %216 = vmatpush1.msra.mxu0 %v179
    %217 = vmatprep.subr.mxu0 0.0
    %218 = vmatpush1.msra.mxu0 %v178
    %219 = vmatprep.subr.mxu0 0.0
    %220 = vmatpush1.msra.mxu0 %v177
    %221 = vmatprep.subr.mxu0 0.0
    %222 = vmatpush1.msra.mxu0 %v176
    %223 = vmatprep.subr.mxu0 0.0
    %224 = vmatpush1.msra.mxu0 %v175
    %225 = vmatprep.subr.mxu0 0.0
    %226 = vmatpush2.msra.mxu0 0.0
    %227 = vmatprep.subr.mxu0 0.0
    %228 = vmatpush2.msra.mxu0 0.0
    %229 = vmatprep.subr.mxu0 0.0
    %230 = vmatpush2.msra.mxu0 0.0
    %231 = vmatprep.subr.mxu0 0.0
    %232 = vmatpush2.msra.mxu0 0.0
    %233 = vmatprep.subr.mxu0 0.0
    %234 = vmatpush2.msra.mxu0 0.0
    %235 = vmatprep.subr.mxu0 0.0
    %236 = vmatpush2.msra.mxu0 0.0
    %237 = vmatprep.subr.mxu0 0.0
    %238 = vmatpush2.msra.mxu0 0.0
    %239 = vmatprep.subr.mxu0 0.0
    %240 = vmatpush2.msra.mxu0 0.0
    %241 = vmatprep.subr.mxu0 0.0
    %242 = vmatpush2.msra.mxu0 0.0
    %243 = vmatprep.subr.mxu0 0.0
    %244 = vmatpush2.msra.mxu0 0.0
    %245 = vmatprep.subr.mxu0 0.0
    %246 = vmatpush2.msra.mxu0 0.0
    %247 = vmatprep.subr.mxu0 0.0
    %248 = vmatpush2.msra.mxu0 0.0
    %249 = vmatprep.subr.mxu0 0.0
    %250 = vmatpush2.msra.mxu0 0.0
    %251 = vmatprep.subr.mxu0 0.0
    %252 = vmatpush2.msra.mxu0 0.0
    %253 = vmatprep.subr.mxu0 0.0
    %254 = vmatpush2.msra.mxu0 0.0
    %255 = vmatprep.subr.mxu0 0.0
    %256 = vmatpush2.msra.mxu0 0.0
    %257 = vmatprep.mubr.f32.mxu0 0.0
    %258 = vmatmul.mubr.f32.gmra.mxu0 0.0
    %v259 = vpop.f32.mrf.mxu0
    %v260 = vadd.f32 0.0, %v259
    %v261 = vpop.f32.mrf.mxu0
    %262 = vdwg.mxu0
    %v263 = vadd.f32 %v192, %v260
    %v265 = vlaneseq
    %v266 = vshrl.u32 %v265, 7
    %v267 = vsub.s32 0, %v266
    %v268 = vrot.slane %v191, %v267
    %v270 = vadd.f32 %v263, %v268
    %v271 = vmax.f32 %v270, 0.0
    %vm272 = vcmp.gt.s32.totalorder %v37, 0
    %v273 = vsel %vm272, 1, 0
    %274 = vset.pattern.permute.xlu0 0
    %275 = vperm.xlu0 %274, %v273
    %v276 = vpop.permute.xlu0 %275
    %vm277 = vcmp.eq.s32.totalorder %v276, 1
    %v278 = vsel %vm277, %v271, 0.0
    %279 = vst [vmem:[#allocation3] sm:$0xff] %v278
    %v280 = vld [vmem:[#allocation2 + $0x8] sm:$0xff]
    %281 = vmatprep.subr.mxu0 0.0
    %282 = vmatpush1.msra.mxu0 %v190
    %283 = vmatprep.subr.mxu0 0.0
    %284 = vmatpush1.msra.mxu0 %v189
    %285 = vmatprep.subr.mxu0 0.0
    %286 = vmatpush1.msra.mxu0 %v188
    %287 = vmatprep.subr.mxu0 0.0
    %288 = vmatpush1.msra.mxu0 %v187
    %289 = vmatprep.subr.mxu0 0.0
    %290 = vmatpush1.msra.mxu0 %v186
    %291 = vmatprep.subr.mxu0 0.0
    %292 = vmatpush1.msra.mxu0 %v185
    %293 = vmatprep.subr.mxu0 0.0
    %294 = vmatpush1.msra.mxu0 %v184
    %295 = vmatprep.subr.mxu0 0.0
    %296 = vmatpush1.msra.mxu0 %v183
    %297 = vmatprep.subr.mxu0 0.0
    %298 = vmatpush1.msra.mxu0 %v182
    %299 = vmatprep.subr.mxu0 0.0
    %300 = vmatpush1.msra.mxu0 %v181
    %301 = vmatprep.subr.mxu0 0.0
    %302 = vmatpush1.msra.mxu0 %v180
    %303 = vmatprep.subr.mxu0 0.0
    %304 = vmatpush1.msra.mxu0 %v179
    %305 = vmatprep.subr.mxu0 0.0
    %306 = vmatpush1.msra.mxu0 %v178
    %307 = vmatprep.subr.mxu0 0.0
    %308 = vmatpush1.msra.mxu0 %v177
    %309 = vmatprep.subr.mxu0 0.0
    %310 = vmatpush1.msra.mxu0 %v176
    %311 = vmatprep.subr.mxu0 0.0
    %312 = vmatpush1.msra.mxu0 %v175
    %313 = vmatprep.subr.mxu0 0.0
    %314 = vmatpush2.msra.mxu0 0.0
    %315 = vmatprep.subr.mxu0 0.0
    %316 = vmatpush2.msra.mxu0 0.0
    %317 = vmatprep.subr.mxu0 0.0
    %318 = vmatpush2.msra.mxu0 0.0
    %319 = vmatprep.subr.mxu0 0.0
    %320 = vmatpush2.msra.mxu0 0.0
    %321 = vmatprep.subr.mxu0 0.0
    %322 = vmatpush2.msra.mxu0 0.0
    %323 = vmatprep.subr.mxu0 0.0
    %324 = vmatpush2.msra.mxu0 0.0
    %325 = vmatprep.subr.mxu0 0.0
    %326 = vmatpush2.msra.mxu0 0.0
    %327 = vmatprep.subr.mxu0 0.0
    %328 = vmatpush2.msra.mxu0 0.0
    %329 = vmatprep.subr.mxu0 0.0
    %330 = vmatpush2.msra.mxu0 0.0
    %331 = vmatprep.subr.mxu0 0.0
    %332 = vmatpush2.msra.mxu0 0.0
    %333 = vmatprep.subr.mxu0 0.0
    %334 = vmatpush2.msra.mxu0 0.0
    %335 = vmatprep.subr.mxu0 0.0
    %336 = vmatpush2.msra.mxu0 0.0
    %337 = vmatprep.subr.mxu0 0.0
    %338 = vmatpush2.msra.mxu0 0.0
    %339 = vmatprep.subr.mxu0 0.0
    %340 = vmatpush2.msra.mxu0 0.0
    %341 = vmatprep.subr.mxu0 0.0
    %342 = vmatpush2.msra.mxu0 0.0
    %343 = vmatprep.subr.mxu0 0.0
    %344 = vmatpush2.msra.mxu0 0.0
    %345 = vmatprep.mubr.f32.mxu0 0.0
    %346 = vmatmul.mubr.f32.gmra.mxu0 %v278
    %v347 = vpop.f32.mrf.mxu0
    %v348 = vadd.f32 0.0, %v347
    %v349 = vpop.f32.mrf.mxu0
    %350 = vdwg.mxu0
    %v351 = vadd.f32 %v280, %v348
    %v352 = vadd.f32 %v351, %v268
    %v353 = vmax.f32 %v352, 0.0
    %vm354 = vcmp.gt.s32.totalorder %v37, 1
    %v355 = vsel %vm354, 1, 0
    %356 = vset.pattern.permute.xlu0 0
    %357 = vperm.xlu0 %356, %v355
    %v358 = vpop.permute.xlu0 %357
    %vm359 = vcmp.eq.s32.totalorder %v358, 1
    %v360 = vsel %vm359, %v353, %v278
    %v361 = vsel %vm359, %v353, 0.0
    %362 = vst [vmem:[#allocation3 + $0x8] sm:$0xff] %v361
    %v363 = vld [vmem:[#allocation2 + $0x10] sm:$0xff]
    %364 = vmatprep.subr.mxu0 0.0
    %365 = vmatpush1.msra.mxu0 %v190
    %366 = vmatprep.subr.mxu0 0.0
    %367 = vmatpush1.msra.mxu0 %v189
    %368 = vmatprep.subr.mxu0 0.0
    %369 = vmatpush1.msra.mxu0 %v188
    %370 = vmatprep.subr.mxu0 0.0
    %371 = vmatpush1.msra.mxu0 %v187
    %372 = vmatprep.subr.mxu0 0.0
    %373 = vmatpush1.msra.mxu0 %v186
    %374 = vmatprep.subr.mxu0 0.0
    %375 = vmatpush1.msra.mxu0 %v185
    %376 = vmatprep.subr.mxu0 0.0
    %377 = vmatpush1.msra.mxu0 %v184
    %378 = vmatprep.subr.mxu0 0.0
    %379 = vmatpush1.msra.mxu0 %v183
    %380 = vmatprep.subr.mxu0 0.0
    %381 = vmatpush1.msra.mxu0 %v182
    %382 = vmatprep.subr.mxu0 0.0
    %383 = vmatpush1.msra.mxu0 %v181
    %384 = vmatprep.subr.mxu0 0.0
    %385 = vmatpush1.msra.mxu0 %v180
    %386 = vmatprep.subr.mxu0 0.0
    %387 = vmatpush1.msra.mxu0 %v179
    %388 = vmatprep.subr.mxu0 0.0
    %389 = vmatpush1.msra.mxu0 %v178
    %390 = vmatprep.subr.mxu0 0.0
    %391 = vmatpush1.msra.mxu0 %v177
    %392 = vmatprep.subr.mxu0 0.0
    %393 = vmatpush1.msra.mxu0 %v176
    %394 = vmatprep.subr.mxu0 0.0
    %395 = vmatpush1.msra.mxu0 %v175
    %396 = vmatprep.subr.mxu0 0.0
    %397 = vmatpush2.msra.mxu0 0.0
    %398 = vmatprep.subr.mxu0 0.0
    %399 = vmatpush2.msra.mxu0 0.0
    %400 = vmatprep.subr.mxu0 0.0
    %401 = vmatpush2.msra.mxu0 0.0
    %402 = vmatprep.subr.mxu0 0.0
    %403 = vmatpush2.msra.mxu0 0.0
    %404 = vmatprep.subr.mxu0 0.0
    %405 = vmatpush2.msra.mxu0 0.0
    %406 = vmatprep.subr.mxu0 0.0
    %407 = vmatpush2.msra.mxu0 0.0
    %408 = vmatprep.subr.mxu0 0.0
    %409 = vmatpush2.msra.mxu0 0.0
    %410 = vmatprep.subr.mxu0 0.0
    %411 = vmatpush2.msra.mxu0 0.0
    %412 = vmatprep.subr.mxu0 0.0
    %413 = vmatpush2.msra.mxu0 0.0
    %414 = vmatprep.subr.mxu0 0.0
    %415 = vmatpush2.msra.mxu0 0.0
    %416 = vmatprep.subr.mxu0 0.0
    %417 = vmatpush2.msra.mxu0 0.0
    %418 = vmatprep.subr.mxu0 0.0
    %419 = vmatpush2.msra.mxu0 0.0
    %420 = vmatprep.subr.mxu0 0.0
    %421 = vmatpush2.msra.mxu0 0.0
    %422 = vmatprep.subr.mxu0 0.0
    %423 = vmatpush2.msra.mxu0 0.0
    %424 = vmatprep.subr.mxu0 0.0
    %425 = vmatpush2.msra.mxu0 0.0
    %426 = vmatprep.subr.mxu0 0.0
    %427 = vmatpush2.msra.mxu0 0.0
    %428 = vmatprep.mubr.f32.mxu0 0.0
    %429 = vmatmul.mubr.f32.gmra.mxu0 %v360
    %v430 = vpop.f32.mrf.mxu0
    %v431 = vadd.f32 0.0, %v430
    %v432 = vpop.f32.mrf.mxu0
    %433 = vdwg.mxu0
    %v434 = vadd.f32 %v363, %v431
    %v435 = vadd.f32 %v434, %v268
    %v436 = vmax.f32 %v435, 0.0
    %vm437 = vcmp.gt.s32.totalorder %v37, 2
    %v438 = vsel %vm437, 1, 0
    %439 = vset.pattern.permute.xlu0 0
    %440 = vperm.xlu0 %439, %v438
    %v441 = vpop.permute.xlu0 %440
    %vm442 = vcmp.eq.s32.totalorder %v441, 1
    %v443 = vsel %vm442, %v436, %v360
    %v444 = vsel %vm442, %v436, 0.0
    %445 = vst [vmem:[#allocation3 + $0x10] sm:$0xff] %v444
    %v446 = vld [vmem:[#allocation2 + $0x18] sm:$0xff]
    %447 = vmatprep.subr.mxu0 0.0
    %448 = vmatpush1.msra.mxu0 %v190
    %449 = vmatprep.subr.mxu0 0.0
    %450 = vmatpush1.msra.mxu0 %v189
    %451 = vmatprep.subr.mxu0 0.0
    %452 = vmatpush1.msra.mxu0 %v188
    %453 = vmatprep.subr.mxu0 0.0
    %454 = vmatpush1.msra.mxu0 %v187
    %455 = vmatprep.subr.mxu0 0.0
    %456 = vmatpush1.msra.mxu0 %v186
    %457 = vmatprep.subr.mxu0 0.0
    %458 = vmatpush1.msra.mxu0 %v185
    %459 = vmatprep.subr.mxu0 0.0
    %460 = vmatpush1.msra.mxu0 %v184
    %461 = vmatprep.subr.mxu0 0.0
    %462 = vmatpush1.msra.mxu0 %v183
    %463 = vmatprep.subr.mxu0 0.0
    %464 = vmatpush1.msra.mxu0 %v182
    %465 = vmatprep.subr.mxu0 0.0
    %466 = vmatpush1.msra.mxu0 %v181
    %467 = vmatprep.subr.mxu0 0.0
    %468 = vmatpush1.msra.mxu0 %v180
    %469 = vmatprep.subr.mxu0 0.0
    %470 = vmatpush1.msra.mxu0 %v179
    %471 = vmatprep.subr.mxu0 0.0
    %472 = vmatpush1.msra.mxu0 %v178
    %473 = vmatprep.subr.mxu0 0.0
    %474 = vmatpush1.msra.mxu0 %v177
    %475 = vmatprep.subr.mxu0 0.0
    %476 = vmatpush1.msra.mxu0 %v176
    %477 = vmatprep.subr.mxu0 0.0
    %478 = vmatpush1.msra.mxu0 %v175
    %479 = vmatprep.subr.mxu0 0.0
    %480 = vmatpush2.msra.mxu0 0.0
    %481 = vmatprep.subr.mxu0 0.0
    %482 = vmatpush2.msra.mxu0 0.0
    %483 = vmatprep.subr.mxu0 0.0
    %484 = vmatpush2.msra.mxu0 0.0
    %485 = vmatprep.subr.mxu0 0.0
    %486 = vmatpush2.msra.mxu0 0.0
    %487 = vmatprep.subr.mxu0 0.0
    %488 = vmatpush2.msra.mxu0 0.0
    %489 = vmatprep.subr.mxu0 0.0
    %490 = vmatpush2.msra.mxu0 0.0
    %491 = vmatprep.subr.mxu0 0.0
    %492 = vmatpush2.msra.mxu0 0.0
    %493 = vmatprep.subr.mxu0 0.0
    %494 = vmatpush2.msra.mxu0 0.0
    %495 = vmatprep.subr.mxu0 0.0
    %496 = vmatpush2.msra.mxu0 0.0
    %497 = vmatprep.subr.mxu0 0.0
    %498 = vmatpush2.msra.mxu0 0.0
    %499 = vmatprep.subr.mxu0 0.0
    %500 = vmatpush2.msra.mxu0 0.0
    %501 = vmatprep.subr.mxu0 0.0
    %502 = vmatpush2.msra.mxu0 0.0
    %503 = vmatprep.subr.mxu0 0.0
    %504 = vmatpush2.msra.mxu0 0.0
    %505 = vmatprep.subr.mxu0 0.0
    %506 = vmatpush2.msra.mxu0 0.0
    %507 = vmatprep.subr.mxu0 0.0
    %508 = vmatpush2.msra.mxu0 0.0
    %509 = vmatprep.subr.mxu0 0.0
    %510 = vmatpush2.msra.mxu0 0.0
    %511 = vmatprep.mubr.f32.mxu0 0.0
    %512 = vmatmul.mubr.f32.gmra.mxu0 %v443
    %v513 = vpop.f32.mrf.mxu0
    %v514 = vadd.f32 0.0, %v513
    %v515 = vpop.f32.mrf.mxu0
    %516 = vdwg.mxu0
    %v517 = vadd.f32 %v446, %v514
    %v518 = vadd.f32 %v517, %v268
    %v519 = vmax.f32 %v518, 0.0
    %vm520 = vcmp.gt.s32.totalorder %v37, 3
    %v521 = vsel %vm520, 1, 0
    %522 = vset.pattern.permute.xlu0 0
    %523 = vperm.xlu0 %522, %v521
    %v524 = vpop.permute.xlu0 %523
    %vm525 = vcmp.eq.s32.totalorder %v524, 1
    %v526 = vsel %vm525, %v519, %v443
    %v527 = vsel %vm525, %v519, 0.0
    %528 = vst [vmem:[#allocation3 + $0x18] sm:$0xff] %v527
    %v529 = vld [vmem:[#allocation2 + $0x20] sm:$0xff]
    %530 = vmatprep.subr.mxu0 0.0
    %531 = vmatpush1.msra.mxu0 %v190
    %532 = vmatprep.subr.mxu0 0.0
    %533 = vmatpush1.msra.mxu0 %v189
    %534 = vmatprep.subr.mxu0 0.0
    %535 = vmatpush1.msra.mxu0 %v188
    %536 = vmatprep.subr.mxu0 0.0
    %537 = vmatpush1.msra.mxu0 %v187
    %538 = vmatprep.subr.mxu0 0.0
    %539 = vmatpush1.msra.mxu0 %v186
    %540 = vmatprep.subr.mxu0 0.0
    %541 = vmatpush1.msra.mxu0 %v185
    %542 = vmatprep.subr.mxu0 0.0
    %543 = vmatpush1.msra.mxu0 %v184
    %544 = vmatprep.subr.mxu0 0.0
    %545 = vmatpush1.msra.mxu0 %v183
    %546 = vmatprep.subr.mxu0 0.0
    %547 = vmatpush1.msra.mxu0 %v182
    %548 = vmatprep.subr.mxu0 0.0
    %549 = vmatpush1.msra.mxu0 %v181
    %550 = vmatprep.subr.mxu0 0.0
    %551 = vmatpush1.msra.mxu0 %v180
    %552 = vmatprep.subr.mxu0 0.0
    %553 = vmatpush1.msra.mxu0 %v179
    %554 = vmatprep.subr.mxu0 0.0
    %555 = vmatpush1.msra.mxu0 %v178
    %556 = vmatprep.subr.mxu0 0.0
    %557 = vmatpush1.msra.mxu0 %v177
    %558 = vmatprep.subr.mxu0 0.0
    %559 = vmatpush1.msra.mxu0 %v176
    %560 = vmatprep.subr.mxu0 0.0
    %561 = vmatpush1.msra.mxu0 %v175
    %562 = vmatprep.subr.mxu0 0.0
    %563 = vmatpush2.msra.mxu0 0.0
    %564 = vmatprep.subr.mxu0 0.0
    %565 = vmatpush2.msra.mxu0 0.0
    %566 = vmatprep.subr.mxu0 0.0
    %567 = vmatpush2.msra.mxu0 0.0
    %568 = vmatprep.subr.mxu0 0.0
    %569 = vmatpush2.msra.mxu0 0.0
    %570 = vmatprep.subr.mxu0 0.0
    %571 = vmatpush2.msra.mxu0 0.0
    %572 = vmatprep.subr.mxu0 0.0
    %573 = vmatpush2.msra.mxu0 0.0
    %574 = vmatprep.subr.mxu0 0.0
    %575 = vmatpush2.msra.mxu0 0.0
    %576 = vmatprep.subr.mxu0 0.0
    %577 = vmatpush2.msra.mxu0 0.0
    %578 = vmatprep.subr.mxu0 0.0
    %579 = vmatpush2.msra.mxu0 0.0
    %580 = vmatprep.subr.mxu0 0.0
    %581 = vmatpush2.msra.mxu0 0.0
    %582 = vmatprep.subr.mxu0 0.0
    %583 = vmatpush2.msra.mxu0 0.0
    %584 = vmatprep.subr.mxu0 0.0
    %585 = vmatpush2.msra.mxu0 0.0
    %586 = vmatprep.subr.mxu0 0.0
    %587 = vmatpush2.msra.mxu0 0.0
    %588 = vmatprep.subr.mxu0 0.0
    %589 = vmatpush2.msra.mxu0 0.0
    %590 = vmatprep.subr.mxu0 0.0
    %591 = vmatpush2.msra.mxu0 0.0
    %592 = vmatprep.subr.mxu0 0.0
    %593 = vmatpush2.msra.mxu0 0.0
    %594 = vmatprep.mubr.f32.mxu0 0.0
    %595 = vmatmul.mubr.f32.gmra.mxu0 %v526
    %v596 = vpop.f32.mrf.mxu0
    %v597 = vadd.f32 0.0, %v596
    %v598 = vpop.f32.mrf.mxu0
    %599 = vdwg.mxu0
    %v600 = vadd.f32 %v529, %v597
    %v601 = vadd.f32 %v600, %v268
    %v602 = vmax.f32 %v601, 0.0
    %vm603 = vcmp.gt.s32.totalorder %v37, 4
    %v604 = vsel %vm603, 1, 0
    %605 = vset.pattern.permute.xlu0 0
    %606 = vperm.xlu0 %605, %v604
    %v607 = vpop.permute.xlu0 %606
    %vm608 = vcmp.eq.s32.totalorder %v607, 1
    %v609 = vsel %vm608, %v602, %v526
    %v610 = vsel %vm608, %v602, 0.0
    %611 = vst [vmem:[#allocation3 + $0x20] sm:$0xff] %v610
    %v612 = vld [vmem:[#allocation2 + $0x28] sm:$0xff]
    %613 = vmatprep.subr.mxu0 0.0
    %614 = vmatpush1.msra.mxu0 %v190
    %615 = vmatprep.subr.mxu0 0.0
    %616 = vmatpush1.msra.mxu0 %v189
    %617 = vmatprep.subr.mxu0 0.0
    %618 = vmatpush1.msra.mxu0 %v188
    %619 = vmatprep.subr.mxu0 0.0
    %620 = vmatpush1.msra.mxu0 %v187
    %621 = vmatprep.subr.mxu0 0.0
    %622 = vmatpush1.msra.mxu0 %v186
    %623 = vmatprep.subr.mxu0 0.0
    %624 = vmatpush1.msra.mxu0 %v185
    %625 = vmatprep.subr.mxu0 0.0
    %626 = vmatpush1.msra.mxu0 %v184
    %627 = vmatprep.subr.mxu0 0.0
    %628 = vmatpush1.msra.mxu0 %v183
    %629 = vmatprep.subr.mxu0 0.0
    %630 = vmatpush1.msra.mxu0 %v182
    %631 = vmatprep.subr.mxu0 0.0
    %632 = vmatpush1.msra.mxu0 %v181
    %633 = vmatprep.subr.mxu0 0.0
    %634 = vmatpush1.msra.mxu0 %v180
    %635 = vmatprep.subr.mxu0 0.0
    %636 = vmatpush1.msra.mxu0 %v179
    %637 = vmatprep.subr.mxu0 0.0
    %638 = vmatpush1.msra.mxu0 %v178
    %639 = vmatprep.subr.mxu0 0.0
    %640 = vmatpush1.msra.mxu0 %v177
    %641 = vmatprep.subr.mxu0 0.0
    %642 = vmatpush1.msra.mxu0 %v176
    %643 = vmatprep.subr.mxu0 0.0
    %644 = vmatpush1.msra.mxu0 %v175
    %645 = vmatprep.subr.mxu0 0.0
    %646 = vmatpush2.msra.mxu0 0.0
    %647 = vmatprep.subr.mxu0 0.0
    %648 = vmatpush2.msra.mxu0 0.0
    %649 = vmatprep.subr.mxu0 0.0
    %650 = vmatpush2.msra.mxu0 0.0
    %651 = vmatprep.subr.mxu0 0.0
    %652 = vmatpush2.msra.mxu0 0.0
    %653 = vmatprep.subr.mxu0 0.0
    %654 = vmatpush2.msra.mxu0 0.0
    %655 = vmatprep.subr.mxu0 0.0
    %656 = vmatpush2.msra.mxu0 0.0
    %657 = vmatprep.subr.mxu0 0.0
    %658 = vmatpush2.msra.mxu0 0.0
    %659 = vmatprep.subr.mxu0 0.0
    %660 = vmatpush2.msra.mxu0 0.0
    %661 = vmatprep.subr.mxu0 0.0
    %662 = vmatpush2.msra.mxu0 0.0
    %663 = vmatprep.subr.mxu0 0.0
    %664 = vmatpush2.msra.mxu0 0.0
    %665 = vmatprep.subr.mxu0 0.0
    %666 = vmatpush2.msra.mxu0 0.0
    %667 = vmatprep.subr.mxu0 0.0
    %668 = vmatpush2.msra.mxu0 0.0
    %669 = vmatprep.subr.mxu0 0.0
    %670 = vmatpush2.msra.mxu0 0.0
    %671 = vmatprep.subr.mxu0 0.0
    %672 = vmatpush2.msra.mxu0 0.0
    %673 = vmatprep.subr.mxu0 0.0
    %674 = vmatpush2.msra.mxu0 0.0
    %675 = vmatprep.subr.mxu0 0.0
    %676 = vmatpush2.msra.mxu0 0.0
    %677 = vmatprep.mubr.f32.mxu0 0.0
    %678 = vmatmul.mubr.f32.gmra.mxu0 %v609
    %v679 = vpop.f32.mrf.mxu0
    %v680 = vadd.f32 0.0, %v679
    %v681 = vpop.f32.mrf.mxu0
    %682 = vdwg.mxu0
    %v683 = vadd.f32 %v612, %v680
    %v684 = vadd.f32 %v683, %v268
    %v685 = vmax.f32 %v684, 0.0
    %vm686 = vcmp.gt.s32.totalorder %v37, 5
    %v687 = vsel %vm686, 1, 0
    %688 = vset.pattern.permute.xlu0 0
    %689 = vperm.xlu0 %688, %v687
    %v690 = vpop.permute.xlu0 %689
    %vm691 = vcmp.eq.s32.totalorder %v690, 1
    %v692 = vsel %vm691, %v685, %v609
    %v693 = vsel %vm691, %v685, 0.0
    %694 = vst [vmem:[#allocation3 + $0x28] sm:$0xff] %v693
    %v695 = vld [vmem:[#allocation2 + $0x30] sm:$0xff]
    %696 = vmatprep.subr.mxu0 0.0
    %697 = vmatpush1.msra.mxu0 %v190
    %698 = vmatprep.subr.mxu0 0.0
    %699 = vmatpush1.msra.mxu0 %v189
    %700 = vmatprep.subr.mxu0 0.0
    %701 = vmatpush1.msra.mxu0 %v188
    %702 = vmatprep.subr.mxu0 0.0
    %703 = vmatpush1.msra.mxu0 %v187
    %704 = vmatprep.subr.mxu0 0.0
    %705 = vmatpush1.msra.mxu0 %v186
    %706 = vmatprep.subr.mxu0 0.0
    %707 = vmatpush1.msra.mxu0 %v185
    %708 = vmatprep.subr.mxu0 0.0
    %709 = vmatpush1.msra.mxu0 %v184
    %710 = vmatprep.subr.mxu0 0.0
    %711 = vmatpush1.msra.mxu0 %v183
    %712 = vmatprep.subr.mxu0 0.0
    %713 = vmatpush1.msra.mxu0 %v182
    %714 = vmatprep.subr.mxu0 0.0
    %715 = vmatpush1.msra.mxu0 %v181
    %716 = vmatprep.subr.mxu0 0.0
    %717 = vmatpush1.msra.mxu0 %v180
    %718 = vmatprep.subr.mxu0 0.0
    %719 = vmatpush1.msra.mxu0 %v179
    %720 = vmatprep.subr.mxu0 0.0
    %721 = vmatpush1.msra.mxu0 %v178
    %722 = vmatprep.subr.mxu0 0.0
    %723 = vmatpush1.msra.mxu0 %v177
    %724 = vmatprep.subr.mxu0 0.0
    %725 = vmatpush1.msra.mxu0 %v176
    %726 = vmatprep.subr.mxu0 0.0
    %727 = vmatpush1.msra.mxu0 %v175
    %728 = vmatprep.subr.mxu0 0.0
    %729 = vmatpush2.msra.mxu0 0.0
    %730 = vmatprep.subr.mxu0 0.0
    %731 = vmatpush2.msra.mxu0 0.0
    %732 = vmatprep.subr.mxu0 0.0
    %733 = vmatpush2.msra.mxu0 0.0
    %734 = vmatprep.subr.mxu0 0.0
    %735 = vmatpush2.msra.mxu0 0.0
    %736 = vmatprep.subr.mxu0 0.0
    %737 = vmatpush2.msra.mxu0 0.0
    %738 = vmatprep.subr.mxu0 0.0
    %739 = vmatpush2.msra.mxu0 0.0
    %740 = vmatprep.subr.mxu0 0.0
    %741 = vmatpush2.msra.mxu0 0.0
    %742 = vmatprep.subr.mxu0 0.0
    %743 = vmatpush2.msra.mxu0 0.0
    %744 = vmatprep.subr.mxu0 0.0
    %745 = vmatpush2.msra.mxu0 0.0
    %746 = vmatprep.subr.mxu0 0.0
    %747 = vmatpush2.msra.mxu0 0.0
    %748 = vmatprep.subr.mxu0 0.0
    %749 = vmatpush2.msra.mxu0 0.0
    %750 = vmatprep.subr.mxu0 0.0
    %751 = vmatpush2.msra.mxu0 0.0
    %752 = vmatprep.subr.mxu0 0.0
    %753 = vmatpush2.msra.mxu0 0.0
    %754 = vmatprep.subr.mxu0 0.0
    %755 = vmatpush2.msra.mxu0 0.0
    %756 = vmatprep.subr.mxu0 0.0
    %757 = vmatpush2.msra.mxu0 0.0
    %758 = vmatprep.subr.mxu0 0.0
    %759 = vmatpush2.msra.mxu0 0.0
    %760 = vmatprep.mubr.f32.mxu0 0.0
    %761 = vmatmul.mubr.f32.gmra.mxu0 %v692
    %v762 = vpop.f32.mrf.mxu0
    %v763 = vadd.f32 0.0, %v762
    %v764 = vpop.f32.mrf.mxu0
    %765 = vdwg.mxu0
    %v766 = vadd.f32 %v695, %v763
    %v767 = vadd.f32 %v766, %v268
    %v768 = vmax.f32 %v767, 0.0
    %vm769 = vcmp.gt.s32.totalorder %v37, 6
    %v770 = vsel %vm769, 1, 0
    %771 = vset.pattern.permute.xlu0 0
    %772 = vperm.xlu0 %771, %v770
    %v773 = vpop.permute.xlu0 %772
    %vm774 = vcmp.eq.s32.totalorder %v773, 1
    %v775 = vsel %vm774, %v768, %v692
    %v776 = vsel %vm774, %v768, 0.0
    %777 = vst [vmem:[#allocation3 + $0x30] sm:$0xff] %v776
    %v778 = vld [vmem:[#allocation2 + $0x38] sm:$0xff]
    %779 = vmatprep.subr.mxu0 0.0
    %780 = vmatpush1.msra.mxu0 %v190
    %781 = vmatprep.subr.mxu0 0.0
    %782 = vmatpush1.msra.mxu0 %v189
    %783 = vmatprep.subr.mxu0 0.0
    %784 = vmatpush1.msra.mxu0 %v188
    %785 = vmatprep.subr.mxu0 0.0
    %786 = vmatpush1.msra.mxu0 %v187
    %787 = vmatprep.subr.mxu0 0.0
    %788 = vmatpush1.msra.mxu0 %v186
    %789 = vmatprep.subr.mxu0 0.0
    %790 = vmatpush1.msra.mxu0 %v185
    %791 = vmatprep.subr.mxu0 0.0
    %792 = vmatpush1.msra.mxu0 %v184
    %793 = vmatprep.subr.mxu0 0.0
    %794 = vmatpush1.msra.mxu0 %v183
    %795 = vmatprep.subr.mxu0 0.0
    %796 = vmatpush1.msra.mxu0 %v182
    %797 = vmatprep.subr.mxu0 0.0
    %798 = vmatpush1.msra.mxu0 %v181
    %799 = vmatprep.subr.mxu0 0.0
    %800 = vmatpush1.msra.mxu0 %v180
    %801 = vmatprep.subr.mxu0 0.0
    %802 = vmatpush1.msra.mxu0 %v179
    %803 = vmatprep.subr.mxu0 0.0
    %804 = vmatpush1.msra.mxu0 %v178
    %805 = vmatprep.subr.mxu0 0.0
    %806 = vmatpush1.msra.mxu0 %v177
    %807 = vmatprep.subr.mxu0 0.0
    %808 = vmatpush1.msra.mxu0 %v176
    %809 = vmatprep.subr.mxu0 0.0
    %810 = vmatpush1.msra.mxu0 %v175
    %811 = vmatprep.subr.mxu0 0.0
    %812 = vmatpush2.msra.mxu0 0.0
    %813 = vmatprep.subr.mxu0 0.0
    %814 = vmatpush2.msra.mxu0 0.0
    %815 = vmatprep.subr.mxu0 0.0
    %816 = vmatpush2.msra.mxu0 0.0
    %817 = vmatprep.subr.mxu0 0.0
    %818 = vmatpush2.msra.mxu0 0.0
    %819 = vmatprep.subr.mxu0 0.0
    %820 = vmatpush2.msra.mxu0 0.0
    %821 = vmatprep.subr.mxu0 0.0
    %822 = vmatpush2.msra.mxu0 0.0
    %823 = vmatprep.subr.mxu0 0.0
    %824 = vmatpush2.msra.mxu0 0.0
    %825 = vmatprep.subr.mxu0 0.0
    %826 = vmatpush2.msra.mxu0 0.0
    %827 = vmatprep.subr.mxu0 0.0
    %828 = vmatpush2.msra.mxu0 0.0
    %829 = vmatprep.subr.mxu0 0.0
    %830 = vmatpush2.msra.mxu0 0.0
    %831 = vmatprep.subr.mxu0 0.0
    %832 = vmatpush2.msra.mxu0 0.0
    %833 = vmatprep.subr.mxu0 0.0
    %834 = vmatpush2.msra.mxu0 0.0
    %835 = vmatprep.subr.mxu0 0.0
    %836 = vmatpush2.msra.mxu0 0.0
    %837 = vmatprep.subr.mxu0 0.0
    %838 = vmatpush2.msra.mxu0 0.0
    %839 = vmatprep.subr.mxu0 0.0
    %840 = vmatpush2.msra.mxu0 0.0
    %841 = vmatprep.subr.mxu0 0.0
    %842 = vmatpush2.msra.mxu0 0.0
    %843 = vmatprep.mubr.f32.mxu0 0.0
    %844 = vmatmul.mubr.f32.gmra.mxu0 %v775
    %v845 = vpop.f32.mrf.mxu0
    %v846 = vadd.f32 0.0, %v845
    %v847 = vpop.f32.mrf.mxu0
    %848 = vdwg.mxu0
    %v849 = vadd.f32 %v778, %v846
    %v850 = vadd.f32 %v849, %v268
    %v851 = vmax.f32 %v850, 0.0
    %vm852 = vcmp.gt.s32.totalorder %v37, 7
    %v853 = vsel %vm852, 1, 0
    %854 = vset.pattern.permute.xlu0 0
    %855 = vperm.xlu0 %854, %v853
    %v856 = vpop.permute.xlu0 %855
    %vm857 = vcmp.eq.s32.totalorder %v856, 1
    %v858 = vsel %vm857, %v851, 0.0
    %859 = vst [vmem:[#allocation3 + $0x38] sm:$0xff] %v858
    %v860 = vld [vmem:[#allocation4] sm:$0xff]
    %v861 = vld [vmem:[#allocation4 + $0x8] sm:$0xff]
    %v862 = vld [vmem:[#allocation4 + $0x10] sm:$0xff]
    %v863 = vld [vmem:[#allocation4 + $0x18] sm:$0xff]
    %v864 = vld [vmem:[#allocation4 + $0x20] sm:$0xff]
    %v865 = vld [vmem:[#allocation4 + $0x28] sm:$0xff]
    %v866 = vld [vmem:[#allocation4 + $0x30] sm:$0xff]
    %v867 = vld [vmem:[#allocation4 + $0x38] sm:$0xff]
    %v868 = vld [vmem:[#allocation4 + $0x40] sm:$0xff]
    %v869 = vld [vmem:[#allocation4 + $0x48] sm:$0xff]
    %v870 = vld [vmem:[#allocation4 + $0x50] sm:$0xff]
    %v871 = vld [vmem:[#allocation4 + $0x58] sm:$0xff]
    %v872 = vld [vmem:[#allocation4 + $0x60] sm:$0xff]
    %v873 = vld [vmem:[#allocation4 + $0x68] sm:$0xff]
    %v874 = vld [vmem:[#allocation4 + $0x70] sm:$0xff]
    %v875 = vld [vmem:[#allocation4 + $0x78] sm:$0xff]
    %v876 = vld [vmem:[#allocation3] sm:$0xff]
    %v877 = vld [vmem:[#allocation3 + $0x8] sm:$0xff]
    %v878 = vld [vmem:[#allocation3 + $0x10] sm:$0xff]
    %v879 = vld [vmem:[#allocation3 + $0x18] sm:$0xff]
    %v880 = vld [vmem:[#allocation3 + $0x20] sm:$0xff]
    %v881 = vld [vmem:[#allocation3 + $0x28] sm:$0xff]
    %v882 = vld [vmem:[#allocation3 + $0x30] sm:$0xff]
    %v883 = vld [vmem:[#allocation3 + $0x38] sm:$0xff]
    %884 = vmatprep.subr.mxu0 0.0
    %885 = vmatpush1.msra.mxu0 %v875
    %886 = vmatprep.subr.mxu0 0.0
    %887 = vmatpush1.msra.mxu0 %v874
    %888 = vmatprep.subr.mxu0 0.0
    %889 = vmatpush1.msra.mxu0 %v873
    %890 = vmatprep.subr.mxu0 0.0
    %891 = vmatpush1.msra.mxu0 %v872
    %892 = vmatprep.subr.mxu0 0.0
    %893 = vmatpush1.msra.mxu0 %v871
    %894 = vmatprep.subr.mxu0 0.0
    %895 = vmatpush1.msra.mxu0 %v870
    %896 = vmatprep.subr.mxu0 0.0
    %897 = vmatpush1.msra.mxu0 %v869
    %898 = vmatprep.subr.mxu0 0.0
    %899 = vmatpush1.msra.mxu0 %v868
    %900 = vmatprep.subr.mxu0 0.0
    %901 = vmatpush1.msra.mxu0 %v867
    %902 = vmatprep.subr.mxu0 0.0
    %903 = vmatpush1.msra.mxu0 %v866
    %904 = vmatprep.subr.mxu0 0.0
    %905 = vmatpush1.msra.mxu0 %v865
    %906 = vmatprep.subr.mxu0 0.0
    %907 = vmatpush1.msra.mxu0 %v864
    %908 = vmatprep.subr.mxu0 0.0
    %909 = vmatpush1.msra.mxu0 %v863
    %910 = vmatprep.subr.mxu0 0.0
    %911 = vmatpush1.msra.mxu0 %v862
    %912 = vmatprep.subr.mxu0 0.0
    %913 = vmatpush1.msra.mxu0 %v861
    %914 = vmatprep.subr.mxu0 0.0
    %915 = vmatpush1.msra.mxu0 %v860
    %916 = vmatprep.subr.mxu0 0.0
    %917 = vmatpush2.msra.mxu0 0.0
    %918 = vmatprep.subr.mxu0 0.0
    %919 = vmatpush2.msra.mxu0 0.0
    %920 = vmatprep.subr.mxu0 0.0
    %921 = vmatpush2.msra.mxu0 0.0
    %922 = vmatprep.subr.mxu0 0.0
    %923 = vmatpush2.msra.mxu0 0.0
    %924 = vmatprep.subr.mxu0 0.0
    %925 = vmatpush2.msra.mxu0 0.0
    %926 = vmatprep.subr.mxu0 0.0
    %927 = vmatpush2.msra.mxu0 0.0
    %928 = vmatprep.subr.mxu0 0.0
    %929 = vmatpush2.msra.mxu0 0.0
    %930 = vmatprep.subr.mxu0 0.0
    %931 = vmatpush2.msra.mxu0 0.0
    %932 = vmatprep.subr.mxu0 0.0
    %933 = vmatpush2.msra.mxu0 0.0
    %934 = vmatprep.subr.mxu0 0.0
    %935 = vmatpush2.msra.mxu0 0.0
    %936 = vmatprep.subr.mxu0 0.0
    %937 = vmatpush2.msra.mxu0 0.0
    %938 = vmatprep.subr.mxu0 0.0
    %939 = vmatpush2.msra.mxu0 0.0
    %940 = vmatprep.subr.mxu0 0.0
    %941 = vmatpush2.msra.mxu0 0.0
    %942 = vmatprep.subr.mxu0 0.0
    %943 = vmatpush2.msra.mxu0 0.0
    %944 = vmatprep.subr.mxu0 0.0
    %945 = vmatpush2.msra.mxu0 0.0
    %946 = vmatprep.subr.mxu0 0.0
    %947 = vmatpush2.msra.mxu0 0.0
    %948 = vmatprep.mubr.f32.mxu0 0.0
    %949 = vmatmul.mubr.f32.gmra.mxu0 %v876
    %v950 = vpop.f32.mrf.mxu0
    %v951 = vadd.f32 0.0, %v950
    %v952 = vpop.f32.mrf.mxu0
    %953 = vmatprep.mubr.f32.mxu0 0.0
    %954 = vmatmul.mubr.f32.gmra.mxu0 %v877
    %v955 = vpop.f32.mrf.mxu0
    %v956 = vadd.f32 0.0, %v955
    %v957 = vpop.f32.mrf.mxu0
    %958 = vmatprep.mubr.f32.mxu0 0.0
    %959 = vmatmul.mubr.f32.gmra.mxu0 %v878
    %v960 = vpop.f32.mrf.mxu0
    %v961 = vadd.f32 0.0, %v960
    %v962 = vpop.f32.mrf.mxu0
    %963 = vmatprep.mubr.f32.mxu0 0.0
    %964 = vmatmul.mubr.f32.gmra.mxu0 %v879
    %v965 = vpop.f32.mrf.mxu0
    %v966 = vadd.f32 0.0, %v965
    %v967 = vpop.f32.mrf.mxu0
    %968 = vmatprep.mubr.f32.mxu0 0.0
    %969 = vmatmul.mubr.f32.gmra.mxu0 %v880
    %v970 = vpop.f32.mrf.mxu0
    %v971 = vadd.f32 0.0, %v970
    %v972 = vpop.f32.mrf.mxu0
    %973 = vmatprep.mubr.f32.mxu0 0.0
    %974 = vmatmul.mubr.f32.gmra.mxu0 %v881
    %v975 = vpop.f32.mrf.mxu0
    %v976 = vadd.f32 0.0, %v975
    %v977 = vpop.f32.mrf.mxu0
    %978 = vmatprep.mubr.f32.mxu0 0.0
    %979 = vmatmul.mubr.f32.gmra.mxu0 %v882
    %v980 = vpop.f32.mrf.mxu0
    %v981 = vadd.f32 0.0, %v980
    %v982 = vpop.f32.mrf.mxu0
    %983 = vmatprep.mubr.f32.mxu0 0.0
    %984 = vmatmul.mubr.f32.gmra.mxu0 %v883
    %v985 = vpop.f32.mrf.mxu0
    %v986 = vadd.f32 0.0, %v985
    %v987 = vpop.f32.mrf.mxu0
    %988 = vdwg.mxu0
    %989 = vst [vmem:[#allocation2] sm:$0xff] %v951
    %990 = vst [vmem:[#allocation2 + $0x8] sm:$0xff] %v956
    %991 = vst [vmem:[#allocation2 + $0x10] sm:$0xff] %v961
    %992 = vst [vmem:[#allocation2 + $0x18] sm:$0xff] %v966
    %993 = vst [vmem:[#allocation2 + $0x20] sm:$0xff] %v971
    %994 = vst [vmem:[#allocation2 + $0x28] sm:$0xff] %v976
    %995 = vst [vmem:[#allocation2 + $0x30] sm:$0xff] %v981
    %996 = vst [vmem:[#allocation2 + $0x38] sm:$0xff] %v986
    %s997 = scalar_lea.vmem %s4, 128
    %v998 = vld [vmem:[%s997] sm:$0xff]
    %v999 = vld [vmem:[%s997 + $0x8] sm:$0xff]
    %v1000 = vld [vmem:[%s997 + $0x10] sm:$0xff]
    %v1001 = vld [vmem:[%s997 + $0x18] sm:$0xff]
    %v1002 = vld [vmem:[%s997 + $0x20] sm:$0xff]
    %v1003 = vld [vmem:[%s997 + $0x28] sm:$0xff]
    %v1004 = vld [vmem:[%s997 + $0x30] sm:$0xff]
    %v1005 = vld [vmem:[%s997 + $0x38] sm:$0xff]
    %v1006 = vld [vmem:[%s997 + $0x40] sm:$0xff]
    %v1007 = vld [vmem:[%s997 + $0x48] sm:$0xff]
    %v1008 = vld [vmem:[%s997 + $0x50] sm:$0xff]
    %v1009 = vld [vmem:[%s997 + $0x58] sm:$0xff]
    %v1010 = vld [vmem:[%s997 + $0x60] sm:$0xff]
    %v1011 = vld [vmem:[%s997 + $0x68] sm:$0xff]
    %v1012 = vld [vmem:[%s997 + $0x70] sm:$0xff]
    %v1013 = vld [vmem:[%s997 + $0x78] sm:$0xff]
    %s1014 = scalar_lea.vmem %s5, 1
    %v1015 = vld [vmem:[%s1014] sm:$0x1]
    %v1016 = vld [vmem:[#allocation2] sm:$0xff]
    %1017 = vmatprep.subr.mxu0 0.0
    %1018 = vmatpush1.msra.mxu0 %v1013
    %1019 = vmatprep.subr.mxu0 0.0
    %1020 = vmatpush1.msra.mxu0 %v1012
    %1021 = vmatprep.subr.mxu0 0.0
    %1022 = vmatpush1.msra.mxu0 %v1011
    %1023 = vmatprep.subr.mxu0 0.0
    %1024 = vmatpush1.msra.mxu0 %v1010
    %1025 = vmatprep.subr.mxu0 0.0
    %1026 = vmatpush1.msra.mxu0 %v1009
    %1027 = vmatprep.subr.mxu0 0.0
    %1028 = vmatpush1.msra.mxu0 %v1008
    %1029 = vmatprep.subr.mxu0 0.0
    %1030 = vmatpush1.msra.mxu0 %v1007
    %1031 = vmatprep.subr.mxu0 0.0
    %1032 = vmatpush1.msra.mxu0 %v1006
    %1033 = vmatprep.subr.mxu0 0.0
    %1034 = vmatpush1.msra.mxu0 %v1005
    %1035 = vmatprep.subr.mxu0 0.0
    %1036 = vmatpush1.msra.mxu0 %v1004
    %1037 = vmatprep.subr.mxu0 0.0
    %1038 = vmatpush1.msra.mxu0 %v1003
    %1039 = vmatprep.subr.mxu0 0.0
    %1040 = vmatpush1.msra.mxu0 %v1002
    %1041 = vmatprep.subr.mxu0 0.0
    %1042 = vmatpush1.msra.mxu0 %v1001
    %1043 = vmatprep.subr.mxu0 0.0
    %1044 = vmatpush1.msra.mxu0 %v1000
    %1045 = vmatprep.subr.mxu0 0.0
    %1046 = vmatpush1.msra.mxu0 %v999
    %1047 = vmatprep.subr.mxu0 0.0
    %1048 = vmatpush1.msra.mxu0 %v998
    %1049 = vmatprep.subr.mxu0 0.0
    %1050 = vmatpush2.msra.mxu0 0.0
    %1051 = vmatprep.subr.mxu0 0.0
    %1052 = vmatpush2.msra.mxu0 0.0
    %1053 = vmatprep.subr.mxu0 0.0
    %1054 = vmatpush2.msra.mxu0 0.0
    %1055 = vmatprep.subr.mxu0 0.0
    %1056 = vmatpush2.msra.mxu0 0.0
    %1057 = vmatprep.subr.mxu0 0.0
    %1058 = vmatpush2.msra.mxu0 0.0
    %1059 = vmatprep.subr.mxu0 0.0
    %1060 = vmatpush2.msra.mxu0 0.0
    %1061 = vmatprep.subr.mxu0 0.0
    %1062 = vmatpush2.msra.mxu0 0.0
    %1063 = vmatprep.subr.mxu0 0.0
    %1064 = vmatpush2.msra.mxu0 0.0
    %1065 = vmatprep.subr.mxu0 0.0
    %1066 = vmatpush2.msra.mxu0 0.0
    %1067 = vmatprep.subr.mxu0 0.0
    %1068 = vmatpush2.msra.mxu0 0.0
    %1069 = vmatprep.subr.mxu0 0.0
    %1070 = vmatpush2.msra.mxu0 0.0
    %1071 = vmatprep.subr.mxu0 0.0
    %1072 = vmatpush2.msra.mxu0 0.0
    %1073 = vmatprep.subr.mxu0 0.0
    %1074 = vmatpush2.msra.mxu0 0.0
    %1075 = vmatprep.subr.mxu0 0.0
    %1076 = vmatpush2.msra.mxu0 0.0
    %1077 = vmatprep.subr.mxu0 0.0
    %1078 = vmatpush2.msra.mxu0 0.0
    %1079 = vmatprep.subr.mxu0 0.0
    %1080 = vmatpush2.msra.mxu0 0.0
    %1081 = vmatprep.mubr.f32.mxu0 0.0
    %1082 = vmatmul.mubr.f32.gmra.mxu0 0.0
    %v1083 = vpop.f32.mrf.mxu0
    %v1084 = vadd.f32 0.0, %v1083
    %v1085 = vpop.f32.mrf.mxu0
    %1086 = vdwg.mxu0
    %v1087 = vadd.f32 %v1016, %v1084
    %v1089 = vlaneseq
    %v1090 = vshrl.u32 %v1089, 7
    %v1091 = vsub.s32 0, %v1090
    %v1092 = vrot.slane %v1015, %v1091
    %v1094 = vadd.f32 %v1087, %v1092
    %v1095 = vmax.f32 %v1094, 0.0
    %v1096 = vsel %vm277, %v1095, 0.0
    %1097 = vst [vmem:[%s6] sm:$0xff] %v1096
    %v1098 = vld [vmem:[#allocation2 + $0x8] sm:$0xff]
    %1099 = vmatprep.subr.mxu0 0.0
    %1100 = vmatpush1.msra.mxu0 %v1013
    %1101 = vmatprep.subr.mxu0 0.0
    %1102 = vmatpush1.msra.mxu0 %v1012
    %1103 = vmatprep.subr.mxu0 0.0
    %1104 = vmatpush1.msra.mxu0 %v1011
    %1105 = vmatprep.subr.mxu0 0.0
    %1106 = vmatpush1.msra.mxu0 %v1010
    %1107 = vmatprep.subr.mxu0 0.0
    %1108 = vmatpush1.msra.mxu0 %v1009
    %1109 = vmatprep.subr.mxu0 0.0
    %1110 = vmatpush1.msra.mxu0 %v1008
    %1111 = vmatprep.subr.mxu0 0.0
    %1112 = vmatpush1.msra.mxu0 %v1007
    %1113 = vmatprep.subr.mxu0 0.0
    %1114 = vmatpush1.msra.mxu0 %v1006
    %1115 = vmatprep.subr.mxu0 0.0
    %1116 = vmatpush1.msra.mxu0 %v1005
    %1117 = vmatprep.subr.mxu0 0.0
    %1118 = vmatpush1.msra.mxu0 %v1004
    %1119 = vmatprep.subr.mxu0 0.0
    %1120 = vmatpush1.msra.mxu0 %v1003
    %1121 = vmatprep.subr.mxu0 0.0
    %1122 = vmatpush1.msra.mxu0 %v1002
    %1123 = vmatprep.subr.mxu0 0.0
    %1124 = vmatpush1.msra.mxu0 %v1001
    %1125 = vmatprep.subr.mxu0 0.0
    %1126 = vmatpush1.msra.mxu0 %v1000
    %1127 = vmatprep.subr.mxu0 0.0
    %1128 = vmatpush1.msra.mxu0 %v999
    %1129 = vmatprep.subr.mxu0 0.0
    %1130 = vmatpush1.msra.mxu0 %v998
    %1131 = vmatprep.subr.mxu0 0.0
    %1132 = vmatpush2.msra.mxu0 0.0
    %1133 = vmatprep.subr.mxu0 0.0
    %1134 = vmatpush2.msra.mxu0 0.0
    %1135 = vmatprep.subr.mxu0 0.0
    %1136 = vmatpush2.msra.mxu0 0.0
    %1137 = vmatprep.subr.mxu0 0.0
    %1138 = vmatpush2.msra.mxu0 0.0
    %1139 = vmatprep.subr.mxu0 0.0
    %1140 = vmatpush2.msra.mxu0 0.0
    %1141 = vmatprep.subr.mxu0 0.0
    %1142 = vmatpush2.msra.mxu0 0.0
    %1143 = vmatprep.subr.mxu0 0.0
    %1144 = vmatpush2.msra.mxu0 0.0
    %1145 = vmatprep.subr.mxu0 0.0
    %1146 = vmatpush2.msra.mxu0 0.0
    %1147 = vmatprep.subr.mxu0 0.0
    %1148 = vmatpush2.msra.mxu0 0.0
    %1149 = vmatprep.subr.mxu0 0.0
    %1150 = vmatpush2.msra.mxu0 0.0
    %1151 = vmatprep.subr.mxu0 0.0
    %1152 = vmatpush2.msra.mxu0 0.0
    %1153 = vmatprep.subr.mxu0 0.0
    %1154 = vmatpush2.msra.mxu0 0.0
    %1155 = vmatprep.subr.mxu0 0.0
    %1156 = vmatpush2.msra.mxu0 0.0
    %1157 = vmatprep.subr.mxu0 0.0
    %1158 = vmatpush2.msra.mxu0 0.0
    %1159 = vmatprep.subr.mxu0 0.0
    %1160 = vmatpush2.msra.mxu0 0.0
    %1161 = vmatprep.subr.mxu0 0.0
    %1162 = vmatpush2.msra.mxu0 0.0
    %1163 = vmatprep.mubr.f32.mxu0 0.0
    %1164 = vmatmul.mubr.f32.gmra.mxu0 %v1096
    %v1165 = vpop.f32.mrf.mxu0
    %v1166 = vadd.f32 0.0, %v1165
    %v1167 = vpop.f32.mrf.mxu0
    %1168 = vdwg.mxu0
    %v1169 = vadd.f32 %v1098, %v1166
    %v1170 = vadd.f32 %v1169, %v1092
    %v1171 = vmax.f32 %v1170, 0.0
    %v1172 = vsel %vm359, %v1171, %v1096
    %v1173 = vsel %vm359, %v1171, 0.0
    %1174 = vst [vmem:[%s6 + $0x8] sm:$0xff] %v1173
    %v1175 = vld [vmem:[#allocation2 + $0x10] sm:$0xff]
    %1176 = vmatprep.subr.mxu0 0.0
    %1177 = vmatpush1.msra.mxu0 %v1013
    %1178 = vmatprep.subr.mxu0 0.0
    %1179 = vmatpush1.msra.mxu0 %v1012
    %1180 = vmatprep.subr.mxu0 0.0
    %1181 = vmatpush1.msra.mxu0 %v1011
    %1182 = vmatprep.subr.mxu0 0.0
    %1183 = vmatpush1.msra.mxu0 %v1010
    %1184 = vmatprep.subr.mxu0 0.0
    %1185 = vmatpush1.msra.mxu0 %v1009
    %1186 = vmatprep.subr.mxu0 0.0
    %1187 = vmatpush1.msra.mxu0 %v1008
    %1188 = vmatprep.subr.mxu0 0.0
    %1189 = vmatpush1.msra.mxu0 %v1007
    %1190 = vmatprep.subr.mxu0 0.0
    %1191 = vmatpush1.msra.mxu0 %v1006
    %1192 = vmatprep.subr.mxu0 0.0
    %1193 = vmatpush1.msra.mxu0 %v1005
    %1194 = vmatprep.subr.mxu0 0.0
    %1195 = vmatpush1.msra.mxu0 %v1004
    %1196 = vmatprep.subr.mxu0 0.0
    %1197 = vmatpush1.msra.mxu0 %v1003
    %1198 = vmatprep.subr.mxu0 0.0
    %1199 = vmatpush1.msra.mxu0 %v1002
    %1200 = vmatprep.subr.mxu0 0.0
    %1201 = vmatpush1.msra.mxu0 %v1001
    %1202 = vmatprep.subr.mxu0 0.0
    %1203 = vmatpush1.msra.mxu0 %v1000
    %1204 = vmatprep.subr.mxu0 0.0
    %1205 = vmatpush1.msra.mxu0 %v999
    %1206 = vmatprep.subr.mxu0 0.0
    %1207 = vmatpush1.msra.mxu0 %v998
    %1208 = vmatprep.subr.mxu0 0.0
    %1209 = vmatpush2.msra.mxu0 0.0
    %1210 = vmatprep.subr.mxu0 0.0
    %1211 = vmatpush2.msra.mxu0 0.0
    %1212 = vmatprep.subr.mxu0 0.0
    %1213 = vmatpush2.msra.mxu0 0.0
    %1214 = vmatprep.subr.mxu0 0.0
    %1215 = vmatpush2.msra.mxu0 0.0
    %1216 = vmatprep.subr.mxu0 0.0
    %1217 = vmatpush2.msra.mxu0 0.0
    %1218 = vmatprep.subr.mxu0 0.0
    %1219 = vmatpush2.msra.mxu0 0.0
    %1220 = vmatprep.subr.mxu0 0.0
    %1221 = vmatpush2.msra.mxu0 0.0
    %1222 = vmatprep.subr.mxu0 0.0
    %1223 = vmatpush2.msra.mxu0 0.0
    %1224 = vmatprep.subr.mxu0 0.0
    %1225 = vmatpush2.msra.mxu0 0.0
    %1226 = vmatprep.subr.mxu0 0.0
    %1227 = vmatpush2.msra.mxu0 0.0
    %1228 = vmatprep.subr.mxu0 0.0
    %1229 = vmatpush2.msra.mxu0 0.0
    %1230 = vmatprep.subr.mxu0 0.0
    %1231 = vmatpush2.msra.mxu0 0.0
    %1232 = vmatprep.subr.mxu0 0.0
    %1233 = vmatpush2.msra.mxu0 0.0
    %1234 = vmatprep.subr.mxu0 0.0
    %1235 = vmatpush2.msra.mxu0 0.0
    %1236 = vmatprep.subr.mxu0 0.0
    %1237 = vmatpush2.msra.mxu0 0.0
    %1238 = vmatprep.subr.mxu0 0.0
    %1239 = vmatpush2.msra.mxu0 0.0
    %1240 = vmatprep.mubr.f32.mxu0 0.0
    %1241 = vmatmul.mubr.f32.gmra.mxu0 %v1172
    %v1242 = vpop.f32.mrf.mxu0
    %v1243 = vadd.f32 0.0, %v1242
    %v1244 = vpop.f32.mrf.mxu0
    %1245 = vdwg.mxu0
    %v1246 = vadd.f32 %v1175, %v1243
    %v1247 = vadd.f32 %v1246, %v1092
    %v1248 = vmax.f32 %v1247, 0.0
    %v1249 = vsel %vm442, %v1248, %v1172
    %v1250 = vsel %vm442, %v1248, 0.0
    %1251 = vst [vmem:[%s6 + $0x10] sm:$0xff] %v1250
    %v1252 = vld [vmem:[#allocation2 + $0x18] sm:$0xff]
    %1253 = vmatprep.subr.mxu0 0.0
    %1254 = vmatpush1.msra.mxu0 %v1013
    %1255 = vmatprep.subr.mxu0 0.0
    %1256 = vmatpush1.msra.mxu0 %v1012
    %1257 = vmatprep.subr.mxu0 0.0
    %1258 = vmatpush1.msra.mxu0 %v1011
    %1259 = vmatprep.subr.mxu0 0.0
    %1260 = vmatpush1.msra.mxu0 %v1010
    %1261 = vmatprep.subr.mxu0 0.0
    %1262 = vmatpush1.msra.mxu0 %v1009
    %1263 = vmatprep.subr.mxu0 0.0
    %1264 = vmatpush1.msra.mxu0 %v1008
    %1265 = vmatprep.subr.mxu0 0.0
    %1266 = vmatpush1.msra.mxu0 %v1007
    %1267 = vmatprep.subr.mxu0 0.0
    %1268 = vmatpush1.msra.mxu0 %v1006
    %1269 = vmatprep.subr.mxu0 0.0
    %1270 = vmatpush1.msra.mxu0 %v1005
    %1271 = vmatprep.subr.mxu0 0.0
    %1272 = vmatpush1.msra.mxu0 %v1004
    %1273 = vmatprep.subr.mxu0 0.0
    %1274 = vmatpush1.msra.mxu0 %v1003
    %1275 = vmatprep.subr.mxu0 0.0
    %1276 = vmatpush1.msra.mxu0 %v1002
    %1277 = vmatprep.subr.mxu0 0.0
    %1278 = vmatpush1.msra.mxu0 %v1001
    %1279 = vmatprep.subr.mxu0 0.0
    %1280 = vmatpush1.msra.mxu0 %v1000
    %1281 = vmatprep.subr.mxu0 0.0
    %1282 = vmatpush1.msra.mxu0 %v999
    %1283 = vmatprep.subr.mxu0 0.0
    %1284 = vmatpush1.msra.mxu0 %v998
    %1285 = vmatprep.subr.mxu0 0.0
    %1286 = vmatpush2.msra.mxu0 0.0
    %1287 = vmatprep.subr.mxu0 0.0
    %1288 = vmatpush2.msra.mxu0 0.0
    %1289 = vmatprep.subr.mxu0 0.0
    %1290 = vmatpush2.msra.mxu0 0.0
    %1291 = vmatprep.subr.mxu0 0.0
    %1292 = vmatpush2.msra.mxu0 0.0
    %1293 = vmatprep.subr.mxu0 0.0
    %1294 = vmatpush2.msra.mxu0 0.0
    %1295 = vmatprep.subr.mxu0 0.0
    %1296 = vmatpush2.msra.mxu0 0.0
    %1297 = vmatprep.subr.mxu0 0.0
    %1298 = vmatpush2.msra.mxu0 0.0
    %1299 = vmatprep.subr.mxu0 0.0
    %1300 = vmatpush2.msra.mxu0 0.0
    %1301 = vmatprep.subr.mxu0 0.0
    %1302 = vmatpush2.msra.mxu0 0.0
    %1303 = vmatprep.subr.mxu0 0.0
    %1304 = vmatpush2.msra.mxu0 0.0
    %1305 = vmatprep.subr.mxu0 0.0
    %1306 = vmatpush2.msra.mxu0 0.0
    %1307 = vmatprep.subr.mxu0 0.0
    %1308 = vmatpush2.msra.mxu0 0.0
    %1309 = vmatprep.subr.mxu0 0.0
    %1310 = vmatpush2.msra.mxu0 0.0
    %1311 = vmatprep.subr.mxu0 0.0
    %1312 = vmatpush2.msra.mxu0 0.0
    %1313 = vmatprep.subr.mxu0 0.0
    %1314 = vmatpush2.msra.mxu0 0.0
    %1315 = vmatprep.subr.mxu0 0.0
    %1316 = vmatpush2.msra.mxu0 0.0
    %1317 = vmatprep.mubr.f32.mxu0 0.0
    %1318 = vmatmul.mubr.f32.gmra.mxu0 %v1249
    %v1319 = vpop.f32.mrf.mxu0
    %v1320 = vadd.f32 0.0, %v1319
    %v1321 = vpop.f32.mrf.mxu0
    %1322 = vdwg.mxu0
    %v1323 = vadd.f32 %v1252, %v1320
    %v1324 = vadd.f32 %v1323, %v1092
    %v1325 = vmax.f32 %v1324, 0.0
    %v1326 = vsel %vm525, %v1325, %v1249
    %v1327 = vsel %vm525, %v1325, 0.0
    %1328 = vst [vmem:[%s6 + $0x18] sm:$0xff] %v1327
    %v1329 = vld [vmem:[#allocation2 + $0x20] sm:$0xff]
    %1330 = vmatprep.subr.mxu0 0.0
    %1331 = vmatpush1.msra.mxu0 %v1013
    %1332 = vmatprep.subr.mxu0 0.0
    %1333 = vmatpush1.msra.mxu0 %v1012
    %1334 = vmatprep.subr.mxu0 0.0
    %1335 = vmatpush1.msra.mxu0 %v1011
    %1336 = vmatprep.subr.mxu0 0.0
    %1337 = vmatpush1.msra.mxu0 %v1010
    %1338 = vmatprep.subr.mxu0 0.0
    %1339 = vmatpush1.msra.mxu0 %v1009
    %1340 = vmatprep.subr.mxu0 0.0
    %1341 = vmatpush1.msra.mxu0 %v1008
    %1342 = vmatprep.subr.mxu0 0.0
    %1343 = vmatpush1.msra.mxu0 %v1007
    %1344 = vmatprep.subr.mxu0 0.0
    %1345 = vmatpush1.msra.mxu0 %v1006
    %1346 = vmatprep.subr.mxu0 0.0
    %1347 = vmatpush1.msra.mxu0 %v1005
    %1348 = vmatprep.subr.mxu0 0.0
    %1349 = vmatpush1.msra.mxu0 %v1004
    %1350 = vmatprep.subr.mxu0 0.0
    %1351 = vmatpush1.msra.mxu0 %v1003
    %1352 = vmatprep.subr.mxu0 0.0
    %1353 = vmatpush1.msra.mxu0 %v1002
    %1354 = vmatprep.subr.mxu0 0.0
    %1355 = vmatpush1.msra.mxu0 %v1001
    %1356 = vmatprep.subr.mxu0 0.0
    %1357 = vmatpush1.msra.mxu0 %v1000
    %1358 = vmatprep.subr.mxu0 0.0
    %1359 = vmatpush1.msra.mxu0 %v999
    %1360 = vmatprep.subr.mxu0 0.0
    %1361 = vmatpush1.msra.mxu0 %v998
    %1362 = vmatprep.subr.mxu0 0.0
    %1363 = vmatpush2.msra.mxu0 0.0
    %1364 = vmatprep.subr.mxu0 0.0
    %1365 = vmatpush2.msra.mxu0 0.0
    %1366 = vmatprep.subr.mxu0 0.0
    %1367 = vmatpush2.msra.mxu0 0.0
    %1368 = vmatprep.subr.mxu0 0.0
    %1369 = vmatpush2.msra.mxu0 0.0
    %1370 = vmatprep.subr.mxu0 0.0
    %1371 = vmatpush2.msra.mxu0 0.0
    %1372 = vmatprep.subr.mxu0 0.0
    %1373 = vmatpush2.msra.mxu0 0.0
    %1374 = vmatprep.subr.mxu0 0.0
    %1375 = vmatpush2.msra.mxu0 0.0
    %1376 = vmatprep.subr.mxu0 0.0
    %1377 = vmatpush2.msra.mxu0 0.0
    %1378 = vmatprep.subr.mxu0 0.0
    %1379 = vmatpush2.msra.mxu0 0.0
    %1380 = vmatprep.subr.mxu0 0.0
    %1381 = vmatpush2.msra.mxu0 0.0
    %1382 = vmatprep.subr.mxu0 0.0
    %1383 = vmatpush2.msra.mxu0 0.0
    %1384 = vmatprep.subr.mxu0 0.0
    %1385 = vmatpush2.msra.mxu0 0.0
    %1386 = vmatprep.subr.mxu0 0.0
    %1387 = vmatpush2.msra.mxu0 0.0
    %1388 = vmatprep.subr.mxu0 0.0
    %1389 = vmatpush2.msra.mxu0 0.0
    %1390 = vmatprep.subr.mxu0 0.0
    %1391 = vmatpush2.msra.mxu0 0.0
    %1392 = vmatprep.subr.mxu0 0.0
    %1393 = vmatpush2.msra.mxu0 0.0
    %1394 = vmatprep.mubr.f32.mxu0 0.0
    %1395 = vmatmul.mubr.f32.gmra.mxu0 %v1326
    %v1396 = vpop.f32.mrf.mxu0
    %v1397 = vadd.f32 0.0, %v1396
    %v1398 = vpop.f32.mrf.mxu0
    %1399 = vdwg.mxu0
    %v1400 = vadd.f32 %v1329, %v1397
    %v1401 = vadd.f32 %v1400, %v1092
    %v1402 = vmax.f32 %v1401, 0.0
    %v1403 = vsel %vm608, %v1402, %v1326
    %v1404 = vsel %vm608, %v1402, 0.0
    %1405 = vst [vmem:[%s6 + $0x20] sm:$0xff] %v1404
    %v1406 = vld [vmem:[#allocation2 + $0x28] sm:$0xff]
    %1407 = vmatprep.subr.mxu0 0.0
    %1408 = vmatpush1.msra.mxu0 %v1013
    %1409 = vmatprep.subr.mxu0 0.0
    %1410 = vmatpush1.msra.mxu0 %v1012
    %1411 = vmatprep.subr.mxu0 0.0
    %1412 = vmatpush1.msra.mxu0 %v1011
    %1413 = vmatprep.subr.mxu0 0.0
    %1414 = vmatpush1.msra.mxu0 %v1010
    %1415 = vmatprep.subr.mxu0 0.0
    %1416 = vmatpush1.msra.mxu0 %v1009
    %1417 = vmatprep.subr.mxu0 0.0
    %1418 = vmatpush1.msra.mxu0 %v1008
    %1419 = vmatprep.subr.mxu0 0.0
    %1420 = vmatpush1.msra.mxu0 %v1007
    %1421 = vmatprep.subr.mxu0 0.0
    %1422 = vmatpush1.msra.mxu0 %v1006
    %1423 = vmatprep.subr.mxu0 0.0
    %1424 = vmatpush1.msra.mxu0 %v1005
    %1425 = vmatprep.subr.mxu0 0.0
    %1426 = vmatpush1.msra.mxu0 %v1004
    %1427 = vmatprep.subr.mxu0 0.0
    %1428 = vmatpush1.msra.mxu0 %v1003
    %1429 = vmatprep.subr.mxu0 0.0
    %1430 = vmatpush1.msra.mxu0 %v1002
    %1431 = vmatprep.subr.mxu0 0.0
    %1432 = vmatpush1.msra.mxu0 %v1001
    %1433 = vmatprep.subr.mxu0 0.0
    %1434 = vmatpush1.msra.mxu0 %v1000
    %1435 = vmatprep.subr.mxu0 0.0
    %1436 = vmatpush1.msra.mxu0 %v999
    %1437 = vmatprep.subr.mxu0 0.0
    %1438 = vmatpush1.msra.mxu0 %v998
    %1439 = vmatprep.subr.mxu0 0.0
    %1440 = vmatpush2.msra.mxu0 0.0
    %1441 = vmatprep.subr.mxu0 0.0
    %1442 = vmatpush2.msra.mxu0 0.0
    %1443 = vmatprep.subr.mxu0 0.0
    %1444 = vmatpush2.msra.mxu0 0.0
    %1445 = vmatprep.subr.mxu0 0.0
    %1446 = vmatpush2.msra.mxu0 0.0
    %1447 = vmatprep.subr.mxu0 0.0
    %1448 = vmatpush2.msra.mxu0 0.0
    %1449 = vmatprep.subr.mxu0 0.0
    %1450 = vmatpush2.msra.mxu0 0.0
    %1451 = vmatprep.subr.mxu0 0.0
    %1452 = vmatpush2.msra.mxu0 0.0
    %1453 = vmatprep.subr.mxu0 0.0
    %1454 = vmatpush2.msra.mxu0 0.0
    %1455 = vmatprep.subr.mxu0 0.0
    %1456 = vmatpush2.msra.mxu0 0.0
    %1457 = vmatprep.subr.mxu0 0.0
    %1458 = vmatpush2.msra.mxu0 0.0
    %1459 = vmatprep.subr.mxu0 0.0
    %1460 = vmatpush2.msra.mxu0 0.0
    %1461 = vmatprep.subr.mxu0 0.0
    %1462 = vmatpush2.msra.mxu0 0.0
    %1463 = vmatprep.subr.mxu0 0.0
    %1464 = vmatpush2.msra.mxu0 0.0
    %1465 = vmatprep.subr.mxu0 0.0
    %1466 = vmatpush2.msra.mxu0 0.0
    %1467 = vmatprep.subr.mxu0 0.0
    %1468 = vmatpush2.msra.mxu0 0.0
    %1469 = vmatprep.subr.mxu0 0.0
    %1470 = vmatpush2.msra.mxu0 0.0
    %1471 = vmatprep.mubr.f32.mxu0 0.0
    %1472 = vmatmul.mubr.f32.gmra.mxu0 %v1403
    %v1473 = vpop.f32.mrf.mxu0
    %v1474 = vadd.f32 0.0, %v1473
    %v1475 = vpop.f32.mrf.mxu0
    %1476 = vdwg.mxu0
    %v1477 = vadd.f32 %v1406, %v1474
    %v1478 = vadd.f32 %v1477, %v1092
    %v1479 = vmax.f32 %v1478, 0.0
    %v1480 = vsel %vm691, %v1479, %v1403
    %v1481 = vsel %vm691, %v1479, 0.0
    %1482 = vst [vmem:[%s6 + $0x28] sm:$0xff] %v1481
    %v1483 = vld [vmem:[#allocation2 + $0x30] sm:$0xff]
    %1484 = vmatprep.subr.mxu0 0.0
    %1485 = vmatpush1.msra.mxu0 %v1013
    %1486 = vmatprep.subr.mxu0 0.0
    %1487 = vmatpush1.msra.mxu0 %v1012
    %1488 = vmatprep.subr.mxu0 0.0
    %1489 = vmatpush1.msra.mxu0 %v1011
    %1490 = vmatprep.subr.mxu0 0.0
    %1491 = vmatpush1.msra.mxu0 %v1010
    %1492 = vmatprep.subr.mxu0 0.0
    %1493 = vmatpush1.msra.mxu0 %v1009
    %1494 = vmatprep.subr.mxu0 0.0
    %1495 = vmatpush1.msra.mxu0 %v1008
    %1496 = vmatprep.subr.mxu0 0.0
    %1497 = vmatpush1.msra.mxu0 %v1007
    %1498 = vmatprep.subr.mxu0 0.0
    %1499 = vmatpush1.msra.mxu0 %v1006
    %1500 = vmatprep.subr.mxu0 0.0
    %1501 = vmatpush1.msra.mxu0 %v1005
    %1502 = vmatprep.subr.mxu0 0.0
    %1503 = vmatpush1.msra.mxu0 %v1004
    %1504 = vmatprep.subr.mxu0 0.0
    %1505 = vmatpush1.msra.mxu0 %v1003
    %1506 = vmatprep.subr.mxu0 0.0
    %1507 = vmatpush1.msra.mxu0 %v1002
    %1508 = vmatprep.subr.mxu0 0.0
    %1509 = vmatpush1.msra.mxu0 %v1001
    %1510 = vmatprep.subr.mxu0 0.0
    %1511 = vmatpush1.msra.mxu0 %v1000
    %1512 = vmatprep.subr.mxu0 0.0
    %1513 = vmatpush1.msra.mxu0 %v999
    %1514 = vmatprep.subr.mxu0 0.0
    %1515 = vmatpush1.msra.mxu0 %v998
    %1516 = vmatprep.subr.mxu0 0.0
    %1517 = vmatpush2.msra.mxu0 0.0
    %1518 = vmatprep.subr.mxu0 0.0
    %1519 = vmatpush2.msra.mxu0 0.0
    %1520 = vmatprep.subr.mxu0 0.0
    %1521 = vmatpush2.msra.mxu0 0.0
    %1522 = vmatprep.subr.mxu0 0.0
    %1523 = vmatpush2.msra.mxu0 0.0
    %1524 = vmatprep.subr.mxu0 0.0
    %1525 = vmatpush2.msra.mxu0 0.0
    %1526 = vmatprep.subr.mxu0 0.0
    %1527 = vmatpush2.msra.mxu0 0.0
    %1528 = vmatprep.subr.mxu0 0.0
    %1529 = vmatpush2.msra.mxu0 0.0
    %1530 = vmatprep.subr.mxu0 0.0
    %1531 = vmatpush2.msra.mxu0 0.0
    %1532 = vmatprep.subr.mxu0 0.0
    %1533 = vmatpush2.msra.mxu0 0.0
    %1534 = vmatprep.subr.mxu0 0.0
    %1535 = vmatpush2.msra.mxu0 0.0
    %1536 = vmatprep.subr.mxu0 0.0
    %1537 = vmatpush2.msra.mxu0 0.0
    %1538 = vmatprep.subr.mxu0 0.0
    %1539 = vmatpush2.msra.mxu0 0.0
    %1540 = vmatprep.subr.mxu0 0.0
    %1541 = vmatpush2.msra.mxu0 0.0
    %1542 = vmatprep.subr.mxu0 0.0
    %1543 = vmatpush2.msra.mxu0 0.0
    %1544 = vmatprep.subr.mxu0 0.0
    %1545 = vmatpush2.msra.mxu0 0.0
    %1546 = vmatprep.subr.mxu0 0.0
    %1547 = vmatpush2.msra.mxu0 0.0
    %1548 = vmatprep.mubr.f32.mxu0 0.0
    %1549 = vmatmul.mubr.f32.gmra.mxu0 %v1480
    %v1550 = vpop.f32.mrf.mxu0
    %v1551 = vadd.f32 0.0, %v1550
    %v1552 = vpop.f32.mrf.mxu0
    %1553 = vdwg.mxu0
    %v1554 = vadd.f32 %v1483, %v1551
    %v1555 = vadd.f32 %v1554, %v1092
    %v1556 = vmax.f32 %v1555, 0.0
    %v1557 = vsel %vm774, %v1556, %v1480
    %v1558 = vsel %vm774, %v1556, 0.0
    %1559 = vst [vmem:[%s6 + $0x30] sm:$0xff] %v1558
    %v1560 = vld [vmem:[#allocation2 + $0x38] sm:$0xff]
    %1561 = vmatprep.subr.mxu0 0.0
    %1562 = vmatpush1.msra.mxu0 %v1013
    %1563 = vmatprep.subr.mxu0 0.0
    %1564 = vmatpush1.msra.mxu0 %v1012
    %1565 = vmatprep.subr.mxu0 0.0
    %1566 = vmatpush1.msra.mxu0 %v1011
    %1567 = vmatprep.subr.mxu0 0.0
    %1568 = vmatpush1.msra.mxu0 %v1010
    %1569 = vmatprep.subr.mxu0 0.0
    %1570 = vmatpush1.msra.mxu0 %v1009
    %1571 = vmatprep.subr.mxu0 0.0
    %1572 = vmatpush1.msra.mxu0 %v1008
    %1573 = vmatprep.subr.mxu0 0.0
    %1574 = vmatpush1.msra.mxu0 %v1007
    %1575 = vmatprep.subr.mxu0 0.0
    %1576 = vmatpush1.msra.mxu0 %v1006
    %1577 = vmatprep.subr.mxu0 0.0
    %1578 = vmatpush1.msra.mxu0 %v1005
    %1579 = vmatprep.subr.mxu0 0.0
    %1580 = vmatpush1.msra.mxu0 %v1004
    %1581 = vmatprep.subr.mxu0 0.0
    %1582 = vmatpush1.msra.mxu0 %v1003
    %1583 = vmatprep.subr.mxu0 0.0
    %1584 = vmatpush1.msra.mxu0 %v1002
    %1585 = vmatprep.subr.mxu0 0.0
    %1586 = vmatpush1.msra.mxu0 %v1001
    %1587 = vmatprep.subr.mxu0 0.0
    %1588 = vmatpush1.msra.mxu0 %v1000
    %1589 = vmatprep.subr.mxu0 0.0
    %1590 = vmatpush1.msra.mxu0 %v999
    %1591 = vmatprep.subr.mxu0 0.0
    %1592 = vmatpush1.msra.mxu0 %v998
    %1593 = vmatprep.subr.mxu0 0.0
    %1594 = vmatpush2.msra.mxu0 0.0
    %1595 = vmatprep.subr.mxu0 0.0
    %1596 = vmatpush2.msra.mxu0 0.0
    %1597 = vmatprep.subr.mxu0 0.0
    %1598 = vmatpush2.msra.mxu0 0.0
    %1599 = vmatprep.subr.mxu0 0.0
    %1600 = vmatpush2.msra.mxu0 0.0
    %1601 = vmatprep.subr.mxu0 0.0
    %1602 = vmatpush2.msra.mxu0 0.0
    %1603 = vmatprep.subr.mxu0 0.0
    %1604 = vmatpush2.msra.mxu0 0.0
    %1605 = vmatprep.subr.mxu0 0.0
    %1606 = vmatpush2.msra.mxu0 0.0
    %1607 = vmatprep.subr.mxu0 0.0
    %1608 = vmatpush2.msra.mxu0 0.0
    %1609 = vmatprep.subr.mxu0 0.0
    %1610 = vmatpush2.msra.mxu0 0.0
    %1611 = vmatprep.subr.mxu0 0.0
    %1612 = vmatpush2.msra.mxu0 0.0
    %1613 = vmatprep.subr.mxu0 0.0
    %1614 = vmatpush2.msra.mxu0 0.0
    %1615 = vmatprep.subr.mxu0 0.0
    %1616 = vmatpush2.msra.mxu0 0.0
    %1617 = vmatprep.subr.mxu0 0.0
    %1618 = vmatpush2.msra.mxu0 0.0
    %1619 = vmatprep.subr.mxu0 0.0
    %1620 = vmatpush2.msra.mxu0 0.0
    %1621 = vmatprep.subr.mxu0 0.0
    %1622 = vmatpush2.msra.mxu0 0.0
    %1623 = vmatprep.subr.mxu0 0.0
    %1624 = vmatpush2.msra.mxu0 0.0
    %1625 = vmatprep.mubr.f32.mxu0 0.0
    %1626 = vmatmul.mubr.f32.gmra.mxu0 %v1557
    %v1627 = vpop.f32.mrf.mxu0
    %v1628 = vadd.f32 0.0, %v1627
    %v1629 = vpop.f32.mrf.mxu0
    %1630 = vdwg.mxu0
    %v1631 = vadd.f32 %v1560, %v1628
    %v1632 = vadd.f32 %v1631, %v1092
    %v1633 = vmax.f32 %v1632, 0.0
    %v1634 = vsel %vm857, %v1633, 0.0
    %1635 = vst [vmem:[%s6 + $0x38] sm:$0xff] %v1634
    // Predicated region
    $region30: #{rnn_forward.2} parent=1 // pred_check
      _
    $region31: #{rnn_forward.2} parent=1 // pred_check_branch
      %1637 = sbr.rel (0) target = $region33
    $region32: #{rnn_forward.2} parent=1 // pred_region
      _
    $region33: #{rnn_forward.2} parent=1 // pred_fallthru
      _
    // Predicated region
    $region34: #{rnn_forward.2} parent=1 // pred_check
      _
    $region35: #{rnn_forward.2} parent=1 // pred_check_branch
      %1639 = sbr.rel (0) target = $region37
    $region36: #{rnn_forward.2} parent=1 // pred_region
      _
    $region37: #{rnn_forward.2} parent=1 // pred_fallthru
      _
    %1640 = vsyncpa [#allocation5], 1

</llo_original>
